<compile_context>
chip_gen: v5e
topology: v5e:2x2
jax: 0.10.0
libtpu: 0.0.40
codegen_flags: <defaults>
</compile_context>

<pallas_src>
import math
from functools import partial

import jax
import jax.numpy as jnp
from jax import lax
from jax.experimental import pallas as pl
from jax.experimental.pallas import tpu as pltpu

# MXU operand dtype (accumulation is always float32). Set to jnp.float32 to
# disable the bf16 matmul path.
MATMUL_DTYPE = jnp.bfloat16


# ----------------------------------------------------------------------------
# Pallas kernel: LayerNorm -> L transformer layers -> highway + importance
# ----------------------------------------------------------------------------
def make_transnet_kernel(BB, TP, D, H, L, eps):
    DH = D // H
    HD = D                      # head-concat width (H * DH)
    scale = 1.0 / math.sqrt(DH)
    inv_d = 1.0 / D
    M = BB * TP
    f32 = jnp.float32

    def layer_norm(v, g, b):
        mu = jnp.sum(v, axis=-1, keepdims=True) * inv_d
        c = v - mu
        var = jnp.sum(c * c, axis=-1, keepdims=True) * inv_d
        return c * lax.rsqrt(var + eps) * g + b

    def gelu(v):
        # TODO(synk): RecBole uses exact erf-GELU; tanh approximation used here
        # (erf lowering availability in Mosaic is not guaranteed).
        return 0.5 * v * (1.0 + jnp.tanh(0.7978845608028654 *
                                         (v + 0.044715 * v * v * v)))

    def mm(a_mx, w):            # bf16 operands on the MXU, f32 accumulation
        return jnp.dot(a_mx, w, preferred_element_type=f32)

    def kernel(x_ref, emb_ref, lens_ref,
               ln0g_ref, ln0b_ref,
               wqkv_ref, bqkv_ref, wo_ref, bo_ref,
               ln1g_ref, ln1b_ref, w1_ref, b1_ref, w2_ref, b2_ref,
               ln2g_ref, ln2b_ref, hww_ref, hwb_ref, impw_ref, impb_ref,
               out_ref, imp_ref):
        # Additive key bias (BB, 1, TP), built once per batch block.
        # Positions 0..len are valid (mean token + len items).
        col = lax.broadcasted_iota(jnp.int32, (BB, 1, TP), 2)
        key_bias = jnp.where(col <= lens_ref[...], 0.0, -10000.0).astype(f32)

        # embedding LayerNorm (dropout is a no-op in eval)
        h = layer_norm(emb_ref[...].reshape(M, D),
                       ln0g_ref[...], ln0b_ref[...])

        # ---- transformer layers: static loop, all weights resident in VMEM --
        for l in range(L):
            hb = h.astype(MATMUL_DTYPE)                      # hoisted cast
            # fused, lane-dense QKV projection: (M, QKVW >= 128)
            qkv = mm(hb, wqkv_ref[l]) + bqkv_ref[l]

            ctx_heads = []
            for hd in range(H):                              # static head loop
                q = qkv[:, hd * DH:(hd + 1) * DH].reshape(BB, TP, DH)
                k = qkv[:, HD + hd * DH:HD + (hd + 1) * DH].reshape(BB, TP, DH)
                v = qkv[:, 2 * HD + hd * DH:2 * HD + (hd + 1) * DH]
                v = v.reshape(BB, TP, DH)
                s = jnp.einsum('btd,bsd->bts',
                               q.astype(MATMUL_DTYPE), k.astype(MATMUL_DTYPE),
                               preferred_element_type=f32) * scale + key_bias
                s = s - jnp.max(s, axis=-1, keepdims=True)
                p = jnp.exp(s)
                p = p / jnp.sum(p, axis=-1, keepdims=True)   # exact softmax
                ctx = jnp.einsum('bts,bsd->btd',
                                 p.astype(MATMUL_DTYPE), v.astype(MATMUL_DTYPE),
                                 preferred_element_type=f32)
                ctx_heads.append(ctx.reshape(M, DH))

            # head concat folded into a single (D, D) output projection
            ctx_all = (ctx_heads[0] if H == 1
                       else jnp.concatenate(ctx_heads, axis=-1))
            attn = mm(ctx_all.astype(MATMUL_DTYPE), wo_ref[l]) + bo_ref[l]

            h = layer_norm(attn + h, ln1g_ref[l], ln1b_ref[l])

            # feed-forward (inner dim zero-padded to a lane-dense width)
            ff = gelu(mm(h.astype(MATMUL_DTYPE), w1_ref[l]) + b1_ref[l])
            ff = mm(ff.astype(MATMUL_DTYPE), w2_ref[l]) + b2_ref[l]
            h = layer_norm(ff + h, ln2g_ref[l], ln2b_ref[l])

        # ---- epilogue: highway gating + importance-head logits -------------
        x = x_ref[...].reshape(M, D)
        gate = jax.nn.sigmoid(mm(x.astype(MATMUL_DTYPE), hww_ref[0:D, :]) +
                              mm(h.astype(MATMUL_DTYPE), hww_ref[D:2 * D, :]) +
                              hwb_ref[...])
        out = gate * x + (1.0 - gate) * h
        out3 = out.reshape(BB, TP, D)
        out_ref[...] = out3

        # importance = out @ W_h + out[:, 0:1, :] @ W_x + b   (width-1 head
        # done as broadcast-mul + lane reduce; masking/entmax in the wrapper)
        wx = impw_ref[0:1, :].reshape(1, 1, D)
        wh = impw_ref[1:2, :].reshape(1, 1, D)
        imp = (jnp.sum(out3 * wh, axis=-1, keepdims=True) +
               jnp.sum(out3[:, 0:1, :] * wx, axis=-1, keepdims=True) +
               impb_ref[...])
        imp_ref[...] = imp

    return kernel


def _vmem_limit_bytes(kp, BB, TP, D):
    def nbytes(a):
        return math.prod(a.shape) * jnp.dtype(a.dtype).itemsize

    act = BB * TP * D * 4
    w_total = sum(nbytes(v) for v in kp.values())
    # x + emb + lens double-buffered, out + imp double-buffered, weights
    # (constant index maps, but the pipeline still allocates 2 buffers each).
    est = 2 * (2 * act + BB * 4) + 2 * (act + BB * TP * 4) + 2 * w_total
    # 4x margin for Mosaic internal scratch; cap well below v7x's 64 MiB/TC.
    return int(min(40 << 20, max(8 << 20, 4 * est)))


def run_transnet_kernel(x, emb_sum, lengths, kp, cfg, block_b=32):
    B, T, D = x.shape
    L = cfg['n_layers']
    H = cfg['n_heads']
    QKVW = kp['wqkv'].shape[-1]
    IP = kp['w1'].shape[-1]

    TP = ((T + 7) // 8) * 8                 # sublane-aligned seq length
    BB = min(block_b, B)
    # v7x has 2 TensorCores: keep >= 2 parallel batch blocks whenever that
    # still leaves the flattened MXU M dim (BB*TP) >= 128.
    if BB >= B and B > 1 and ((B + 1) // 2) * TP >= 128:
        BB = (B + 1) // 2
    Bp = ((B + BB - 1) // BB) * BB          # pad batch to a multiple of BB
    nb = Bp // BB

    xp = jnp.pad(x, ((0, Bp - B), (0, TP - T), (0, 0)))
    ep = jnp.pad(emb_sum, ((0, Bp - B), (0, TP - T), (0, 0)))
    lp = jnp.pad(lengths.astype(jnp.int32), (0, Bp - B)).reshape(Bp, 1, 1)

    kern = make_transnet_kernel(BB, TP, D, H, L, cfg['layer_norm_eps'])

    bmap = lambda i: (i, 0, 0)              # per-batch-block activations
    c2 = lambda i: (0, 0)                   # resident 2-D weights
    c3 = lambda i: (0, 0, 0)                # resident 3-D weights

    in_specs = [
        pl.BlockSpec((BB, TP, D), bmap),                                  # x
        pl.BlockSpec((BB, TP, D), bmap),                                  # emb
        pl.BlockSpec((BB, 1, 1), bmap),                                   # lens
        pl.BlockSpec((1, D), c2), pl.BlockSpec((1, D), c2),               # ln0
        pl.BlockSpec((L, D, QKVW), c3), pl.BlockSpec((L, 1, QKVW), c3),   # wqkv,bqkv
        pl.BlockSpec((L, D, D), c3), pl.BlockSpec((L, 1, D), c3),         # wo,bo
        pl.BlockSpec((L, 1, D), c3), pl.BlockSpec((L, 1, D), c3),         # ln1
        pl.BlockSpec((L, D, IP), c3), pl.BlockSpec((L, 1, IP), c3),       # w1,b1
        pl.BlockSpec((L, IP, D), c3), pl.BlockSpec((L, 1, D), c3),        # w2,b2
        pl.BlockSpec((L, 1, D), c3), pl.BlockSpec((L, 1, D), c3),         # ln2
        pl.BlockSpec((2 * D, D), c2), pl.BlockSpec((1, D), c2),           # highway
        pl.BlockSpec((2, D), c2), pl.BlockSpec((1, 1), c2),               # importance
    ]
    out_specs = [pl.BlockSpec((BB, TP, D), bmap),
                 pl.BlockSpec((BB, TP, 1), bmap)]
    out_shape = (jax.ShapeDtypeStruct((Bp, TP, D), jnp.float32),
                 jax.ShapeDtypeStruct((Bp, TP, 1), jnp.float32))

    grid_spec = pltpu.PrefetchScalarGridSpec(
        num_scalar_prefetch=0,
        grid=(nb,),
        in_specs=in_specs,
        out_specs=out_specs,
    )

    out, imp = pl.pallas_call(
        kern,
        grid_spec=grid_spec,
        out_shape=out_shape,
        compiler_params=pltpu.CompilerParams(
            dimension_semantics=("parallel",),
            vmem_limit_bytes=_vmem_limit_bytes(kp, BB, TP, D)),
    )(xp, ep, lp,
      kp['ln0_g'], kp['ln0_b'],
      kp['wqkv'], kp['bqkv'], kp['wo'], kp['bo'],
      kp['ln1_g'], kp['ln1_b'], kp['w1'], kp['b1'], kp['w2'], kp['b2'],
      kp['ln2_g'], kp['ln2_b'], kp['hw_w'], kp['hw_b'],
      kp['imp_w'], kp['imp_b'])

    return out[:B, :T, :], imp[:B, :T, :]


# ----------------------------------------------------------------------------
# Wrapper-side parameter re-layout (zero-cost, done once under jit)
# ----------------------------------------------------------------------------
def prepare_kernel_params(p, cfg):
    D = cfg['embedding_size']
    I = cfg['inner_size']
    mdt = MATMUL_DTYPE
    f32 = jnp.float32

    def lane_pad(a, width):
        return jnp.pad(a, [(0, 0)] * (a.ndim - 1) + [(0, width - a.shape[-1])])

    # Fused QKV projection, zero-padded to a lane-dense width (>= 128).
    QKVW = max(128, ((3 * D + 127) // 128) * 128)
    wqkv = lane_pad(jnp.concatenate([p['wq'], p['wk'], p['wv']], axis=-1), QKVW)
    bqkv = lane_pad(jnp.concatenate([p['bq'], p['bk'], p['bv']], axis=-1), QKVW)

    # FFN inner dim zero-padded to a lane-dense width (padded lanes contribute
    # 0 because b1 pad is 0 (GELU(0)=0) and the matching w2 rows are 0).
    IP = max(128, ((I + 127) // 128) * 128)
    w1 = lane_pad(p['w1'], IP)                                 # (L, D, IP)
    b1 = lane_pad(p['b1'], IP)                                 # (L, 1, IP)
    w2 = jnp.pad(p['w2'], ((0, 0), (0, IP - I), (0, 0)))       # (L, IP, D)

    # importance_fn Linear(2D,1): row 0 = mean-token weights, row 1 = per-pos.
    imp_w = jnp.concatenate([p['imp_w'][0:D, :].T,
                             p['imp_w'][D:2 * D, :].T], axis=0)  # (2, D)

    return dict(
        ln0_g=p['ln0_g'].astype(f32), ln0_b=p['ln0_b'].astype(f32),
        wqkv=wqkv.astype(mdt), bqkv=bqkv.astype(f32),
        wo=p['wo'].astype(mdt), bo=p['bo'].astype(f32),
        ln1_g=p['ln1_g'].astype(f32), ln1_b=p['ln1_b'].astype(f32),
        w1=w1.astype(mdt), b1=b1.astype(f32),
        w2=w2.astype(mdt), b2=p['b2'].astype(f32),
        ln2_g=p['ln2_g'].astype(f32), ln2_b=p['ln2_b'].astype(f32),
        hw_w=p['hw_w'].astype(mdt), hw_b=p['hw_b'].astype(f32),
        imp_w=imp_w.astype(f32), imp_b=p['imp_b'].astype(f32),
    )


# ----------------------------------------------------------------------------
# Plain-JAX glue: entmax_bisect over the sequence axis
# ----------------------------------------------------------------------------
def entmax_bisect(X, alpha, axis, n_iter=30):
    # mirrors entmax.entmax_bisect (alpha > 1); ~30 halvings reach f32 eps.
    # TODO(synk): reference casts to float64; float32 used here (x64 disabled).
    d = X.shape[axis]
    Xa = X * (alpha - 1.0)
    max_val = jnp.max(Xa, axis=axis, keepdims=True)
    exp = 1.0 / (alpha - 1.0)

    def _p(z):
        return jnp.maximum(z, 0.0) ** exp

    tau_lo = max_val - 1.0
    tau_hi = max_val - (1.0 / d) ** (alpha - 1.0)
    f_lo = jnp.sum(_p(Xa - tau_lo), axis=axis, keepdims=True) - 1.0
    dm = tau_hi - tau_lo
    p_init = _p(Xa - tau_hi)

    def body(i, carry):
        tau_lo, dm, _ = carry
        dm = dm * 0.5
        tau_m = tau_lo + dm
        p_m = _p(Xa - tau_m)
        f_m = jnp.sum(p_m, axis=axis, keepdims=True) - 1.0
        tau_lo = jnp.where(f_m * f_lo >= 0, tau_m, tau_lo)
        return (tau_lo, dm, p_m)

    _, _, p_m = lax.fori_loop(0, n_iter, body, (tau_lo, dm, p_init))
    return p_m / jnp.sum(p_m, axis=axis, keepdims=True)


# ----------------------------------------------------------------------------
# Parameters (deterministic synthetic init following the module's shapes)
# ----------------------------------------------------------------------------
def init_params(key, cfg):
    D = cfg['embedding_size']
    I = cfg['inner_size']
    L = cfg['n_layers']
    S = cfg['seqlen']
    std = cfg['initializer_range']
    stdv = 1.0 / math.sqrt(D)
    keys = iter(jax.random.split(key, 20))

    def nrm(shape):
        return std * jax.random.normal(next(keys), shape, jnp.float32)

    p = {}
    p['item_emb'] = jax.random.uniform(next(keys), (cfg['n_items'], D),
                                       jnp.float32, -stdv, stdv)
    p['pos_emb'] = nrm((S + 1, D))
    p['rep_emb'] = nrm((cfg['max_repeat'] + 1, D))
    p['ln0_g'] = jnp.ones((1, D), jnp.float32)
    p['ln0_b'] = jnp.zeros((1, D), jnp.float32)
    p['wq'] = nrm((L, D, D)); p['bq'] = jnp.zeros((L, 1, D), jnp.float32)
    p['wk'] = nrm((L, D, D)); p['bk'] = jnp.zeros((L, 1, D), jnp.float32)
    p['wv'] = nrm((L, D, D)); p['bv'] = jnp.zeros((L, 1, D), jnp.float32)
    p['wo'] = nrm((L, D, D)); p['bo'] = jnp.zeros((L, 1, D), jnp.float32)
    p['ln1_g'] = jnp.ones((L, 1, D), jnp.float32)
    p['ln1_b'] = jnp.zeros((L, 1, D), jnp.float32)
    p['w1'] = nrm((L, D, I)); p['b1'] = jnp.zeros((L, 1, I), jnp.float32)
    p['w2'] = nrm((L, I, D)); p['b2'] = jnp.zeros((L, 1, D), jnp.float32)
    p['ln2_g'] = jnp.ones((L, 1, D), jnp.float32)
    p['ln2_b'] = jnp.zeros((L, 1, D), jnp.float32)
    p['hw_w'] = nrm((2 * D, D)); p['hw_b'] = jnp.zeros((1, D), jnp.float32)
    p['imp_w'] = nrm((2 * D, 1)); p['imp_b'] = jnp.zeros((1, 1), jnp.float32)
    return p


# ----------------------------------------------------------------------------
# MIASREC.forward
# ----------------------------------------------------------------------------
def miasrec_forward(item_seq, p, cfg):
    B, S = item_seq.shape
    T = S + 1
    D = cfg['embedding_size']

    # pack/reverse/pad equivalent: reverse valid items per row.
    # TODO(synk): assumes suffix padding (pack_padded_sequence-compatible input).
    lengths = jnp.sum(item_seq != 0, axis=1).astype(jnp.int32)         # (B,)
    pos = jnp.arange(S)[None, :]
    rev_idx = jnp.clip(lengths[:, None] - 1 - pos, 0, S - 1)
    item_rev = jnp.where(pos < lengths[:, None],
                         jnp.take_along_axis(item_seq, rev_idx, axis=1), 0)

    # item embedding + mean-token prepend (division guarded for empty rows)
    x_items = p['item_emb'][item_rev]                                  # (B,S,D)
    mask_s = (item_rev > 0).astype(jnp.float32)
    denom = jnp.maximum(jnp.sum(mask_s, axis=1, keepdims=True), 1.0)
    alpha = mask_s / denom
    mean_emb = jnp.sum(alpha[..., None] * x_items, axis=1)
    x = jnp.concatenate([mean_emb[:, None, :], x_items], axis=1)       # (B,T,D)
    seq_wm = jnp.concatenate(
        [jnp.ones((B, 1), item_seq.dtype), item_rev], axis=1)          # (B,T)
    mask = seq_wm > 0

    # position + repeat embeddings (gather glue)
    pos_e = p['pos_emb'][jnp.arange(T)]                                # (T,D)
    is_rep = jnp.sum(seq_wm[:, :, None] == seq_wm[:, None, :], axis=-1)
    is_rep = jnp.where(mask, is_rep, 0)
    is_rep = jnp.minimum(is_rep, cfg['max_repeat'])
    rep_e = p['rep_emb'][is_rep]                                       # (B,T,D)
    emb_sum = x + pos_e[None, :, :] + rep_e

    # hot path in the Pallas kernel (mask derived in-kernel from lengths);
    # returns highway output AND fused importance-head logits.
    kp = prepare_kernel_params(p, cfg)
    out, imp = run_transnet_kernel(x, emb_sum, lengths, kp, cfg)       # (B,T,*)

    # masking + entmax stay as plain-JAX glue
    imp = jnp.where(mask[..., None], imp, -9.0e15)
    gamma = entmax_bisect(imp, cfg['entmax_alpha'], axis=1)            # (B,T,1)
    output = out * gamma
    seq_out = jnp.where(gamma[:, :, 0] == 0, 0, seq_wm)
    return seq_out, output


# ----------------------------------------------------------------------------
if __name__ == "__main__":
    cfg = dict(
        n_items=50, embedding_size=32, inner_size=64,
        n_layers=2, n_heads=2, seqlen=8,
        hidden_dropout_prob=0.0, attn_dropout_prob=0.0,   # eval: dropout no-op
        hidden_act='gelu', layer_norm_eps=1e-12, initializer_range=0.02,
        entmax_alpha=1.5, max_repeat=2,
        sess_dropout=0.0, item_dropout=0.0,
        temperature=0.07, beta_logit=0.5, device='tpu',
    )

    key = jax.random.PRNGKey(0)
    pkey, skey = jax.random.split(key)
    params = init_params(pkey, cfg)

    B, S = 2, cfg['seqlen']
    seq = jax.random.randint(skey, (B, S), 1, cfg['n_items'], dtype=jnp.int32)
    lengths = jnp.array([S, 5], dtype=jnp.int32)   # row 0 full, row 1 padded
    seq = jnp.where(jnp.arange(S)[None, :] < lengths[:, None], seq, 0)

    fwd = jax.jit(partial(miasrec_forward, cfg=cfg))
    seq_out, output = fwd(seq, params)
    jax.block_until_ready((seq_out, output))

    assert seq_out.shape == (B, S + 1)
    assert output.shape == (B, S + 1, cfg['embedding_size'])
    assert bool(jnp.all(jnp.isfinite(output)))
    print("KERNEL_OK")
</pallas_src>

<mosaic_0001>
module attributes {stable_mosaic.version = 11 : i64} {
  func.func @kernel(%arg0: i32, %arg1: memref<2x16x32xf32, #tpu.memory_space<vmem>>, %arg2: memref<2x16x32xf32, #tpu.memory_space<vmem>>, %arg3: memref<2x1x1xi32, #tpu.memory_space<vmem>>, %arg4: memref<1x32xf32, #tpu.memory_space<vmem>>, %arg5: memref<1x32xf32, #tpu.memory_space<vmem>>, %arg6: memref<2x32x128xbf16, #tpu.memory_space<vmem>>, %arg7: memref<2x1x128xf32, #tpu.memory_space<vmem>>, %arg8: memref<2x32x32xbf16, #tpu.memory_space<vmem>>, %arg9: memref<2x1x32xf32, #tpu.memory_space<vmem>>, %arg10: memref<2x1x32xf32, #tpu.memory_space<vmem>>, %arg11: memref<2x1x32xf32, #tpu.memory_space<vmem>>, %arg12: memref<2x32x128xbf16, #tpu.memory_space<vmem>>, %arg13: memref<2x1x128xf32, #tpu.memory_space<vmem>>, %arg14: memref<2x128x32xbf16, #tpu.memory_space<vmem>>, %arg15: memref<2x1x32xf32, #tpu.memory_space<vmem>>, %arg16: memref<2x1x32xf32, #tpu.memory_space<vmem>>, %arg17: memref<2x1x32xf32, #tpu.memory_space<vmem>>, %arg18: memref<64x32xbf16, #tpu.memory_space<vmem>>, %arg19: memref<1x32xf32, #tpu.memory_space<vmem>>, %arg20: memref<2x32xf32, #tpu.memory_space<vmem>>, %arg21: memref<1x1xf32, #tpu.memory_space<vmem>>, %arg22: memref<2x16x32xf32, #tpu.memory_space<vmem>>, %arg23: memref<2x16x1xf32, #tpu.memory_space<vmem>>) attributes {dimension_semantics = [#tpu.dimension_semantics<parallel>], iteration_bounds = array<i64: 1>, scalar_prefetch = 0 : i64, scratch_operands = 0 : i64, tpu.core_type = #tpu.core_type<tc>, window_params = [{transform_indices = @transform_0, window_bounds = array<i64: 2, 16, 32>}, {transform_indices = @transform_1, window_bounds = array<i64: 2, 16, 32>}, {transform_indices = @transform_2, window_bounds = array<i64: 2, 1, 1>}, {pipeline_mode = #tpu.pipeline_mode<synchronous>, transform_indices = @transform_3, window_bounds = array<i64: 1, 32>}, {pipeline_mode = #tpu.pipeline_mode<synchronous>, transform_indices = @transform_4, window_bounds = array<i64: 1, 32>}, {pipeline_mode = #tpu.pipeline_mode<synchronous>, transform_indices = @transform_5, window_bounds = array<i64: 2, 32, 128>}, {pipeline_mode = #tpu.pipeline_mode<synchronous>, transform_indices = @transform_6, window_bounds = array<i64: 2, 1, 128>}, {pipeline_mode = #tpu.pipeline_mode<synchronous>, transform_indices = @transform_7, window_bounds = array<i64: 2, 32, 32>}, {pipeline_mode = #tpu.pipeline_mode<synchronous>, transform_indices = @transform_8, window_bounds = array<i64: 2, 1, 32>}, {pipeline_mode = #tpu.pipeline_mode<synchronous>, transform_indices = @transform_9, window_bounds = array<i64: 2, 1, 32>}, {pipeline_mode = #tpu.pipeline_mode<synchronous>, transform_indices = @transform_10, window_bounds = array<i64: 2, 1, 32>}, {pipeline_mode = #tpu.pipeline_mode<synchronous>, transform_indices = @transform_11, window_bounds = array<i64: 2, 32, 128>}, {pipeline_mode = #tpu.pipeline_mode<synchronous>, transform_indices = @transform_12, window_bounds = array<i64: 2, 1, 128>}, {pipeline_mode = #tpu.pipeline_mode<synchronous>, transform_indices = @transform_13, window_bounds = array<i64: 2, 128, 32>}, {pipeline_mode = #tpu.pipeline_mode<synchronous>, transform_indices = @transform_14, window_bounds = array<i64: 2, 1, 32>}, {pipeline_mode = #tpu.pipeline_mode<synchronous>, transform_indices = @transform_15, window_bounds = array<i64: 2, 1, 32>}, {pipeline_mode = #tpu.pipeline_mode<synchronous>, transform_indices = @transform_16, window_bounds = array<i64: 2, 1, 32>}, {pipeline_mode = #tpu.pipeline_mode<synchronous>, transform_indices = @transform_17, window_bounds = array<i64: 64, 32>}, {pipeline_mode = #tpu.pipeline_mode<synchronous>, transform_indices = @transform_18, window_bounds = array<i64: 1, 32>}, {pipeline_mode = #tpu.pipeline_mode<synchronous>, transform_indices = @transform_19, window_bounds = array<i64: 2, 32>}, {pipeline_mode = #tpu.pipeline_mode<synchronous>, transform_indices = @transform_20, window_bounds = array<i64: 1, 1>}, {transform_indices = @transform_21, window_bounds = array<i64: 2, 16, 32>}, {transform_indices = @transform_22, window_bounds = array<i64: 2, 16, 1>}]} {
    %0 = tpu.iota {dimensions = array<i32: 2>} : vector<2x1x16xi32>
    %c0 = arith.constant 0 : index
    %c0_0 = arith.constant 0 : index
    %c0_1 = arith.constant 0 : index
    %1 = vector.load %arg3[%c0, %c0_0, %c0_1] : memref<2x1x1xi32, #tpu.memory_space<vmem>>, vector<2x1x1xi32>
    %2 = vector.broadcast %1 : vector<2x1x1xi32> to vector<2x1x16xi32>
    %3 = arith.cmpi sle, %0, %2 : vector<2x1x16xi32>
    %cst = arith.constant 0.000000e+00 : f32
    %cst_2 = arith.constant -1.000000e+04 : f32
    %4 = vector.broadcast %cst : f32 to vector<2x1x16xf32>
    %5 = vector.broadcast %cst_2 : f32 to vector<2x1x16xf32>
    %6 = arith.select %3, %4, %5 : vector<2x1x16xi1>, vector<2x1x16xf32>
    %c0_3 = arith.constant 0 : index
    %c0_4 = arith.constant 0 : index
    %c0_5 = arith.constant 0 : index
    %7 = vector.load %arg2[%c0_3, %c0_4, %c0_5] : memref<2x16x32xf32, #tpu.memory_space<vmem>>, vector<2x16x32xf32>
    %8 = vector.shape_cast %7 : vector<2x16x32xf32> to vector<32x32xf32>
    %c0_6 = arith.constant 0 : index
    %c0_7 = arith.constant 0 : index
    %9 = vector.load %arg4[%c0_6, %c0_7] : memref<1x32xf32, #tpu.memory_space<vmem>>, vector<1x32xf32>
    %c0_8 = arith.constant 0 : index
    %c0_9 = arith.constant 0 : index
    %10 = vector.load %arg5[%c0_8, %c0_9] : memref<1x32xf32, #tpu.memory_space<vmem>>, vector<1x32xf32>
    %cst_10 = arith.constant dense<0.000000e+00> : vector<32xf32>
    %11 = vector.multi_reduction <add>, %8, %cst_10 [1] : vector<32x32xf32> to vector<32xf32>
    %12 = vector.shape_cast %11 : vector<32xf32> to vector<32x1xf32>
    %cst_11 = arith.constant 3.125000e-02 : f32
    %13 = vector.broadcast %cst_11 : f32 to vector<32x1xf32>
    %14 = arith.mulf %12, %13 : vector<32x1xf32>
    %15 = vector.broadcast %14 : vector<32x1xf32> to vector<32x32xf32>
    %16 = arith.subf %8, %15 : vector<32x32xf32>
    %17 = arith.mulf %16, %16 : vector<32x32xf32>
    %cst_12 = arith.constant dense<0.000000e+00> : vector<32xf32>
    %18 = vector.multi_reduction <add>, %17, %cst_12 [1] : vector<32x32xf32> to vector<32xf32>
    %19 = vector.shape_cast %18 : vector<32xf32> to vector<32x1xf32>
    %cst_13 = arith.constant 3.125000e-02 : f32
    %20 = vector.broadcast %cst_13 : f32 to vector<32x1xf32>
    %21 = arith.mulf %19, %20 : vector<32x1xf32>
    %cst_14 = arith.constant 9.99999996E-13 : f32
    %22 = vector.broadcast %cst_14 : f32 to vector<32x1xf32>
    %23 = arith.addf %21, %22 : vector<32x1xf32>
    %24 = math.rsqrt %23 : vector<32x1xf32>
    %25 = vector.broadcast %24 : vector<32x1xf32> to vector<32x32xf32>
    %26 = arith.mulf %16, %25 : vector<32x32xf32>
    %27 = vector.broadcast %9 : vector<1x32xf32> to vector<32x32xf32>
    %28 = arith.mulf %26, %27 : vector<32x32xf32>
    %29 = vector.broadcast %10 : vector<1x32xf32> to vector<32x32xf32>
    %30 = arith.addf %28, %29 : vector<32x32xf32>
    %31 = arith.truncf %30 : vector<32x32xf32> to vector<32x32xbf16>
    %c0_15 = arith.constant 0 : index
    %c0_16 = arith.constant 0 : index
    %c0_17 = arith.constant 0 : index
    %32 = vector.load %arg6[%c0_15, %c0_16, %c0_17] : memref<2x32x128xbf16, #tpu.memory_space<vmem>>, vector<1x32x128xbf16>
    %33 = vector.shape_cast %32 : vector<1x32x128xbf16> to vector<32x128xbf16>
    %cst_18 = arith.constant dense<0.000000e+00> : vector<32x128xf32>
    %34 = tpu.matmul %31, %33, %cst_18 {dimension_numbers = #tpu.dot_dimension_numbers<[1], [0], [0], [1], [0, 0, 1, 1], [], []>} : vector<32x32xbf16>, vector<32x128xbf16>, vector<32x128xf32> -> vector<32x128xf32>
    %c0_19 = arith.constant 0 : index
    %c0_20 = arith.constant 0 : index
    %c0_21 = arith.constant 0 : index
    %35 = vector.load %arg7[%c0_19, %c0_20, %c0_21] : memref<2x1x128xf32, #tpu.memory_space<vmem>>, vector<1x1x128xf32>
    %36 = vector.shape_cast %35 : vector<1x1x128xf32> to vector<1x128xf32>
    %37 = vector.broadcast %36 : vector<1x128xf32> to vector<32x128xf32>
    %38 = arith.addf %34, %37 : vector<32x128xf32>
    %39 = vector.extract_strided_slice %38 {offsets = [0, 0], sizes = [32, 16], strides = [1, 1]} : vector<32x128xf32> to vector<32x16xf32>
    %40 = vector.shape_cast %39 : vector<32x16xf32> to vector<2x16x16xf32>
    %41 = vector.extract_strided_slice %38 {offsets = [0, 32], sizes = [32, 16], strides = [1, 1]} : vector<32x128xf32> to vector<32x16xf32>
    %42 = vector.shape_cast %41 : vector<32x16xf32> to vector<2x16x16xf32>
    %43 = vector.extract_strided_slice %38 {offsets = [0, 64], sizes = [32, 16], strides = [1, 1]} : vector<32x128xf32> to vector<32x16xf32>
    %44 = vector.shape_cast %43 : vector<32x16xf32> to vector<2x16x16xf32>
    %45 = arith.truncf %40 : vector<2x16x16xf32> to vector<2x16x16xbf16>
    %46 = arith.truncf %42 : vector<2x16x16xf32> to vector<2x16x16xbf16>
    "tpu.trace_start"() <{level = 10 : i32, message = "btd,bsd->bts"}> : () -> ()
    %cst_22 = arith.constant dense<0.000000e+00> : vector<2x16x16xf32>
    %47 = tpu.matmul %45, %46, %cst_22 {dimension_numbers = #tpu.dot_dimension_numbers<[2], [2], [1], [1], [0, 0, 0, 1, 1, 1], [0], [0]>} : vector<2x16x16xbf16>, vector<2x16x16xbf16>, vector<2x16x16xf32> -> vector<2x16x16xf32>
    "tpu.trace_stop"() : () -> ()
    %cst_23 = arith.constant 2.500000e-01 : f32
    %48 = vector.broadcast %cst_23 : f32 to vector<2x16x16xf32>
    %49 = arith.mulf %47, %48 : vector<2x16x16xf32>
    %50 = vector.broadcast %6 : vector<2x1x16xf32> to vector<2x16x16xf32>
    %51 = arith.addf %49, %50 : vector<2x16x16xf32>
    %cst_24 = arith.constant dense<0xFF800000> : vector<2x16xf32>
    %52 = vector.multi_reduction <maximumf>, %51, %cst_24 [2] : vector<2x16x16xf32> to vector<2x16xf32>
    %53 = vector.shape_cast %52 : vector<2x16xf32> to vector<2x16x1xf32>
    %54 = vector.broadcast %53 : vector<2x16x1xf32> to vector<2x16x16xf32>
    %55 = arith.subf %51, %54 : vector<2x16x16xf32>
    %56 = math.exp %55 : vector<2x16x16xf32>
    %cst_25 = arith.constant dense<0.000000e+00> : vector<2x16xf32>
    %57 = vector.multi_reduction <add>, %56, %cst_25 [2] : vector<2x16x16xf32> to vector<2x16xf32>
    %58 = vector.shape_cast %57 : vector<2x16xf32> to vector<2x16x1xf32>
    %59 = vector.broadcast %58 : vector<2x16x1xf32> to vector<2x16x16xf32>
    %60 = arith.divf %56, %59 : vector<2x16x16xf32>
    %61 = arith.truncf %60 : vector<2x16x16xf32> to vector<2x16x16xbf16>
    %62 = arith.truncf %44 : vector<2x16x16xf32> to vector<2x16x16xbf16>
    "tpu.trace_start"() <{level = 10 : i32, message = "bts,bsd->btd"}> : () -> ()
    %cst_26 = arith.constant dense<0.000000e+00> : vector<2x16x16xf32>
    %63 = tpu.matmul %61, %62, %cst_26 {dimension_numbers = #tpu.dot_dimension_numbers<[2], [1], [1], [2], [0, 0, 0, 1, 1, 2], [0], [0]>} : vector<2x16x16xbf16>, vector<2x16x16xbf16>, vector<2x16x16xf32> -> vector<2x16x16xf32>
    "tpu.trace_stop"() : () -> ()
    %64 = vector.shape_cast %63 : vector<2x16x16xf32> to vector<32x16xf32>
    %65 = vector.extract_strided_slice %38 {offsets = [0, 16], sizes = [32, 16], strides = [1, 1]} : vector<32x128xf32> to vector<32x16xf32>
    %66 = vector.shape_cast %65 : vector<32x16xf32> to vector<2x16x16xf32>
    %67 = vector.extract_strided_slice %38 {offsets = [0, 48], sizes = [32, 16], strides = [1, 1]} : vector<32x128xf32> to vector<32x16xf32>
    %68 = vector.shape_cast %67 : vector<32x16xf32> to vector<2x16x16xf32>
    %69 = vector.extract_strided_slice %38 {offsets = [0, 80], sizes = [32, 16], strides = [1, 1]} : vector<32x128xf32> to vector<32x16xf32>
    %70 = vector.shape_cast %69 : vector<32x16xf32> to vector<2x16x16xf32>
    %71 = arith.truncf %66 : vector<2x16x16xf32> to vector<2x16x16xbf16>
    %72 = arith.truncf %68 : vector<2x16x16xf32> to vector<2x16x16xbf16>
    "tpu.trace_start"() <{level = 10 : i32, message = "btd,bsd->bts"}> : () -> ()
    %cst_27 = arith.constant dense<0.000000e+00> : vector<2x16x16xf32>
    %73 = tpu.matmul %71, %72, %cst_27 {dimension_numbers = #tpu.dot_dimension_numbers<[2], [2], [1], [1], [0, 0, 0, 1, 1, 1], [0], [0]>} : vector<2x16x16xbf16>, vector<2x16x16xbf16>, vector<2x16x16xf32> -> vector<2x16x16xf32>
    "tpu.trace_stop"() : () -> ()
    %cst_28 = arith.constant 2.500000e-01 : f32
    %74 = vector.broadcast %cst_28 : f32 to vector<2x16x16xf32>
    %75 = arith.mulf %73, %74 : vector<2x16x16xf32>
    %76 = vector.broadcast %6 : vector<2x1x16xf32> to vector<2x16x16xf32>
    %77 = arith.addf %75, %76 : vector<2x16x16xf32>
    %cst_29 = arith.constant dense<0xFF800000> : vector<2x16xf32>
    %78 = vector.multi_reduction <maximumf>, %77, %cst_29 [2] : vector<2x16x16xf32> to vector<2x16xf32>
    %79 = vector.shape_cast %78 : vector<2x16xf32> to vector<2x16x1xf32>
    %80 = vector.broadcast %79 : vector<2x16x1xf32> to vector<2x16x16xf32>
    %81 = arith.subf %77, %80 : vector<2x16x16xf32>
    %82 = math.exp %81 : vector<2x16x16xf32>
    %cst_30 = arith.constant dense<0.000000e+00> : vector<2x16xf32>
    %83 = vector.multi_reduction <add>, %82, %cst_30 [2] : vector<2x16x16xf32> to vector<2x16xf32>
    %84 = vector.shape_cast %83 : vector<2x16xf32> to vector<2x16x1xf32>
    %85 = vector.broadcast %84 : vector<2x16x1xf32> to vector<2x16x16xf32>
    %86 = arith.divf %82, %85 : vector<2x16x16xf32>
    %87 = arith.truncf %86 : vector<2x16x16xf32> to vector<2x16x16xbf16>
    %88 = arith.truncf %70 : vector<2x16x16xf32> to vector<2x16x16xbf16>
    "tpu.trace_start"() <{level = 10 : i32, message = "bts,bsd->btd"}> : () -> ()
    %cst_31 = arith.constant dense<0.000000e+00> : vector<2x16x16xf32>
    %89 = tpu.matmul %87, %88, %cst_31 {dimension_numbers = #tpu.dot_dimension_numbers<[2], [1], [1], [2], [0, 0, 0, 1, 1, 2], [0], [0]>} : vector<2x16x16xbf16>, vector<2x16x16xbf16>, vector<2x16x16xf32> -> vector<2x16x16xf32>
    "tpu.trace_stop"() : () -> ()
    %90 = vector.shape_cast %89 : vector<2x16x16xf32> to vector<32x16xf32>
    %91 = tpu.concatenate %64, %90 in 1 : vector<32x16xf32>, vector<32x16xf32> -> vector<32x32xf32>
    %92 = arith.truncf %91 : vector<32x32xf32> to vector<32x32xbf16>
    %c0_32 = arith.constant 0 : index
    %c0_33 = arith.constant 0 : index
    %c0_34 = arith.constant 0 : index
    %93 = vector.load %arg8[%c0_32, %c0_33, %c0_34] : memref<2x32x32xbf16, #tpu.memory_space<vmem>>, vector<1x32x32xbf16>
    %94 = vector.shape_cast %93 : vector<1x32x32xbf16> to vector<32x32xbf16>
    %cst_35 = arith.constant dense<0.000000e+00> : vector<32x32xf32>
    %95 = tpu.matmul %92, %94, %cst_35 {dimension_numbers = #tpu.dot_dimension_numbers<[1], [0], [0], [1], [0, 0, 1, 1], [], []>} : vector<32x32xbf16>, vector<32x32xbf16>, vector<32x32xf32> -> vector<32x32xf32>
    %c0_36 = arith.constant 0 : index
    %c0_37 = arith.constant 0 : index
    %c0_38 = arith.constant 0 : index
    %96 = vector.load %arg9[%c0_36, %c0_37, %c0_38] : memref<2x1x32xf32, #tpu.memory_space<vmem>>, vector<1x1x32xf32>
    %97 = vector.shape_cast %96 : vector<1x1x32xf32> to vector<1x32xf32>
    %98 = vector.broadcast %97 : vector<1x32xf32> to vector<32x32xf32>
    %99 = arith.addf %95, %98 : vector<32x32xf32>
    %100 = arith.addf %99, %30 : vector<32x32xf32>
    %c0_39 = arith.constant 0 : index
    %c0_40 = arith.constant 0 : index
    %c0_41 = arith.constant 0 : index
    %101 = vector.load %arg10[%c0_39, %c0_40, %c0_41] : memref<2x1x32xf32, #tpu.memory_space<vmem>>, vector<1x1x32xf32>
    %102 = vector.shape_cast %101 : vector<1x1x32xf32> to vector<1x32xf32>
    %c0_42 = arith.constant 0 : index
    %c0_43 = arith.constant 0 : index
    %c0_44 = arith.constant 0 : index
    %103 = vector.load %arg11[%c0_42, %c0_43, %c0_44] : memref<2x1x32xf32, #tpu.memory_space<vmem>>, vector<1x1x32xf32>
    %104 = vector.shape_cast %103 : vector<1x1x32xf32> to vector<1x32xf32>
    %cst_45 = arith.constant dense<0.000000e+00> : vector<32xf32>
    %105 = vector.multi_reduction <add>, %100, %cst_45 [1] : vector<32x32xf32> to vector<32xf32>
    %106 = vector.shape_cast %105 : vector<32xf32> to vector<32x1xf32>
    %cst_46 = arith.constant 3.125000e-02 : f32
    %107 = vector.broadcast %cst_46 : f32 to vector<32x1xf32>
    %108 = arith.mulf %106, %107 : vector<32x1xf32>
    %109 = vector.broadcast %108 : vector<32x1xf32> to vector<32x32xf32>
    %110 = arith.subf %100, %109 : vector<32x32xf32>
    %111 = arith.mulf %110, %110 : vector<32x32xf32>
    %cst_47 = arith.constant dense<0.000000e+00> : vector<32xf32>
    %112 = vector.multi_reduction <add>, %111, %cst_47 [1] : vector<32x32xf32> to vector<32xf32>
    %113 = vector.shape_cast %112 : vector<32xf32> to vector<32x1xf32>
    %cst_48 = arith.constant 3.125000e-02 : f32
    %114 = vector.broadcast %cst_48 : f32 to vector<32x1xf32>
    %115 = arith.mulf %113, %114 : vector<32x1xf32>
    %cst_49 = arith.constant 9.99999996E-13 : f32
    %116 = vector.broadcast %cst_49 : f32 to vector<32x1xf32>
    %117 = arith.addf %115, %116 : vector<32x1xf32>
    %118 = math.rsqrt %117 : vector<32x1xf32>
    %119 = vector.broadcast %118 : vector<32x1xf32> to vector<32x32xf32>
    %120 = arith.mulf %110, %119 : vector<32x32xf32>
    %121 = vector.broadcast %102 : vector<1x32xf32> to vector<32x32xf32>
    %122 = arith.mulf %120, %121 : vector<32x32xf32>
    %123 = vector.broadcast %104 : vector<1x32xf32> to vector<32x32xf32>
    %124 = arith.addf %122, %123 : vector<32x32xf32>
    %125 = arith.truncf %124 : vector<32x32xf32> to vector<32x32xbf16>
    %c0_50 = arith.constant 0 : index
    %c0_51 = arith.constant 0 : index
    %c0_52 = arith.constant 0 : index
    %126 = vector.load %arg12[%c0_50, %c0_51, %c0_52] : memref<2x32x128xbf16, #tpu.memory_space<vmem>>, vector<1x32x128xbf16>
    %127 = vector.shape_cast %126 : vector<1x32x128xbf16> to vector<32x128xbf16>
    %cst_53 = arith.constant dense<0.000000e+00> : vector<32x128xf32>
    %128 = tpu.matmul %125, %127, %cst_53 {dimension_numbers = #tpu.dot_dimension_numbers<[1], [0], [0], [1], [0, 0, 1, 1], [], []>} : vector<32x32xbf16>, vector<32x128xbf16>, vector<32x128xf32> -> vector<32x128xf32>
    %c0_54 = arith.constant 0 : index
    %c0_55 = arith.constant 0 : index
    %c0_56 = arith.constant 0 : index
    %129 = vector.load %arg13[%c0_54, %c0_55, %c0_56] : memref<2x1x128xf32, #tpu.memory_space<vmem>>, vector<1x1x128xf32>
    %130 = vector.shape_cast %129 : vector<1x1x128xf32> to vector<1x128xf32>
    %131 = vector.broadcast %130 : vector<1x128xf32> to vector<32x128xf32>
    %132 = arith.addf %128, %131 : vector<32x128xf32>
    %cst_57 = arith.constant 5.000000e-01 : f32
    %133 = vector.broadcast %cst_57 : f32 to vector<32x128xf32>
    %134 = arith.mulf %133, %132 : vector<32x128xf32>
    %cst_58 = arith.constant 4.471500e-02 : f32
    %135 = vector.broadcast %cst_58 : f32 to vector<32x128xf32>
    %136 = arith.mulf %135, %132 : vector<32x128xf32>
    %137 = arith.mulf %136, %132 : vector<32x128xf32>
    %138 = arith.mulf %137, %132 : vector<32x128xf32>
    %139 = arith.addf %132, %138 : vector<32x128xf32>
    %cst_59 = arith.constant 0.797884583 : f32
    %140 = vector.broadcast %cst_59 : f32 to vector<32x128xf32>
    %141 = arith.mulf %140, %139 : vector<32x128xf32>
    %142 = math.tanh %141 : vector<32x128xf32>
    %cst_60 = arith.constant 1.000000e+00 : f32
    %143 = vector.broadcast %cst_60 : f32 to vector<32x128xf32>
    %144 = arith.addf %143, %142 : vector<32x128xf32>
    %145 = arith.mulf %134, %144 : vector<32x128xf32>
    %146 = arith.truncf %145 : vector<32x128xf32> to vector<32x128xbf16>
    %c0_61 = arith.constant 0 : index
    %c0_62 = arith.constant 0 : index
    %c0_63 = arith.constant 0 : index
    %147 = vector.load %arg14[%c0_61, %c0_62, %c0_63] : memref<2x128x32xbf16, #tpu.memory_space<vmem>>, vector<1x128x32xbf16>
    %148 = vector.shape_cast %147 : vector<1x128x32xbf16> to vector<128x32xbf16>
    %cst_64 = arith.constant dense<0.000000e+00> : vector<32x32xf32>
    %149 = tpu.matmul %146, %148, %cst_64 {dimension_numbers = #tpu.dot_dimension_numbers<[1], [0], [0], [1], [0, 0, 1, 1], [], []>} : vector<32x128xbf16>, vector<128x32xbf16>, vector<32x32xf32> -> vector<32x32xf32>
    %c0_65 = arith.constant 0 : index
    %c0_66 = arith.constant 0 : index
    %c0_67 = arith.constant 0 : index
    %150 = vector.load %arg15[%c0_65, %c0_66, %c0_67] : memref<2x1x32xf32, #tpu.memory_space<vmem>>, vector<1x1x32xf32>
    %151 = vector.shape_cast %150 : vector<1x1x32xf32> to vector<1x32xf32>
    %152 = vector.broadcast %151 : vector<1x32xf32> to vector<32x32xf32>
    %153 = arith.addf %149, %152 : vector<32x32xf32>
    %154 = arith.addf %153, %124 : vector<32x32xf32>
    %c0_68 = arith.constant 0 : index
    %c0_69 = arith.constant 0 : index
    %c0_70 = arith.constant 0 : index
    %155 = vector.load %arg16[%c0_68, %c0_69, %c0_70] : memref<2x1x32xf32, #tpu.memory_space<vmem>>, vector<1x1x32xf32>
    %156 = vector.shape_cast %155 : vector<1x1x32xf32> to vector<1x32xf32>
    %c0_71 = arith.constant 0 : index
    %c0_72 = arith.constant 0 : index
    %c0_73 = arith.constant 0 : index
    %157 = vector.load %arg17[%c0_71, %c0_72, %c0_73] : memref<2x1x32xf32, #tpu.memory_space<vmem>>, vector<1x1x32xf32>
    %158 = vector.shape_cast %157 : vector<1x1x32xf32> to vector<1x32xf32>
    %cst_74 = arith.constant dense<0.000000e+00> : vector<32xf32>
    %159 = vector.multi_reduction <add>, %154, %cst_74 [1] : vector<32x32xf32> to vector<32xf32>
    %160 = vector.shape_cast %159 : vector<32xf32> to vector<32x1xf32>
    %cst_75 = arith.constant 3.125000e-02 : f32
    %161 = vector.broadcast %cst_75 : f32 to vector<32x1xf32>
    %162 = arith.mulf %160, %161 : vector<32x1xf32>
    %163 = vector.broadcast %162 : vector<32x1xf32> to vector<32x32xf32>
    %164 = arith.subf %154, %163 : vector<32x32xf32>
    %165 = arith.mulf %164, %164 : vector<32x32xf32>
    %cst_76 = arith.constant dense<0.000000e+00> : vector<32xf32>
    %166 = vector.multi_reduction <add>, %165, %cst_76 [1] : vector<32x32xf32> to vector<32xf32>
    %167 = vector.shape_cast %166 : vector<32xf32> to vector<32x1xf32>
    %cst_77 = arith.constant 3.125000e-02 : f32
    %168 = vector.broadcast %cst_77 : f32 to vector<32x1xf32>
    %169 = arith.mulf %167, %168 : vector<32x1xf32>
    %cst_78 = arith.constant 9.99999996E-13 : f32
    %170 = vector.broadcast %cst_78 : f32 to vector<32x1xf32>
    %171 = arith.addf %169, %170 : vector<32x1xf32>
    %172 = math.rsqrt %171 : vector<32x1xf32>
    %173 = vector.broadcast %172 : vector<32x1xf32> to vector<32x32xf32>
    %174 = arith.mulf %164, %173 : vector<32x32xf32>
    %175 = vector.broadcast %156 : vector<1x32xf32> to vector<32x32xf32>
    %176 = arith.mulf %174, %175 : vector<32x32xf32>
    %177 = vector.broadcast %158 : vector<1x32xf32> to vector<32x32xf32>
    %178 = arith.addf %176, %177 : vector<32x32xf32>
    %179 = arith.truncf %178 : vector<32x32xf32> to vector<32x32xbf16>
    %c1 = arith.constant 1 : index
    %c0_79 = arith.constant 0 : index
    %c0_80 = arith.constant 0 : index
    %180 = vector.load %arg6[%c1, %c0_79, %c0_80] : memref<2x32x128xbf16, #tpu.memory_space<vmem>>, vector<1x32x128xbf16>
    %181 = vector.shape_cast %180 : vector<1x32x128xbf16> to vector<32x128xbf16>
    %cst_81 = arith.constant dense<0.000000e+00> : vector<32x128xf32>
    %182 = tpu.matmul %179, %181, %cst_81 {dimension_numbers = #tpu.dot_dimension_numbers<[1], [0], [0], [1], [0, 0, 1, 1], [], []>} : vector<32x32xbf16>, vector<32x128xbf16>, vector<32x128xf32> -> vector<32x128xf32>
    %c1_82 = arith.constant 1 : index
    %c0_83 = arith.constant 0 : index
    %c0_84 = arith.constant 0 : index
    %183 = vector.load %arg7[%c1_82, %c0_83, %c0_84] : memref<2x1x128xf32, #tpu.memory_space<vmem>>, vector<1x1x128xf32>
    %184 = vector.shape_cast %183 : vector<1x1x128xf32> to vector<1x128xf32>
    %185 = vector.broadcast %184 : vector<1x128xf32> to vector<32x128xf32>
    %186 = arith.addf %182, %185 : vector<32x128xf32>
    %187 = vector.extract_strided_slice %186 {offsets = [0, 0], sizes = [32, 16], strides = [1, 1]} : vector<32x128xf32> to vector<32x16xf32>
    %188 = vector.shape_cast %187 : vector<32x16xf32> to vector<2x16x16xf32>
    %189 = vector.extract_strided_slice %186 {offsets = [0, 32], sizes = [32, 16], strides = [1, 1]} : vector<32x128xf32> to vector<32x16xf32>
    %190 = vector.shape_cast %189 : vector<32x16xf32> to vector<2x16x16xf32>
    %191 = vector.extract_strided_slice %186 {offsets = [0, 64], sizes = [32, 16], strides = [1, 1]} : vector<32x128xf32> to vector<32x16xf32>
    %192 = vector.shape_cast %191 : vector<32x16xf32> to vector<2x16x16xf32>
    %193 = arith.truncf %188 : vector<2x16x16xf32> to vector<2x16x16xbf16>
    %194 = arith.truncf %190 : vector<2x16x16xf32> to vector<2x16x16xbf16>
    "tpu.trace_start"() <{level = 10 : i32, message = "btd,bsd->bts"}> : () -> ()
    %cst_85 = arith.constant dense<0.000000e+00> : vector<2x16x16xf32>
    %195 = tpu.matmul %193, %194, %cst_85 {dimension_numbers = #tpu.dot_dimension_numbers<[2], [2], [1], [1], [0, 0, 0, 1, 1, 1], [0], [0]>} : vector<2x16x16xbf16>, vector<2x16x16xbf16>, vector<2x16x16xf32> -> vector<2x16x16xf32>
    "tpu.trace_stop"() : () -> ()
    %cst_86 = arith.constant 2.500000e-01 : f32
    %196 = vector.broadcast %cst_86 : f32 to vector<2x16x16xf32>
    %197 = arith.mulf %195, %196 : vector<2x16x16xf32>
    %198 = vector.broadcast %6 : vector<2x1x16xf32> to vector<2x16x16xf32>
    %199 = arith.addf %197, %198 : vector<2x16x16xf32>
    %cst_87 = arith.constant dense<0xFF800000> : vector<2x16xf32>
    %200 = vector.multi_reduction <maximumf>, %199, %cst_87 [2] : vector<2x16x16xf32> to vector<2x16xf32>
    %201 = vector.shape_cast %200 : vector<2x16xf32> to vector<2x16x1xf32>
    %202 = vector.broadcast %201 : vector<2x16x1xf32> to vector<2x16x16xf32>
    %203 = arith.subf %199, %202 : vector<2x16x16xf32>
    %204 = math.exp %203 : vector<2x16x16xf32>
    %cst_88 = arith.constant dense<0.000000e+00> : vector<2x16xf32>
    %205 = vector.multi_reduction <add>, %204, %cst_88 [2] : vector<2x16x16xf32> to vector<2x16xf32>
    %206 = vector.shape_cast %205 : vector<2x16xf32> to vector<2x16x1xf32>
    %207 = vector.broadcast %206 : vector<2x16x1xf32> to vector<2x16x16xf32>
    %208 = arith.divf %204, %207 : vector<2x16x16xf32>
    %209 = arith.truncf %208 : vector<2x16x16xf32> to vector<2x16x16xbf16>
    %210 = arith.truncf %192 : vector<2x16x16xf32> to vector<2x16x16xbf16>
    "tpu.trace_start"() <{level = 10 : i32, message = "bts,bsd->btd"}> : () -> ()
    %cst_89 = arith.constant dense<0.000000e+00> : vector<2x16x16xf32>
    %211 = tpu.matmul %209, %210, %cst_89 {dimension_numbers = #tpu.dot_dimension_numbers<[2], [1], [1], [2], [0, 0, 0, 1, 1, 2], [0], [0]>} : vector<2x16x16xbf16>, vector<2x16x16xbf16>, vector<2x16x16xf32> -> vector<2x16x16xf32>
    "tpu.trace_stop"() : () -> ()
    %212 = vector.shape_cast %211 : vector<2x16x16xf32> to vector<32x16xf32>
    %213 = vector.extract_strided_slice %186 {offsets = [0, 16], sizes = [32, 16], strides = [1, 1]} : vector<32x128xf32> to vector<32x16xf32>
    %214 = vector.shape_cast %213 : vector<32x16xf32> to vector<2x16x16xf32>
    %215 = vector.extract_strided_slice %186 {offsets = [0, 48], sizes = [32, 16], strides = [1, 1]} : vector<32x128xf32> to vector<32x16xf32>
    %216 = vector.shape_cast %215 : vector<32x16xf32> to vector<2x16x16xf32>
    %217 = vector.extract_strided_slice %186 {offsets = [0, 80], sizes = [32, 16], strides = [1, 1]} : vector<32x128xf32> to vector<32x16xf32>
    %218 = vector.shape_cast %217 : vector<32x16xf32> to vector<2x16x16xf32>
    %219 = arith.truncf %214 : vector<2x16x16xf32> to vector<2x16x16xbf16>
    %220 = arith.truncf %216 : vector<2x16x16xf32> to vector<2x16x16xbf16>
    "tpu.trace_start"() <{level = 10 : i32, message = "btd,bsd->bts"}> : () -> ()
    %cst_90 = arith.constant dense<0.000000e+00> : vector<2x16x16xf32>
    %221 = tpu.matmul %219, %220, %cst_90 {dimension_numbers = #tpu.dot_dimension_numbers<[2], [2], [1], [1], [0, 0, 0, 1, 1, 1], [0], [0]>} : vector<2x16x16xbf16>, vector<2x16x16xbf16>, vector<2x16x16xf32> -> vector<2x16x16xf32>
    "tpu.trace_stop"() : () -> ()
    %cst_91 = arith.constant 2.500000e-01 : f32
    %222 = vector.broadcast %cst_91 : f32 to vector<2x16x16xf32>
    %223 = arith.mulf %221, %222 : vector<2x16x16xf32>
    %224 = vector.broadcast %6 : vector<2x1x16xf32> to vector<2x16x16xf32>
    %225 = arith.addf %223, %224 : vector<2x16x16xf32>
    %cst_92 = arith.constant dense<0xFF800000> : vector<2x16xf32>
    %226 = vector.multi_reduction <maximumf>, %225, %cst_92 [2] : vector<2x16x16xf32> to vector<2x16xf32>
    %227 = vector.shape_cast %226 : vector<2x16xf32> to vector<2x16x1xf32>
    %228 = vector.broadcast %227 : vector<2x16x1xf32> to vector<2x16x16xf32>
    %229 = arith.subf %225, %228 : vector<2x16x16xf32>
    %230 = math.exp %229 : vector<2x16x16xf32>
    %cst_93 = arith.constant dense<0.000000e+00> : vector<2x16xf32>
    %231 = vector.multi_reduction <add>, %230, %cst_93 [2] : vector<2x16x16xf32> to vector<2x16xf32>
    %232 = vector.shape_cast %231 : vector<2x16xf32> to vector<2x16x1xf32>
    %233 = vector.broadcast %232 : vector<2x16x1xf32> to vector<2x16x16xf32>
    %234 = arith.divf %230, %233 : vector<2x16x16xf32>
    %235 = arith.truncf %234 : vector<2x16x16xf32> to vector<2x16x16xbf16>
    %236 = arith.truncf %218 : vector<2x16x16xf32> to vector<2x16x16xbf16>
    "tpu.trace_start"() <{level = 10 : i32, message = "bts,bsd->btd"}> : () -> ()
    %cst_94 = arith.constant dense<0.000000e+00> : vector<2x16x16xf32>
    %237 = tpu.matmul %235, %236, %cst_94 {dimension_numbers = #tpu.dot_dimension_numbers<[2], [1], [1], [2], [0, 0, 0, 1, 1, 2], [0], [0]>} : vector<2x16x16xbf16>, vector<2x16x16xbf16>, vector<2x16x16xf32> -> vector<2x16x16xf32>
    "tpu.trace_stop"() : () -> ()
    %238 = vector.shape_cast %237 : vector<2x16x16xf32> to vector<32x16xf32>
    %239 = tpu.concatenate %212, %238 in 1 : vector<32x16xf32>, vector<32x16xf32> -> vector<32x32xf32>
    %240 = arith.truncf %239 : vector<32x32xf32> to vector<32x32xbf16>
    %c1_95 = arith.constant 1 : index
    %c0_96 = arith.constant 0 : index
    %c0_97 = arith.constant 0 : index
    %241 = vector.load %arg8[%c1_95, %c0_96, %c0_97] : memref<2x32x32xbf16, #tpu.memory_space<vmem>>, vector<1x32x32xbf16>
    %242 = vector.shape_cast %241 : vector<1x32x32xbf16> to vector<32x32xbf16>
    %cst_98 = arith.constant dense<0.000000e+00> : vector<32x32xf32>
    %243 = tpu.matmul %240, %242, %cst_98 {dimension_numbers = #tpu.dot_dimension_numbers<[1], [0], [0], [1], [0, 0, 1, 1], [], []>} : vector<32x32xbf16>, vector<32x32xbf16>, vector<32x32xf32> -> vector<32x32xf32>
    %c1_99 = arith.constant 1 : index
    %c0_100 = arith.constant 0 : index
    %c0_101 = arith.constant 0 : index
    %244 = vector.load %arg9[%c1_99, %c0_100, %c0_101] : memref<2x1x32xf32, #tpu.memory_space<vmem>>, vector<1x1x32xf32>
    %245 = vector.shape_cast %244 : vector<1x1x32xf32> to vector<1x32xf32>
    %246 = vector.broadcast %245 : vector<1x32xf32> to vector<32x32xf32>
    %247 = arith.addf %243, %246 : vector<32x32xf32>
    %248 = arith.addf %247, %178 : vector<32x32xf32>
    %c1_102 = arith.constant 1 : index
    %c0_103 = arith.constant 0 : index
    %c0_104 = arith.constant 0 : index
    %249 = vector.load %arg10[%c1_102, %c0_103, %c0_104] : memref<2x1x32xf32, #tpu.memory_space<vmem>>, vector<1x1x32xf32>
    %250 = vector.shape_cast %249 : vector<1x1x32xf32> to vector<1x32xf32>
    %c1_105 = arith.constant 1 : index
    %c0_106 = arith.constant 0 : index
    %c0_107 = arith.constant 0 : index
    %251 = vector.load %arg11[%c1_105, %c0_106, %c0_107] : memref<2x1x32xf32, #tpu.memory_space<vmem>>, vector<1x1x32xf32>
    %252 = vector.shape_cast %251 : vector<1x1x32xf32> to vector<1x32xf32>
    %cst_108 = arith.constant dense<0.000000e+00> : vector<32xf32>
    %253 = vector.multi_reduction <add>, %248, %cst_108 [1] : vector<32x32xf32> to vector<32xf32>
    %254 = vector.shape_cast %253 : vector<32xf32> to vector<32x1xf32>
    %cst_109 = arith.constant 3.125000e-02 : f32
    %255 = vector.broadcast %cst_109 : f32 to vector<32x1xf32>
    %256 = arith.mulf %254, %255 : vector<32x1xf32>
    %257 = vector.broadcast %256 : vector<32x1xf32> to vector<32x32xf32>
    %258 = arith.subf %248, %257 : vector<32x32xf32>
    %259 = arith.mulf %258, %258 : vector<32x32xf32>
    %cst_110 = arith.constant dense<0.000000e+00> : vector<32xf32>
    %260 = vector.multi_reduction <add>, %259, %cst_110 [1] : vector<32x32xf32> to vector<32xf32>
    %261 = vector.shape_cast %260 : vector<32xf32> to vector<32x1xf32>
    %cst_111 = arith.constant 3.125000e-02 : f32
    %262 = vector.broadcast %cst_111 : f32 to vector<32x1xf32>
    %263 = arith.mulf %261, %262 : vector<32x1xf32>
    %cst_112 = arith.constant 9.99999996E-13 : f32
    %264 = vector.broadcast %cst_112 : f32 to vector<32x1xf32>
    %265 = arith.addf %263, %264 : vector<32x1xf32>
    %266 = math.rsqrt %265 : vector<32x1xf32>
    %267 = vector.broadcast %266 : vector<32x1xf32> to vector<32x32xf32>
    %268 = arith.mulf %258, %267 : vector<32x32xf32>
    %269 = vector.broadcast %250 : vector<1x32xf32> to vector<32x32xf32>
    %270 = arith.mulf %268, %269 : vector<32x32xf32>
    %271 = vector.broadcast %252 : vector<1x32xf32> to vector<32x32xf32>
    %272 = arith.addf %270, %271 : vector<32x32xf32>
    %273 = arith.truncf %272 : vector<32x32xf32> to vector<32x32xbf16>
    %c1_113 = arith.constant 1 : index
    %c0_114 = arith.constant 0 : index
    %c0_115 = arith.constant 0 : index
    %274 = vector.load %arg12[%c1_113, %c0_114, %c0_115] : memref<2x32x128xbf16, #tpu.memory_space<vmem>>, vector<1x32x128xbf16>
    %275 = vector.shape_cast %274 : vector<1x32x128xbf16> to vector<32x128xbf16>
    %cst_116 = arith.constant dense<0.000000e+00> : vector<32x128xf32>
    %276 = tpu.matmul %273, %275, %cst_116 {dimension_numbers = #tpu.dot_dimension_numbers<[1], [0], [0], [1], [0, 0, 1, 1], [], []>} : vector<32x32xbf16>, vector<32x128xbf16>, vector<32x128xf32> -> vector<32x128xf32>
    %c1_117 = arith.constant 1 : index
    %c0_118 = arith.constant 0 : index
    %c0_119 = arith.constant 0 : index
    %277 = vector.load %arg13[%c1_117, %c0_118, %c0_119] : memref<2x1x128xf32, #tpu.memory_space<vmem>>, vector<1x1x128xf32>
    %278 = vector.shape_cast %277 : vector<1x1x128xf32> to vector<1x128xf32>
    %279 = vector.broadcast %278 : vector<1x128xf32> to vector<32x128xf32>
    %280 = arith.addf %276, %279 : vector<32x128xf32>
    %cst_120 = arith.constant 5.000000e-01 : f32
    %281 = vector.broadcast %cst_120 : f32 to vector<32x128xf32>
    %282 = arith.mulf %281, %280 : vector<32x128xf32>
    %cst_121 = arith.constant 4.471500e-02 : f32
    %283 = vector.broadcast %cst_121 : f32 to vector<32x128xf32>
    %284 = arith.mulf %283, %280 : vector<32x128xf32>
    %285 = arith.mulf %284, %280 : vector<32x128xf32>
    %286 = arith.mulf %285, %280 : vector<32x128xf32>
    %287 = arith.addf %280, %286 : vector<32x128xf32>
    %cst_122 = arith.constant 0.797884583 : f32
    %288 = vector.broadcast %cst_122 : f32 to vector<32x128xf32>
    %289 = arith.mulf %288, %287 : vector<32x128xf32>
    %290 = math.tanh %289 : vector<32x128xf32>
    %cst_123 = arith.constant 1.000000e+00 : f32
    %291 = vector.broadcast %cst_123 : f32 to vector<32x128xf32>
    %292 = arith.addf %291, %290 : vector<32x128xf32>
    %293 = arith.mulf %282, %292 : vector<32x128xf32>
    %294 = arith.truncf %293 : vector<32x128xf32> to vector<32x128xbf16>
    %c1_124 = arith.constant 1 : index
    %c0_125 = arith.constant 0 : index
    %c0_126 = arith.constant 0 : index
    %295 = vector.load %arg14[%c1_124, %c0_125, %c0_126] : memref<2x128x32xbf16, #tpu.memory_space<vmem>>, vector<1x128x32xbf16>
    %296 = vector.shape_cast %295 : vector<1x128x32xbf16> to vector<128x32xbf16>
    %cst_127 = arith.constant dense<0.000000e+00> : vector<32x32xf32>
    %297 = tpu.matmul %294, %296, %cst_127 {dimension_numbers = #tpu.dot_dimension_numbers<[1], [0], [0], [1], [0, 0, 1, 1], [], []>} : vector<32x128xbf16>, vector<128x32xbf16>, vector<32x32xf32> -> vector<32x32xf32>
    %c1_128 = arith.constant 1 : index
    %c0_129 = arith.constant 0 : index
    %c0_130 = arith.constant 0 : index
    %298 = vector.load %arg15[%c1_128, %c0_129, %c0_130] : memref<2x1x32xf32, #tpu.memory_space<vmem>>, vector<1x1x32xf32>
    %299 = vector.shape_cast %298 : vector<1x1x32xf32> to vector<1x32xf32>
    %300 = vector.broadcast %299 : vector<1x32xf32> to vector<32x32xf32>
    %301 = arith.addf %297, %300 : vector<32x32xf32>
    %302 = arith.addf %301, %272 : vector<32x32xf32>
    %c1_131 = arith.constant 1 : index
    %c0_132 = arith.constant 0 : index
    %c0_133 = arith.constant 0 : index
    %303 = vector.load %arg16[%c1_131, %c0_132, %c0_133] : memref<2x1x32xf32, #tpu.memory_space<vmem>>, vector<1x1x32xf32>
    %304 = vector.shape_cast %303 : vector<1x1x32xf32> to vector<1x32xf32>
    %c1_134 = arith.constant 1 : index
    %c0_135 = arith.constant 0 : index
    %c0_136 = arith.constant 0 : index
    %305 = vector.load %arg17[%c1_134, %c0_135, %c0_136] : memref<2x1x32xf32, #tpu.memory_space<vmem>>, vector<1x1x32xf32>
    %306 = vector.shape_cast %305 : vector<1x1x32xf32> to vector<1x32xf32>
    %cst_137 = arith.constant dense<0.000000e+00> : vector<32xf32>
    %307 = vector.multi_reduction <add>, %302, %cst_137 [1] : vector<32x32xf32> to vector<32xf32>
    %308 = vector.shape_cast %307 : vector<32xf32> to vector<32x1xf32>
    %cst_138 = arith.constant 3.125000e-02 : f32
    %309 = vector.broadcast %cst_138 : f32 to vector<32x1xf32>
    %310 = arith.mulf %308, %309 : vector<32x1xf32>
    %311 = vector.broadcast %310 : vector<32x1xf32> to vector<32x32xf32>
    %312 = arith.subf %302, %311 : vector<32x32xf32>
    %313 = arith.mulf %312, %312 : vector<32x32xf32>
    %cst_139 = arith.constant dense<0.000000e+00> : vector<32xf32>
    %314 = vector.multi_reduction <add>, %313, %cst_139 [1] : vector<32x32xf32> to vector<32xf32>
    %315 = vector.shape_cast %314 : vector<32xf32> to vector<32x1xf32>
    %cst_140 = arith.constant 3.125000e-02 : f32
    %316 = vector.broadcast %cst_140 : f32 to vector<32x1xf32>
    %317 = arith.mulf %315, %316 : vector<32x1xf32>
    %cst_141 = arith.constant 9.99999996E-13 : f32
    %318 = vector.broadcast %cst_141 : f32 to vector<32x1xf32>
    %319 = arith.addf %317, %318 : vector<32x1xf32>
    %320 = math.rsqrt %319 : vector<32x1xf32>
    %321 = vector.broadcast %320 : vector<32x1xf32> to vector<32x32xf32>
    %322 = arith.mulf %312, %321 : vector<32x32xf32>
    %323 = vector.broadcast %304 : vector<1x32xf32> to vector<32x32xf32>
    %324 = arith.mulf %322, %323 : vector<32x32xf32>
    %325 = vector.broadcast %306 : vector<1x32xf32> to vector<32x32xf32>
    %326 = arith.addf %324, %325 : vector<32x32xf32>
    %c0_142 = arith.constant 0 : index
    %c0_143 = arith.constant 0 : index
    %c0_144 = arith.constant 0 : index
    %327 = vector.load %arg1[%c0_142, %c0_143, %c0_144] : memref<2x16x32xf32, #tpu.memory_space<vmem>>, vector<2x16x32xf32>
    %328 = vector.shape_cast %327 : vector<2x16x32xf32> to vector<32x32xf32>
    %329 = arith.truncf %328 : vector<32x32xf32> to vector<32x32xbf16>
    %c0_145 = arith.constant 0 : index
    %c0_146 = arith.constant 0 : index
    %330 = vector.load %arg18[%c0_145, %c0_146] : memref<64x32xbf16, #tpu.memory_space<vmem>>, vector<32x32xbf16>
    %cst_147 = arith.constant dense<0.000000e+00> : vector<32x32xf32>
    %331 = tpu.matmul %329, %330, %cst_147 {dimension_numbers = #tpu.dot_dimension_numbers<[1], [0], [0], [1], [0, 0, 1, 1], [], []>} : vector<32x32xbf16>, vector<32x32xbf16>, vector<32x32xf32> -> vector<32x32xf32>
    %332 = arith.truncf %326 : vector<32x32xf32> to vector<32x32xbf16>
    %c32 = arith.constant 32 : index
    %c0_148 = arith.constant 0 : index
    %333 = vector.load %arg18[%c32, %c0_148] : memref<64x32xbf16, #tpu.memory_space<vmem>>, vector<32x32xbf16>
    %cst_149 = arith.constant dense<0.000000e+00> : vector<32x32xf32>
    %334 = tpu.matmul %332, %333, %cst_149 {dimension_numbers = #tpu.dot_dimension_numbers<[1], [0], [0], [1], [0, 0, 1, 1], [], []>} : vector<32x32xbf16>, vector<32x32xbf16>, vector<32x32xf32> -> vector<32x32xf32>
    %335 = arith.addf %331, %334 : vector<32x32xf32>
    %c0_150 = arith.constant 0 : index
    %c0_151 = arith.constant 0 : index
    %336 = vector.load %arg19[%c0_150, %c0_151] : memref<1x32xf32, #tpu.memory_space<vmem>>, vector<1x32xf32>
    %337 = vector.broadcast %336 : vector<1x32xf32> to vector<32x32xf32>
    %338 = arith.addf %335, %337 : vector<32x32xf32>
    %339 = arith.negf %338 : vector<32x32xf32>
    %340 = math.exp %339 : vector<32x32xf32>
    %cst_152 = arith.constant 1.000000e+00 : f32
    %341 = vector.broadcast %cst_152 : f32 to vector<32x32xf32>
    %342 = arith.addf %341, %340 : vector<32x32xf32>
    %343 = arith.divf %341, %342 : vector<32x32xf32>
    %344 = arith.mulf %343, %328 : vector<32x32xf32>
    %cst_153 = arith.constant 1.000000e+00 : f32
    %345 = vector.broadcast %cst_153 : f32 to vector<32x32xf32>
    %346 = arith.subf %345, %343 : vector<32x32xf32>
    %347 = arith.mulf %346, %326 : vector<32x32xf32>
    %348 = arith.addf %344, %347 : vector<32x32xf32>
    %349 = vector.shape_cast %348 : vector<32x32xf32> to vector<2x16x32xf32>
    %c0_154 = arith.constant 0 : index
    %c0_155 = arith.constant 0 : index
    %c0_156 = arith.constant 0 : index
    %350 = vector.load %arg22[%c0_154, %c0_155, %c0_156] : memref<2x16x32xf32, #tpu.memory_space<vmem>>, vector<2x16x32xf32>
    tpu.vector_store %arg22[%c0_154, %c0_155, %c0_156], %349 {strides = array<i32>} : memref<2x16x32xf32, #tpu.memory_space<vmem>>, vector<2x16x32xf32>,
    %c0_157 = arith.constant 0 : index
    %c0_158 = arith.constant 0 : index
    %351 = vector.load %arg20[%c0_157, %c0_158] : memref<2x32xf32, #tpu.memory_space<vmem>>, vector<1x32xf32>
    %352 = vector.shape_cast %351 : vector<1x32xf32> to vector<1x1x32xf32>
    %c1_159 = arith.constant 1 : index
    %c0_160 = arith.constant 0 : index
    %353 = vector.load %arg20[%c1_159, %c0_160] : memref<2x32xf32, #tpu.memory_space<vmem>>, vector<1x32xf32>
    %354 = vector.shape_cast %353 : vector<1x32xf32> to vector<1x1x32xf32>
    %355 = vector.broadcast %354 : vector<1x1x32xf32> to vector<2x16x32xf32>
    %356 = arith.mulf %349, %355 : vector<2x16x32xf32>
    %cst_161 = arith.constant dense<0.000000e+00> : vector<2x16xf32>
    %357 = vector.multi_reduction <add>, %356, %cst_161 [2] : vector<2x16x32xf32> to vector<2x16xf32>
    %358 = vector.shape_cast %357 : vector<2x16xf32> to vector<2x16x1xf32>
    %359 = vector.extract_strided_slice %349 {offsets = [0, 0, 0], sizes = [2, 1, 32], strides = [1, 1, 1]} : vector<2x16x32xf32> to vector<2x1x32xf32>
    %360 = vector.broadcast %352 : vector<1x1x32xf32> to vector<2x1x32xf32>
    %361 = arith.mulf %359, %360 : vector<2x1x32xf32>
    %cst_162 = arith.constant dense<0.000000e+00> : vector<2x1xf32>
    %362 = vector.multi_reduction <add>, %361, %cst_162 [2] : vector<2x1x32xf32> to vector<2x1xf32>
    %363 = vector.shape_cast %362 : vector<2x1xf32> to vector<2x1x1xf32>
    %364 = vector.broadcast %363 : vector<2x1x1xf32> to vector<2x16x1xf32>
    %365 = arith.addf %358, %364 : vector<2x16x1xf32>
    %c0_163 = arith.constant 0 : index
    %c0_164 = arith.constant 0 : index
    %366 = vector.load %arg21[%c0_163, %c0_164] : memref<1x1xf32, #tpu.memory_space<vmem>>, vector<1x1xf32>
    %367 = vector.shape_cast %366 : vector<1x1xf32> to vector<1x1x1xf32>
    %368 = vector.broadcast %367 : vector<1x1x1xf32> to vector<2x16x1xf32>
    %369 = arith.addf %365, %368 : vector<2x16x1xf32>
    %c0_165 = arith.constant 0 : index
    %c0_166 = arith.constant 0 : index
    %c0_167 = arith.constant 0 : index
    %370 = vector.load %arg23[%c0_165, %c0_166, %c0_167] : memref<2x16x1xf32, #tpu.memory_space<vmem>>, vector<2x16x1xf32>
    tpu.vector_store %arg23[%c0_165, %c0_166, %c0_167], %369 {strides = array<i32>} : memref<2x16x1xf32, #tpu.memory_space<vmem>>, vector<2x16x1xf32>,
    return
  }
  func.func @transform_0(%arg0: i32) -> (i32, i32, i32) {
    %c0_i32 = arith.constant 0 : i32
    %c0_i32_0 = arith.constant 0 : i32
    %c0_i32_1 = arith.constant 0 : i32
    return %arg0, %c0_i32, %c0_i32_0 : i32, i32, i32
  }
  func.func @transform_1(%arg0: i32) -> (i32, i32, i32) {
    %c0_i32 = arith.constant 0 : i32
    %c0_i32_0 = arith.constant 0 : i32
    %c0_i32_1 = arith.constant 0 : i32
    return %arg0, %c0_i32, %c0_i32_0 : i32, i32, i32
  }
  func.func @transform_2(%arg0: i32) -> (i32, i32, i32) {
    %c0_i32 = arith.constant 0 : i32
    %c0_i32_0 = arith.constant 0 : i32
    %c0_i32_1 = arith.constant 0 : i32
    return %arg0, %c0_i32, %c0_i32_0 : i32, i32, i32
  }
  func.func @transform_3(%arg0: i32) -> (i32, i32) {
    %c0_i32 = arith.constant 0 : i32
    %c0_i32_0 = arith.constant 0 : i32
    %c0_i32_1 = arith.constant 0 : i32
    return %c0_i32, %c0_i32_0 : i32, i32
  }
  func.func @transform_4(%arg0: i32) -> (i32, i32) {
    %c0_i32 = arith.constant 0 : i32
    %c0_i32_0 = arith.constant 0 : i32
    %c0_i32_1 = arith.constant 0 : i32
    return %c0_i32, %c0_i32_0 : i32, i32
  }
  func.func @transform_5(%arg0: i32) -> (i32, i32, i32) {
    %c0_i32 = arith.constant 0 : i32
    %c0_i32_0 = arith.constant 0 : i32
    %c0_i32_1 = arith.constant 0 : i32
    %c0_i32_2 = arith.constant 0 : i32
    return %c0_i32, %c0_i32_0, %c0_i32_1 : i32, i32, i32
  }
  func.func @transform_6(%arg0: i32) -> (i32, i32, i32) {
    %c0_i32 = arith.constant 0 : i32
    %c0_i32_0 = arith.constant 0 : i32
    %c0_i32_1 = arith.constant 0 : i32
    %c0_i32_2 = arith.constant 0 : i32
    return %c0_i32, %c0_i32_0, %c0_i32_1 : i32, i32, i32
  }
  func.func @transform_7(%arg0: i32) -> (i32, i32, i32) {
    %c0_i32 = arith.constant 0 : i32
    %c0_i32_0 = arith.constant 0 : i32
    %c0_i32_1 = arith.constant 0 : i32
    %c0_i32_2 = arith.constant 0 : i32
    return %c0_i32, %c0_i32_0, %c0_i32_1 : i32, i32, i32
  }
  func.func @transform_8(%arg0: i32) -> (i32, i32, i32) {
    %c0_i32 = arith.constant 0 : i32
    %c0_i32_0 = arith.constant 0 : i32
    %c0_i32_1 = arith.constant 0 : i32
    %c0_i32_2 = arith.constant 0 : i32
    return %c0_i32, %c0_i32_0, %c0_i32_1 : i32, i32, i32
  }
  func.func @transform_9(%arg0: i32) -> (i32, i32, i32) {
    %c0_i32 = arith.constant 0 : i32
    %c0_i32_0 = arith.constant 0 : i32
    %c0_i32_1 = arith.constant 0 : i32
    %c0_i32_2 = arith.constant 0 : i32
    return %c0_i32, %c0_i32_0, %c0_i32_1 : i32, i32, i32
  }
  func.func @transform_10(%arg0: i32) -> (i32, i32, i32) {
    %c0_i32 = arith.constant 0 : i32
    %c0_i32_0 = arith.constant 0 : i32
    %c0_i32_1 = arith.constant 0 : i32
    %c0_i32_2 = arith.constant 0 : i32
    return %c0_i32, %c0_i32_0, %c0_i32_1 : i32, i32, i32
  }
  func.func @transform_11(%arg0: i32) -> (i32, i32, i32) {
    %c0_i32 = arith.constant 0 : i32
    %c0_i32_0 = arith.constant 0 : i32
    %c0_i32_1 = arith.constant 0 : i32
    %c0_i32_2 = arith.constant 0 : i32
    return %c0_i32, %c0_i32_0, %c0_i32_1 : i32, i32, i32
  }
  func.func @transform_12(%arg0: i32) -> (i32, i32, i32) {
    %c0_i32 = arith.constant 0 : i32
    %c0_i32_0 = arith.constant 0 : i32
    %c0_i32_1 = arith.constant 0 : i32
    %c0_i32_2 = arith.constant 0 : i32
    return %c0_i32, %c0_i32_0, %c0_i32_1 : i32, i32, i32
  }
  func.func @transform_13(%arg0: i32) -> (i32, i32, i32) {
    %c0_i32 = arith.constant 0 : i32
    %c0_i32_0 = arith.constant 0 : i32
    %c0_i32_1 = arith.constant 0 : i32
    %c0_i32_2 = arith.constant 0 : i32
    return %c0_i32, %c0_i32_0, %c0_i32_1 : i32, i32, i32
  }
  func.func @transform_14(%arg0: i32) -> (i32, i32, i32) {
    %c0_i32 = arith.constant 0 : i32
    %c0_i32_0 = arith.constant 0 : i32
    %c0_i32_1 = arith.constant 0 : i32
    %c0_i32_2 = arith.constant 0 : i32
    return %c0_i32, %c0_i32_0, %c0_i32_1 : i32, i32, i32
  }
  func.func @transform_15(%arg0: i32) -> (i32, i32, i32) {
    %c0_i32 = arith.constant 0 : i32
    %c0_i32_0 = arith.constant 0 : i32
    %c0_i32_1 = arith.constant 0 : i32
    %c0_i32_2 = arith.constant 0 : i32
    return %c0_i32, %c0_i32_0, %c0_i32_1 : i32, i32, i32
  }
  func.func @transform_16(%arg0: i32) -> (i32, i32, i32) {
    %c0_i32 = arith.constant 0 : i32
    %c0_i32_0 = arith.constant 0 : i32
    %c0_i32_1 = arith.constant 0 : i32
    %c0_i32_2 = arith.constant 0 : i32
    return %c0_i32, %c0_i32_0, %c0_i32_1 : i32, i32, i32
  }
  func.func @transform_17(%arg0: i32) -> (i32, i32) {
    %c0_i32 = arith.constant 0 : i32
    %c0_i32_0 = arith.constant 0 : i32
    %c0_i32_1 = arith.constant 0 : i32
    return %c0_i32, %c0_i32_0 : i32, i32
  }
  func.func @transform_18(%arg0: i32) -> (i32, i32) {
    %c0_i32 = arith.constant 0 : i32
    %c0_i32_0 = arith.constant 0 : i32
    %c0_i32_1 = arith.constant 0 : i32
    return %c0_i32, %c0_i32_0 : i32, i32
  }
  func.func @transform_19(%arg0: i32) -> (i32, i32) {
    %c0_i32 = arith.constant 0 : i32
    %c0_i32_0 = arith.constant 0 : i32
    %c0_i32_1 = arith.constant 0 : i32
    return %c0_i32, %c0_i32_0 : i32, i32
  }
  func.func @transform_20(%arg0: i32) -> (i32, i32) {
    %c0_i32 = arith.constant 0 : i32
    %c0_i32_0 = arith.constant 0 : i32
    %c0_i32_1 = arith.constant 0 : i32
    return %c0_i32, %c0_i32_0 : i32, i32
  }
  func.func @transform_21(%arg0: i32) -> (i32, i32, i32) {
    %c0_i32 = arith.constant 0 : i32
    %c0_i32_0 = arith.constant 0 : i32
    %c0_i32_1 = arith.constant 0 : i32
    return %arg0, %c0_i32, %c0_i32_0 : i32, i32, i32
  }
  func.func @transform_22(%arg0: i32) -> (i32, i32, i32) {
    %c0_i32 = arith.constant 0 : i32
    %c0_i32_0 = arith.constant 0 : i32
    %c0_i32_1 = arith.constant 0 : i32
    return %arg0, %c0_i32, %c0_i32_0 : i32, i32, i32
  }
}

</mosaic_0001>

<llo_original>
// kernel: miasrec_forward.1
$region0: #{miasrec_forward.1}
  #allocation0 [shape = 'u32[]', space=smem, size = 0x4, offset = 0x4, fixed_abs, tag = 'smem constant byte address 0x4 - core index']
  #allocation1 [shape = 'u32[72,128]{1,0:T(1,128)}', space=vmem, size = 0x9000, scoped, tag = 'internal scratch']
  #allocation2 [shape = 'f32[1,1]{1,0:T(1,128)S(1)}', space=vmem, size = 0x200, scoped, tag = 'scoped memory for miasrec_forward.1']
  %s0 = inlined_call_operand.vmem [shape: f32[2,16,32], index: 0, kind: input, shape index: {}]
  %s1 = inlined_call_operand.vmem [shape: f32[2,16,32], index: 1, kind: input, shape index: {}]
  %s2 = inlined_call_operand.vmem [shape: s32[2,1,1], index: 2, kind: input, shape index: {}]
  %s3 = inlined_call_operand.vmem [shape: f32[1,32], index: 3, kind: input, shape index: {}]
  %s4 = inlined_call_operand.vmem [shape: f32[1,32], index: 4, kind: input, shape index: {}]
  %s5 = inlined_call_operand.vmem [shape: bf16[2,32,128], index: 5, kind: input, shape index: {}]
  %s6 = inlined_call_operand.vmem [shape: f32[2,1,128], index: 6, kind: input, shape index: {}]
  %s7 = inlined_call_operand.vmem [shape: bf16[2,32,32], index: 7, kind: input, shape index: {}]
  %s8 = inlined_call_operand.vmem [shape: f32[2,1,32], index: 8, kind: input, shape index: {}]
  %s9 = inlined_call_operand.vmem [shape: f32[2,1,32], index: 9, kind: input, shape index: {}]
  %s10 = inlined_call_operand.vmem [shape: f32[2,1,32], index: 10, kind: input, shape index: {}]
  %s11 = inlined_call_operand.vmem [shape: bf16[2,32,128], index: 11, kind: input, shape index: {}]
  %s12 = inlined_call_operand.vmem [shape: f32[2,1,128], index: 12, kind: input, shape index: {}]
  %s13 = inlined_call_operand.vmem [shape: bf16[2,128,32], index: 13, kind: input, shape index: {}]
  %s14 = inlined_call_operand.vmem [shape: f32[2,1,32], index: 14, kind: input, shape index: {}]
  %s15 = inlined_call_operand.vmem [shape: f32[2,1,32], index: 15, kind: input, shape index: {}]
  %s16 = inlined_call_operand.vmem [shape: f32[2,1,32], index: 16, kind: input, shape index: {}]
  %s17 = inlined_call_operand.vmem [shape: bf16[64,32], index: 17, kind: input, shape index: {}]
  %s18 = inlined_call_operand.vmem [shape: f32[1,32], index: 18, kind: input, shape index: {}]
  %s19 = inlined_call_operand.vmem [shape: f32[2,32], index: 19, kind: input, shape index: {}]
  %s20 = inlined_call_operand.<no memory space> [shape: f32[1,1], index: 20, kind: input, shape index: {}]
  %s21 = inlined_call_operand.vmem [shape: f32[2,16,32], index: 21, kind: output, shape index: {0}]
  %s22 = inlined_call_operand.vmem [shape: f32[2,16,1], index: 22, kind: output, shape index: {1}]
  %23 = xla_tuple %s21, %s22
  %s24 = sld [smem:[#allocation0]]
  $region102: #{miasrec_forward.1} parent=0
    _
  %s26 = ssub.s32 1, %s24
  %s27 = scalar_select 0, %s26, %s24
  %v28 = vstv %s20
  %29 = vst [vmem:[#allocation2] sm:$0x1] %v28
  // Predicated region
  $region2: #{miasrec_forward.1} parent=0 // pred_check
    _
  $region3: #{miasrec_forward.1} parent=0 // pred_check_branch
    %31 = sbr.rel (0) target = $region5
  $region4: #{miasrec_forward.1} parent=0 // pred_region
    _
  $region5: #{miasrec_forward.1} parent=0 // pred_fallthru
    _
  // Predicated region
  $region6: #{miasrec_forward.1} parent=0 // pred_check
    _
  $region7: #{miasrec_forward.1} parent=0 // pred_check_branch
    %33 = sbr.rel (0) target = $region9
  $region8: #{miasrec_forward.1} parent=0 // pred_region
    _
  $region9: #{miasrec_forward.1} parent=0 // pred_fallthru
    _
  // Predicated region
  $region10: #{miasrec_forward.1} parent=0 // pred_check
    _
  $region11: #{miasrec_forward.1} parent=0 // pred_check_branch
    %35 = sbr.rel (0) target = $region13
  $region12: #{miasrec_forward.1} parent=0 // pred_region
    _
  $region13: #{miasrec_forward.1} parent=0 // pred_fallthru
    _
  // Predicated region
  $region14: #{miasrec_forward.1} parent=0 // pred_check
    _
  $region15: #{miasrec_forward.1} parent=0 // pred_check_branch
    %37 = sbr.rel (0) target = $region17
  $region16: #{miasrec_forward.1} parent=0 // pred_region
    _
  $region17: #{miasrec_forward.1} parent=0 // pred_fallthru
    _
  // Predicated region
  $region18: #{miasrec_forward.1} parent=0 // pred_check
    _
  $region19: #{miasrec_forward.1} parent=0 // pred_check_branch
    %39 = sbr.rel (0) target = $region21
  $region20: #{miasrec_forward.1} parent=0 // pred_region
    _
  $region21: #{miasrec_forward.1} parent=0 // pred_fallthru
    _
  // Predicated region
  $region22: #{miasrec_forward.1} parent=0 // pred_check
    _
  $region23: #{miasrec_forward.1} parent=0 // pred_check_branch
    %41 = sbr.rel (0) target = $region25
  $region24: #{miasrec_forward.1} parent=0 // pred_region
    _
  $region25: #{miasrec_forward.1} parent=0 // pred_fallthru
    _
  // Predicated region
  $region26: #{miasrec_forward.1} parent=0 // pred_check
    _
  $region27: #{miasrec_forward.1} parent=0 // pred_check_branch
    %43 = sbr.rel (0) target = $region29
  $region28: #{miasrec_forward.1} parent=0 // pred_region
    _
  $region29: #{miasrec_forward.1} parent=0 // pred_fallthru
    _
  // Predicated region
  $region30: #{miasrec_forward.1} parent=0 // pred_check
    _
  $region31: #{miasrec_forward.1} parent=0 // pred_check_branch
    %45 = sbr.rel (0) target = $region33
  $region32: #{miasrec_forward.1} parent=0 // pred_region
    _
  $region33: #{miasrec_forward.1} parent=0 // pred_fallthru
    _
  // Predicated region
  $region34: #{miasrec_forward.1} parent=0 // pred_check
    _
  $region35: #{miasrec_forward.1} parent=0 // pred_check_branch
    %47 = sbr.rel (0) target = $region37
  $region36: #{miasrec_forward.1} parent=0 // pred_region
    _
  $region37: #{miasrec_forward.1} parent=0 // pred_fallthru
    _
  // Predicated region
  $region38: #{miasrec_forward.1} parent=0 // pred_check
    _
  $region39: #{miasrec_forward.1} parent=0 // pred_check_branch
    %49 = sbr.rel (0) target = $region41
  $region40: #{miasrec_forward.1} parent=0 // pred_region
    _
  $region41: #{miasrec_forward.1} parent=0 // pred_fallthru
    _
  // Predicated region
  $region42: #{miasrec_forward.1} parent=0 // pred_check
    _
  $region43: #{miasrec_forward.1} parent=0 // pred_check_branch
    %51 = sbr.rel (0) target = $region45
  $region44: #{miasrec_forward.1} parent=0 // pred_region
    _
  $region45: #{miasrec_forward.1} parent=0 // pred_fallthru
    _
  // Predicated region
  $region46: #{miasrec_forward.1} parent=0 // pred_check
    _
  $region47: #{miasrec_forward.1} parent=0 // pred_check_branch
    %53 = sbr.rel (0) target = $region49
  $region48: #{miasrec_forward.1} parent=0 // pred_region
    _
  $region49: #{miasrec_forward.1} parent=0 // pred_fallthru
    _
  // Predicated region
  $region50: #{miasrec_forward.1} parent=0 // pred_check
    _
  $region51: #{miasrec_forward.1} parent=0 // pred_check_branch
    %55 = sbr.rel (0) target = $region53
  $region52: #{miasrec_forward.1} parent=0 // pred_region
    _
  $region53: #{miasrec_forward.1} parent=0 // pred_fallthru
    _
  // Predicated region
  $region54: #{miasrec_forward.1} parent=0 // pred_check
    _
  $region55: #{miasrec_forward.1} parent=0 // pred_check_branch
    %57 = sbr.rel (0) target = $region57
  $region56: #{miasrec_forward.1} parent=0 // pred_region
    _
  $region57: #{miasrec_forward.1} parent=0 // pred_fallthru
    _
  // Predicated region
  $region58: #{miasrec_forward.1} parent=0 // pred_check
    _
  $region59: #{miasrec_forward.1} parent=0 // pred_check_branch
    %59 = sbr.rel (0) target = $region61
  $region60: #{miasrec_forward.1} parent=0 // pred_region
    _
  $region61: #{miasrec_forward.1} parent=0 // pred_fallthru
    _
  // Predicated region
  $region62: #{miasrec_forward.1} parent=0 // pred_check
    _
  $region63: #{miasrec_forward.1} parent=0 // pred_check_branch
    %61 = sbr.rel (0) target = $region65
  $region64: #{miasrec_forward.1} parent=0 // pred_region
    _
  $region65: #{miasrec_forward.1} parent=0 // pred_fallthru
    _
  // Predicated region
  $region66: #{miasrec_forward.1} parent=0 // pred_check
    _
  $region67: #{miasrec_forward.1} parent=0 // pred_check_branch
    %63 = sbr.rel (0) target = $region69
  $region68: #{miasrec_forward.1} parent=0 // pred_region
    _
  $region69: #{miasrec_forward.1} parent=0 // pred_fallthru
    _
  // Predicated region
  $region70: #{miasrec_forward.1} parent=0 // pred_check
    _
  $region71: #{miasrec_forward.1} parent=0 // pred_check_branch
    %65 = sbr.rel (0) target = $region73
  $region72: #{miasrec_forward.1} parent=0 // pred_region
    _
  $region73: #{miasrec_forward.1} parent=0 // pred_fallthru
    _
  // Predicated region
  $region74: #{miasrec_forward.1} parent=0 // pred_check
    _
  $region75: #{miasrec_forward.1} parent=0 // pred_check_branch
    %67 = sbr.rel (0) target = $region77
  $region76: #{miasrec_forward.1} parent=0 // pred_region
    _
  $region77: #{miasrec_forward.1} parent=0 // pred_fallthru
    _
  // Predicated region
  $region78: #{miasrec_forward.1} parent=0 // pred_check
    _
  $region79: #{miasrec_forward.1} parent=0 // pred_check_branch
    %69 = sbr.rel (0) target = $region81
  $region80: #{miasrec_forward.1} parent=0 // pred_region
    _
  $region81: #{miasrec_forward.1} parent=0 // pred_fallthru
    _
  // Predicated region
  $region82: #{miasrec_forward.1} parent=0 // pred_check
    _
  $region83: #{miasrec_forward.1} parent=0 // pred_check_branch
    %71 = sbr.rel (0) target = $region85
  $region84: #{miasrec_forward.1} parent=0 // pred_region
    _
  $region85: #{miasrec_forward.1} parent=0 // pred_fallthru
    _
  %v73 = vlaneseq
  %v74 = vand.u32 %v73, 127
  %v75 = vld [vmem:[%s2] sm:$0x1]
  %v76 = vld [vmem:[%s2 + $0x1] sm:$0x1]
  %77 = vset.pattern.permute.xlu0 0
  %78 = vperm.xlu0 %77, %v75
  %v79 = vpop.permute.xlu0 %78
  %v80 = vperm.slane %v79, 0
  %81 = vset.pattern.permute.xlu0 0
  %82 = vperm.xlu0 %81, %v76
  %v83 = vpop.permute.xlu0 %82
  %v84 = vperm.slane %v83, 0
  %vm85 = vcmp.le.s32.totalorder %v74, %v80
  %vm86 = vcmp.le.s32.totalorder %v74, %v84
  %v87 = vsel %vm85, 0.0, -10000.0
  %v88 = vsel %vm86, 0.0, -10000.0
  %v89 = vld [vmem:[%s1] sm:$0xff]
  %v90 = vld [vmem:[%s1 + $0x8] sm:$0xff]
  %v91 = vld [vmem:[%s1 + $0x10] sm:$0xff]
  %v92 = vld [vmem:[%s1 + $0x18] sm:$0xff]
  %v93 = vld [vmem:[%s3] sm:$0x1]
  %v94 = vld [vmem:[%s4] sm:$0x1]
  %vm95 = vcmask 261120
  %v96 = vsel %vm95, %v89, 0.0
  %97 = vadd.xlane.f32.xlu0 %v96
  %v98 = vpop.xlane.xlu0 %97
  %v99 = vsel %vm95, %v90, 0.0
  %100 = vadd.xlane.f32.xlu0 %v99
  %v101 = vpop.xlane.xlu0 %100
  %v102 = vsel %vm95, %v91, 0.0
  %103 = vadd.xlane.f32.xlu0 %v102
  %v104 = vpop.xlane.xlu0 %103
  %v105 = vsel %vm95, %v92, 0.0
  %106 = vadd.xlane.f32.xlu0 %v105
  %v107 = vpop.xlane.xlu0 %106
  %v108 = vmul.f32 %v98, 0.03125
  %v109 = vmul.f32 %v101, 0.03125
  %v110 = vmul.f32 %v104, 0.03125
  %v111 = vmul.f32 %v107, 0.03125
  %v112 = vsub.f32 %v89, %v108
  %v113 = vsub.f32 %v90, %v109
  %v114 = vsub.f32 %v91, %v110
  %v115 = vsub.f32 %v92, %v111
  %v116 = vmul.f32 %v112, %v112
  %v117 = vmul.f32 %v113, %v113
  %v118 = vmul.f32 %v114, %v114
  %v119 = vmul.f32 %v115, %v115
  %v120 = vsel %vm95, %v116, 0.0
  %121 = vadd.xlane.f32.xlu0 %v120
  %v122 = vpop.xlane.xlu0 %121
  %v123 = vsel %vm95, %v117, 0.0
  %124 = vadd.xlane.f32.xlu0 %v123
  %v125 = vpop.xlane.xlu0 %124
  %v126 = vsel %vm95, %v118, 0.0
  %127 = vadd.xlane.f32.xlu0 %v126
  %v128 = vpop.xlane.xlu0 %127
  %v129 = vsel %vm95, %v119, 0.0
  %130 = vadd.xlane.f32.xlu0 %v129
  %v131 = vpop.xlane.xlu0 %130
  %v132 = vmul.f32 %v122, 0.03125
  %v133 = vmul.f32 %v125, 0.03125
  %v134 = vmul.f32 %v128, 0.03125
  %v135 = vmul.f32 %v131, 0.03125
  %v136 = vadd.f32 %v132, 1e-12
  %v137 = vadd.f32 %v133, 1e-12
  %v138 = vadd.f32 %v134, 1e-12
  %v139 = vadd.f32 %v135, 1e-12
  %v140 = vrsqrt.pop %v136
  %v141 = vmul.f32 %v140, %v136
  %v142 = vmul.f32 %v141, %v140
  %v143 = vmul.f32 0.5, %v142
  %v144 = vsub.f32 1.5, %v143
  %v145 = vmul.f32 %v140, %v144
  %vm146 = vweird.f32 %v136
  %vm147 = vweird.f32 %v140
  %vm148 = vmor %vm146, %vm147
  %v149 = vsel %vm148, %v140, %v145
  %v150 = vrsqrt.pop %v137
  %v151 = vmul.f32 %v150, %v137
  %v152 = vmul.f32 %v151, %v150
  %v153 = vmul.f32 0.5, %v152
  %v154 = vsub.f32 1.5, %v153
  %v155 = vmul.f32 %v150, %v154
  %vm156 = vweird.f32 %v137
  %vm157 = vweird.f32 %v150
  %vm158 = vmor %vm156, %vm157
  %v159 = vsel %vm158, %v150, %v155
  %v160 = vrsqrt.pop %v138
  %v161 = vmul.f32 %v160, %v138
  %v162 = vmul.f32 %v161, %v160
  %v163 = vmul.f32 0.5, %v162
  %v164 = vsub.f32 1.5, %v163
  %v165 = vmul.f32 %v160, %v164
  %vm166 = vweird.f32 %v138
  %vm167 = vweird.f32 %v160
  %vm168 = vmor %vm166, %vm167
  %v169 = vsel %vm168, %v160, %v165
  %v170 = vrsqrt.pop %v139
  %v171 = vmul.f32 %v170, %v139
  %v172 = vmul.f32 %v171, %v170
  %v173 = vmul.f32 0.5, %v172
  %v174 = vsub.f32 1.5, %v173
  %v175 = vmul.f32 %v170, %v174
  %vm176 = vweird.f32 %v139
  %vm177 = vweird.f32 %v170
  %vm178 = vmor %vm176, %vm177
  %v179 = vsel %vm178, %v170, %v175
  %v180 = vmul.f32 %v112, %v149
  %v181 = vmul.f32 %v113, %v159
  %v182 = vmul.f32 %v114, %v169
  %v183 = vmul.f32 %v115, %v179
  %v185 = vperm.slane %v93, 0
  %v187 = vmul.f32 %v180, %v185
  %v188 = vmul.f32 %v181, %v185
  %v189 = vmul.f32 %v182, %v185
  %v190 = vmul.f32 %v183, %v185
  %v192 = vperm.slane %v94, 0
  %v194 = vadd.f32 %v187, %v192
  %v195 = vadd.f32 %v188, %v192
  %v196 = vadd.f32 %v189, %v192
  %v197 = vadd.f32 %v190, %v192
  %v198 = vpack.c.bf16 %v195, %v194
  %v199 = vpack.c.bf16 %v197, %v196
  %v200 = vld [vmem:[%s5] sm:$0xf]
  %v201 = vld [vmem:[%s5 + $0x4] sm:$0xf]
  %v202 = vld [vmem:[%s5 + $0x8] sm:$0xf]
  %v203 = vld [vmem:[%s5 + $0xc] sm:$0xf]
  %v204 = vld [vmem:[%s6] sm:$0x1]
  %v206 = vperm.slane %v204, 0
  %v212 = vunpack.c.l.b16 %v200
  %v213 = vunpack.c.l.b16 %v201
  %v214 = vunpack.c.l.b16 %v202
  %v215 = vunpack.c.l.b16 %v203
  %v216 = vpack.c.b16 %v213, %v212
  %v217 = vpack.c.b16 %v215, %v214
  %v221 = vsel %vm95, %v198, 0
  %v224 = vsel %vm95, %v199, 0
  %226 = vmatpush.bf16.msra.mxu0 0
  %227 = vmatpush.bf16.msra.mxu0 0
  %228 = vmatpush.bf16.msra.mxu0 0
  %229 = vmatpush.bf16.msra.mxu0 0
  %230 = vmatpush.bf16.msra.mxu0 0
  %231 = vmatpush.bf16.msra.mxu0 0
  %232 = vmatpush.bf16.msra.mxu0 %v217
  %233 = vmatpush.bf16.msra.mxu0 %v216
  %234 = vmatmul.bf16.gmra.mxu0 %v221
  %v235 = vpop.f32.mrf.mxu0
  %v236 = vadd.f32 %v206, %v235
  %v237 = vpop.f32.mrf.mxu0
  %v238 = vadd.f32 %v206, %v237
  %239 = vmatmul.bf16.gmra.mxu0 %v224
  %v240 = vpop.f32.mrf.mxu0
  %v241 = vadd.f32 %v206, %v240
  %v242 = vpop.f32.mrf.mxu0
  %v243 = vadd.f32 %v206, %v242
  %244 = vdwg.mxu0
  %v245 = vpack.c.bf16 %v236, %v236
  %v246 = vpack.c.bf16 %v238, %v238
  %v247 = vpack.c.bf16 %v241, %v241
  %v248 = vpack.c.bf16 %v243, %v243
  %v251 = vunpack.c.l.b16 %v245
  %v252 = vunpack.c.l.b16 %v246
  %v253 = vpack.c.b16 %v252, %v251
  %254 = vrot.lane.b32.xlu0 %v253, 96
  %v255 = vpop.permute.xlu0 %254
  %vm256 = vcmask 130048
  %v258 = vsel %vm256, %v253, 0
  %v261 = vsel %vm256, %v255, 0
  %263 = vmatpush.bf16.xpose.msra.mxu0 0
  %264 = vmatpush.bf16.xpose.msra.mxu0 0
  %265 = vmatpush.bf16.xpose.msra.mxu0 0
  %266 = vmatpush.bf16.xpose.msra.mxu0 0
  %267 = vmatpush.bf16.xpose.msra.mxu0 0
  %268 = vmatpush.bf16.xpose.msra.mxu0 0
  %269 = vmatpush.bf16.xpose.msra.mxu0 0
  %270 = vmatpush.bf16.xpose.msra.mxu0 %v261
  %271 = vmatmul.bf16.gmra.mxu0 %v258
  %v272 = vpop.f32.mrf.mxu0
  %v273 = vadd.f32 0.0, %v272
  %v274 = vpop.f32.mrf.mxu0
  %v275 = vadd.f32 0.0, %v274
  %276 = vdwg.mxu0
  %v279 = vunpack.c.l.b16 %v247
  %v280 = vunpack.c.l.b16 %v248
  %v281 = vpack.c.b16 %v280, %v279
  %282 = vrot.lane.b32.xlu0 %v281, 96
  %v283 = vpop.permute.xlu0 %282
  %v285 = vsel %vm256, %v281, 0
  %v288 = vsel %vm256, %v283, 0
  %290 = vmatpush.bf16.xpose.msra.mxu0 0
  %291 = vmatpush.bf16.xpose.msra.mxu0 0
  %292 = vmatpush.bf16.xpose.msra.mxu0 0
  %293 = vmatpush.bf16.xpose.msra.mxu0 0
  %294 = vmatpush.bf16.xpose.msra.mxu0 0
  %295 = vmatpush.bf16.xpose.msra.mxu0 0
  %296 = vmatpush.bf16.xpose.msra.mxu0 0
  %297 = vmatpush.bf16.xpose.msra.mxu0 %v288
  %298 = vmatmul.bf16.gmra.mxu0 %v285
  %v299 = vpop.f32.mrf.mxu0
  %v300 = vadd.f32 0.0, %v299
  %v301 = vpop.f32.mrf.mxu0
  %v302 = vadd.f32 0.0, %v301
  %303 = vdwg.mxu0
  %v304 = vmul.f32 %v273, 0.25
  %v305 = vmul.f32 %v275, 0.25
  %v306 = vmul.f32 %v300, 0.25
  %v307 = vmul.f32 %v302, 0.25
  %v308 = vadd.f32 %v304, %v87
  %v309 = vadd.f32 %v305, %v87
  %v310 = vadd.f32 %v306, %v88
  %v311 = vadd.f32 %v307, %v88
  %v312 = vsel %vm256, %v308, -inf
  %313 = vmax.xlane.f32.xlu0 %v312
  %v314 = vpop.xlane.xlu0 %313
  %v315 = vsel %vm256, %v309, -inf
  %316 = vmax.xlane.f32.xlu0 %v315
  %v317 = vpop.xlane.xlu0 %316
  %v318 = vsel %vm256, %v310, -inf
  %319 = vmax.xlane.f32.xlu0 %v318
  %v320 = vpop.xlane.xlu0 %319
  %v321 = vsel %vm256, %v311, -inf
  %322 = vmax.xlane.f32.xlu0 %v321
  %v323 = vpop.xlane.xlu0 %322
  %v324 = vsub.f32 %v308, %v314
  %v325 = vsub.f32 %v309, %v317
  %v326 = vsub.f32 %v310, %v320
  %v327 = vsub.f32 %v311, %v323
  %v328 = vmul.f32 %v324, 1.442695
  %v329 = vpow.pop %v328
  %v330 = vmul.f32 %v325, 1.442695
  %v331 = vpow.pop %v330
  %v332 = vmul.f32 %v326, 1.442695
  %v333 = vpow.pop %v332
  %v334 = vmul.f32 %v327, 1.442695
  %v335 = vpow.pop %v334
  %v336 = vsel %vm256, %v329, 0.0
  %337 = vadd.xlane.f32.xlu0 %v336
  %v338 = vpop.xlane.xlu0 %337
  %v339 = vsel %vm256, %v331, 0.0
  %340 = vadd.xlane.f32.xlu0 %v339
  %v341 = vpop.xlane.xlu0 %340
  %v342 = vsel %vm256, %v333, 0.0
  %343 = vadd.xlane.f32.xlu0 %v342
  %v344 = vpop.xlane.xlu0 %343
  %v345 = vsel %vm256, %v335, 0.0
  %346 = vadd.xlane.f32.xlu0 %v345
  %v347 = vpop.xlane.xlu0 %346
  %v348 = vrcp.pop %v338
  %v349 = vmul.f32 %v338, %v348
  %v350 = vsub.f32 1.0, %v349
  %v351 = vmul.f32 %v348, %v350
  %v352 = vadd.f32 %v348, %v351
  %vm353 = vweird.f32 %v338
  %vm354 = vweird.f32 %v348
  %vm355 = vmor %vm353, %vm354
  %v356 = vsel %vm355, %v348, %v352
  %v357 = vand.u32 2147483647, %v338
  %vm358 = vcmp.eq.f32.partialorder %v357, 8.507059e+37
  %v359 = vand.u32 %v338, 2147483648
  %v360 = vor.u32 1.1754944e-38, %v359
  %v361 = vsel %vm358, %v360, %v356
  %v362 = vmul.f32 %v329, %v361
  %v363 = vrcp.pop %v341
  %v364 = vmul.f32 %v341, %v363
  %v365 = vsub.f32 1.0, %v364
  %v366 = vmul.f32 %v363, %v365
  %v367 = vadd.f32 %v363, %v366
  %vm368 = vweird.f32 %v341
  %vm369 = vweird.f32 %v363
  %vm370 = vmor %vm368, %vm369
  %v371 = vsel %vm370, %v363, %v367
  %v372 = vand.u32 2147483647, %v341
  %vm373 = vcmp.eq.f32.partialorder %v372, 8.507059e+37
  %v374 = vand.u32 %v341, 2147483648
  %v375 = vor.u32 1.1754944e-38, %v374
  %v376 = vsel %vm373, %v375, %v371
  %v377 = vmul.f32 %v331, %v376
  %v378 = vrcp.pop %v344
  %v379 = vmul.f32 %v344, %v378
  %v380 = vsub.f32 1.0, %v379
  %v381 = vmul.f32 %v378, %v380
  %v382 = vadd.f32 %v378, %v381
  %vm383 = vweird.f32 %v344
  %vm384 = vweird.f32 %v378
  %vm385 = vmor %vm383, %vm384
  %v386 = vsel %vm385, %v378, %v382
  %v387 = vand.u32 2147483647, %v344
  %vm388 = vcmp.eq.f32.partialorder %v387, 8.507059e+37
  %v389 = vand.u32 %v344, 2147483648
  %v390 = vor.u32 1.1754944e-38, %v389
  %v391 = vsel %vm388, %v390, %v386
  %v392 = vmul.f32 %v333, %v391
  %v393 = vrcp.pop %v347
  %v394 = vmul.f32 %v347, %v393
  %v395 = vsub.f32 1.0, %v394
  %v396 = vmul.f32 %v393, %v395
  %v397 = vadd.f32 %v393, %v396
  %vm398 = vweird.f32 %v347
  %vm399 = vweird.f32 %v393
  %vm400 = vmor %vm398, %vm399
  %v401 = vsel %vm400, %v393, %v397
  %v402 = vand.u32 2147483647, %v347
  %vm403 = vcmp.eq.f32.partialorder %v402, 8.507059e+37
  %v404 = vand.u32 %v347, 2147483648
  %v405 = vor.u32 1.1754944e-38, %v404
  %v406 = vsel %vm403, %v405, %v401
  %v407 = vmul.f32 %v335, %v406
  %v408 = vpack.c.bf16 %v362, %v362
  %v409 = vpack.c.bf16 %v377, %v377
  %v410 = vpack.c.bf16 %v392, %v392
  %v411 = vpack.c.bf16 %v407, %v407
  %v414 = vunpack.c.l.b16 %v408
  %v415 = vunpack.c.l.b16 %v409
  %v416 = vpack.c.b16 %v415, %v414
  %417 = vrot.lane.b32.xlu0 %v253, 64
  %v418 = vpop.permute.xlu0 %417
  %v421 = vsel %vm256, %v416, 0
  %423 = vmatpush.bf16.msra.mxu0 0
  %424 = vmatpush.bf16.msra.mxu0 0
  %425 = vmatpush.bf16.msra.mxu0 0
  %426 = vmatpush.bf16.msra.mxu0 0
  %427 = vmatpush.bf16.msra.mxu0 0
  %428 = vmatpush.bf16.msra.mxu0 0
  %429 = vmatpush.bf16.msra.mxu0 0
  %430 = vmatpush.bf16.msra.mxu0 %v418
  %431 = vmatmul.bf16.gmra.mxu0 %v421
  %v432 = vpop.f32.mrf.mxu0
  %v433 = vadd.f32 0.0, %v432
  %v434 = vpop.f32.mrf.mxu0
  %v435 = vadd.f32 0.0, %v434
  %436 = vdwg.mxu0
  %v439 = vunpack.c.l.b16 %v410
  %v440 = vunpack.c.l.b16 %v411
  %v441 = vpack.c.b16 %v440, %v439
  %442 = vrot.lane.b32.xlu0 %v281, 64
  %v443 = vpop.permute.xlu0 %442
  %v446 = vsel %vm256, %v441, 0
  %448 = vmatpush.bf16.msra.mxu0 0
  %449 = vmatpush.bf16.msra.mxu0 0
  %450 = vmatpush.bf16.msra.mxu0 0
  %451 = vmatpush.bf16.msra.mxu0 0
  %452 = vmatpush.bf16.msra.mxu0 0
  %453 = vmatpush.bf16.msra.mxu0 0
  %454 = vmatpush.bf16.msra.mxu0 0
  %455 = vmatpush.bf16.msra.mxu0 %v443
  %456 = vmatmul.bf16.gmra.mxu0 %v446
  %v457 = vpop.f32.mrf.mxu0
  %v458 = vadd.f32 0.0, %v457
  %v459 = vpop.f32.mrf.mxu0
  %v460 = vadd.f32 0.0, %v459
  %461 = vdwg.mxu0
  %462 = vrot.lane.b32.xlu0 %v253, 112
  %v463 = vpop.permute.xlu0 %462
  %464 = vrot.lane.b32.xlu0 %v253, 80
  %v465 = vpop.permute.xlu0 %464
  %v467 = vsel %vm256, %v463, 0
  %v470 = vsel %vm256, %v465, 0
  %472 = vmatpush.bf16.xpose.msra.mxu0 0
  %473 = vmatpush.bf16.xpose.msra.mxu0 0
  %474 = vmatpush.bf16.xpose.msra.mxu0 0
  %475 = vmatpush.bf16.xpose.msra.mxu0 0
  %476 = vmatpush.bf16.xpose.msra.mxu0 0
  %477 = vmatpush.bf16.xpose.msra.mxu0 0
  %478 = vmatpush.bf16.xpose.msra.mxu0 0
  %479 = vmatpush.bf16.xpose.msra.mxu0 %v470
  %480 = vmatmul.bf16.gmra.mxu0 %v467
  %v481 = vpop.f32.mrf.mxu0
  %v482 = vadd.f32 0.0, %v481
  %v483 = vpop.f32.mrf.mxu0
  %v484 = vadd.f32 0.0, %v483
  %485 = vdwg.mxu0
  %486 = vrot.lane.b32.xlu0 %v281, 112
  %v487 = vpop.permute.xlu0 %486
  %488 = vrot.lane.b32.xlu0 %v281, 80
  %v489 = vpop.permute.xlu0 %488
  %v491 = vsel %vm256, %v487, 0
  %v494 = vsel %vm256, %v489, 0
  %496 = vmatpush.bf16.xpose.msra.mxu0 0
  %497 = vmatpush.bf16.xpose.msra.mxu0 0
  %498 = vmatpush.bf16.xpose.msra.mxu0 0
  %499 = vmatpush.bf16.xpose.msra.mxu0 0
  %500 = vmatpush.bf16.xpose.msra.mxu0 0
  %501 = vmatpush.bf16.xpose.msra.mxu0 0
  %502 = vmatpush.bf16.xpose.msra.mxu0 0
  %503 = vmatpush.bf16.xpose.msra.mxu0 %v494
  %504 = vmatmul.bf16.gmra.mxu0 %v491
  %v505 = vpop.f32.mrf.mxu0
  %v506 = vadd.f32 0.0, %v505
  %v507 = vpop.f32.mrf.mxu0
  %v508 = vadd.f32 0.0, %v507
  %509 = vdwg.mxu0
  %v510 = vmul.f32 %v482, 0.25
  %v511 = vmul.f32 %v484, 0.25
  %v512 = vmul.f32 %v506, 0.25
  %v513 = vmul.f32 %v508, 0.25
  %v514 = vadd.f32 %v510, %v87
  %v515 = vadd.f32 %v511, %v87
  %v516 = vadd.f32 %v512, %v88
  %v517 = vadd.f32 %v513, %v88
  %v518 = vsel %vm256, %v514, -inf
  %519 = vmax.xlane.f32.xlu0 %v518
  %v520 = vpop.xlane.xlu0 %519
  %v521 = vsel %vm256, %v515, -inf
  %522 = vmax.xlane.f32.xlu0 %v521
  %v523 = vpop.xlane.xlu0 %522
  %v524 = vsel %vm256, %v516, -inf
  %525 = vmax.xlane.f32.xlu0 %v524
  %v526 = vpop.xlane.xlu0 %525
  %v527 = vsel %vm256, %v517, -inf
  %528 = vmax.xlane.f32.xlu0 %v527
  %v529 = vpop.xlane.xlu0 %528
  %v530 = vsub.f32 %v514, %v520
  %v531 = vsub.f32 %v515, %v523
  %v532 = vsub.f32 %v516, %v526
  %v533 = vsub.f32 %v517, %v529
  %v534 = vmul.f32 %v530, 1.442695
  %v535 = vpow.pop %v534
  %v536 = vmul.f32 %v531, 1.442695
  %v537 = vpow.pop %v536
  %v538 = vmul.f32 %v532, 1.442695
  %v539 = vpow.pop %v538
  %v540 = vmul.f32 %v533, 1.442695
  %v541 = vpow.pop %v540
  %v542 = vsel %vm256, %v535, 0.0
  %543 = vadd.xlane.f32.xlu0 %v542
  %v544 = vpop.xlane.xlu0 %543
  %v545 = vsel %vm256, %v537, 0.0
  %546 = vadd.xlane.f32.xlu0 %v545
  %v547 = vpop.xlane.xlu0 %546
  %v548 = vsel %vm256, %v539, 0.0
  %549 = vadd.xlane.f32.xlu0 %v548
  %v550 = vpop.xlane.xlu0 %549
  %v551 = vsel %vm256, %v541, 0.0
  %552 = vadd.xlane.f32.xlu0 %v551
  %v553 = vpop.xlane.xlu0 %552
  %v554 = vrcp.pop %v544
  %v555 = vmul.f32 %v544, %v554
  %v556 = vsub.f32 1.0, %v555
  %v557 = vmul.f32 %v554, %v556
  %v558 = vadd.f32 %v554, %v557
  %vm559 = vweird.f32 %v544
  %vm560 = vweird.f32 %v554
  %vm561 = vmor %vm559, %vm560
  %v562 = vsel %vm561, %v554, %v558
  %v563 = vand.u32 2147483647, %v544
  %vm564 = vcmp.eq.f32.partialorder %v563, 8.507059e+37
  %v565 = vand.u32 %v544, 2147483648
  %v566 = vor.u32 1.1754944e-38, %v565
  %v567 = vsel %vm564, %v566, %v562
  %v568 = vmul.f32 %v535, %v567
  %v569 = vrcp.pop %v547
  %v570 = vmul.f32 %v547, %v569
  %v571 = vsub.f32 1.0, %v570
  %v572 = vmul.f32 %v569, %v571
  %v573 = vadd.f32 %v569, %v572
  %vm574 = vweird.f32 %v547
  %vm575 = vweird.f32 %v569
  %vm576 = vmor %vm574, %vm575
  %v577 = vsel %vm576, %v569, %v573
  %v578 = vand.u32 2147483647, %v547
  %vm579 = vcmp.eq.f32.partialorder %v578, 8.507059e+37
  %v580 = vand.u32 %v547, 2147483648
  %v581 = vor.u32 1.1754944e-38, %v580
  %v582 = vsel %vm579, %v581, %v577
  %v583 = vmul.f32 %v537, %v582
  %v584 = vrcp.pop %v550
  %v585 = vmul.f32 %v550, %v584
  %v586 = vsub.f32 1.0, %v585
  %v587 = vmul.f32 %v584, %v586
  %v588 = vadd.f32 %v584, %v587
  %vm589 = vweird.f32 %v550
  %vm590 = vweird.f32 %v584
  %vm591 = vmor %vm589, %vm590
  %v592 = vsel %vm591, %v584, %v588
  %v593 = vand.u32 2147483647, %v550
  %vm594 = vcmp.eq.f32.partialorder %v593, 8.507059e+37
  %v595 = vand.u32 %v550, 2147483648
  %v596 = vor.u32 1.1754944e-38, %v595
  %v597 = vsel %vm594, %v596, %v592
  %v598 = vmul.f32 %v539, %v597
  %v599 = vrcp.pop %v553
  %v600 = vmul.f32 %v553, %v599
  %v601 = vsub.f32 1.0, %v600
  %v602 = vmul.f32 %v599, %v601
  %v603 = vadd.f32 %v599, %v602
  %vm604 = vweird.f32 %v553
  %vm605 = vweird.f32 %v599
  %vm606 = vmor %vm604, %vm605
  %v607 = vsel %vm606, %v599, %v603
  %v608 = vand.u32 2147483647, %v553
  %vm609 = vcmp.eq.f32.partialorder %v608, 8.507059e+37
  %v610 = vand.u32 %v553, 2147483648
  %v611 = vor.u32 1.1754944e-38, %v610
  %v612 = vsel %vm609, %v611, %v607
  %v613 = vmul.f32 %v541, %v612
  %v614 = vpack.c.bf16 %v568, %v568
  %v615 = vpack.c.bf16 %v583, %v583
  %v616 = vpack.c.bf16 %v598, %v598
  %v617 = vpack.c.bf16 %v613, %v613
  %v620 = vunpack.c.l.b16 %v614
  %v621 = vunpack.c.l.b16 %v615
  %v622 = vpack.c.b16 %v621, %v620
  %623 = vrot.lane.b32.xlu0 %v253, 48
  %v624 = vpop.permute.xlu0 %623
  %v627 = vsel %vm256, %v622, 0
  %629 = vmatpush.bf16.msra.mxu0 0
  %630 = vmatpush.bf16.msra.mxu0 0
  %631 = vmatpush.bf16.msra.mxu0 0
  %632 = vmatpush.bf16.msra.mxu0 0
  %633 = vmatpush.bf16.msra.mxu0 0
  %634 = vmatpush.bf16.msra.mxu0 0
  %635 = vmatpush.bf16.msra.mxu0 0
  %636 = vmatpush.bf16.msra.mxu0 %v624
  %637 = vmatmul.bf16.gmra.mxu0 %v627
  %v638 = vpop.f32.mrf.mxu0
  %v639 = vadd.f32 0.0, %v638
  %v640 = vpop.f32.mrf.mxu0
  %v641 = vadd.f32 0.0, %v640
  %642 = vdwg.mxu0
  %v645 = vunpack.c.l.b16 %v616
  %v646 = vunpack.c.l.b16 %v617
  %v647 = vpack.c.b16 %v646, %v645
  %648 = vrot.lane.b32.xlu0 %v281, 48
  %v649 = vpop.permute.xlu0 %648
  %v652 = vsel %vm256, %v647, 0
  %654 = vmatpush.bf16.msra.mxu0 0
  %655 = vmatpush.bf16.msra.mxu0 0
  %656 = vmatpush.bf16.msra.mxu0 0
  %657 = vmatpush.bf16.msra.mxu0 0
  %658 = vmatpush.bf16.msra.mxu0 0
  %659 = vmatpush.bf16.msra.mxu0 0
  %660 = vmatpush.bf16.msra.mxu0 0
  %661 = vmatpush.bf16.msra.mxu0 %v649
  %662 = vmatmul.bf16.gmra.mxu0 %v652
  %v663 = vpop.f32.mrf.mxu0
  %v664 = vadd.f32 0.0, %v663
  %v665 = vpop.f32.mrf.mxu0
  %v666 = vadd.f32 0.0, %v665
  %667 = vdwg.mxu0
  %672 = vrot.lane.b32.xlu0 %v639, 16
  %v673 = vpop.permute.xlu0 %672
  %674 = vrot.lane.b32.xlu0 %v641, 16
  %v675 = vpop.permute.xlu0 %674
  %676 = vrot.lane.b32.xlu0 %v664, 16
  %v677 = vpop.permute.xlu0 %676
  %678 = vrot.lane.b32.xlu0 %v666, 16
  %v679 = vpop.permute.xlu0 %678
  %v684 = vsel %vm256, %v433, %v673
  %v685 = vsel %vm256, %v435, %v675
  %v686 = vsel %vm256, %v458, %v677
  %v687 = vsel %vm256, %v460, %v679
  %v688 = vpack.c.bf16 %v685, %v684
  %v689 = vpack.c.bf16 %v687, %v686
  %v690 = vld [vmem:[%s7] sm:$0xf]
  %v691 = vld [vmem:[%s7 + $0x4] sm:$0xf]
  %v692 = vld [vmem:[%s7 + $0x8] sm:$0xf]
  %v693 = vld [vmem:[%s7 + $0xc] sm:$0xf]
  %v694 = vld [vmem:[%s8] sm:$0x1]
  %v696 = vperm.slane %v694, 0
  %v702 = vunpack.c.l.b16 %v690
  %v703 = vunpack.c.l.b16 %v691
  %v704 = vunpack.c.l.b16 %v692
  %v705 = vunpack.c.l.b16 %v693
  %v706 = vpack.c.b16 %v703, %v702
  %v707 = vpack.c.b16 %v705, %v704
  %v711 = vsel %vm95, %v688, 0
  %v714 = vsel %vm95, %v689, 0
  %716 = vmatpush.bf16.msra.mxu0 0
  %717 = vmatpush.bf16.msra.mxu0 0
  %718 = vmatpush.bf16.msra.mxu0 0
  %719 = vmatpush.bf16.msra.mxu0 0
  %720 = vmatpush.bf16.msra.mxu0 0
  %721 = vmatpush.bf16.msra.mxu0 0
  %722 = vmatpush.bf16.msra.mxu0 %v707
  %723 = vmatpush.bf16.msra.mxu0 %v706
  %724 = vmatmul.bf16.gmra.mxu0 %v711
  %v725 = vpop.f32.mrf.mxu0
  %v726 = vadd.f32 %v696, %v725
  %v727 = vpop.f32.mrf.mxu0
  %v728 = vadd.f32 %v696, %v727
  %729 = vmatmul.bf16.gmra.mxu0 %v714
  %v730 = vpop.f32.mrf.mxu0
  %v731 = vadd.f32 %v696, %v730
  %v732 = vpop.f32.mrf.mxu0
  %v733 = vadd.f32 %v696, %v732
  %734 = vdwg.mxu0
  %v735 = vadd.f32 %v726, %v194
  %v736 = vadd.f32 %v728, %v195
  %v737 = vadd.f32 %v731, %v196
  %v738 = vadd.f32 %v733, %v197
  %v739 = vld [vmem:[%s9] sm:$0x1]
  %v740 = vld [vmem:[%s10] sm:$0x1]
  %v741 = vsel %vm95, %v735, 0.0
  %742 = vadd.xlane.f32.xlu0 %v741
  %v743 = vpop.xlane.xlu0 %742
  %v744 = vsel %vm95, %v736, 0.0
  %745 = vadd.xlane.f32.xlu0 %v744
  %v746 = vpop.xlane.xlu0 %745
  %v747 = vsel %vm95, %v737, 0.0
  %748 = vadd.xlane.f32.xlu0 %v747
  %v749 = vpop.xlane.xlu0 %748
  %v750 = vsel %vm95, %v738, 0.0
  %751 = vadd.xlane.f32.xlu0 %v750
  %v752 = vpop.xlane.xlu0 %751
  %v753 = vmul.f32 %v743, 0.03125
  %v754 = vmul.f32 %v746, 0.03125
  %v755 = vmul.f32 %v749, 0.03125
  %v756 = vmul.f32 %v752, 0.03125
  %v757 = vsub.f32 %v735, %v753
  %v758 = vsub.f32 %v736, %v754
  %v759 = vsub.f32 %v737, %v755
  %v760 = vsub.f32 %v738, %v756
  %v761 = vmul.f32 %v757, %v757
  %v762 = vmul.f32 %v758, %v758
  %v763 = vmul.f32 %v759, %v759
  %v764 = vmul.f32 %v760, %v760
  %v765 = vsel %vm95, %v761, 0.0
  %766 = vadd.xlane.f32.xlu0 %v765
  %v767 = vpop.xlane.xlu0 %766
  %v768 = vsel %vm95, %v762, 0.0
  %769 = vadd.xlane.f32.xlu0 %v768
  %v770 = vpop.xlane.xlu0 %769
  %v771 = vsel %vm95, %v763, 0.0
  %772 = vadd.xlane.f32.xlu0 %v771
  %v773 = vpop.xlane.xlu0 %772
  %v774 = vsel %vm95, %v764, 0.0
  %775 = vadd.xlane.f32.xlu0 %v774
  %v776 = vpop.xlane.xlu0 %775
  %v777 = vmul.f32 %v767, 0.03125
  %v778 = vmul.f32 %v770, 0.03125
  %v779 = vmul.f32 %v773, 0.03125
  %v780 = vmul.f32 %v776, 0.03125
  %v781 = vadd.f32 %v777, 1e-12
  %v782 = vadd.f32 %v778, 1e-12
  %v783 = vadd.f32 %v779, 1e-12
  %v784 = vadd.f32 %v780, 1e-12
  %v785 = vrsqrt.pop %v781
  %v786 = vmul.f32 %v785, %v781
  %v787 = vmul.f32 %v786, %v785
  %v788 = vmul.f32 0.5, %v787
  %v789 = vsub.f32 1.5, %v788
  %v790 = vmul.f32 %v785, %v789
  %vm791 = vweird.f32 %v781
  %vm792 = vweird.f32 %v785
  %vm793 = vmor %vm791, %vm792
  %v794 = vsel %vm793, %v785, %v790
  %v795 = vrsqrt.pop %v782
  %v796 = vmul.f32 %v795, %v782
  %v797 = vmul.f32 %v796, %v795
  %v798 = vmul.f32 0.5, %v797
  %v799 = vsub.f32 1.5, %v798
  %v800 = vmul.f32 %v795, %v799
  %vm801 = vweird.f32 %v782
  %vm802 = vweird.f32 %v795
  %vm803 = vmor %vm801, %vm802
  %v804 = vsel %vm803, %v795, %v800
  %v805 = vrsqrt.pop %v783
  %v806 = vmul.f32 %v805, %v783
  %v807 = vmul.f32 %v806, %v805
  %v808 = vmul.f32 0.5, %v807
  %v809 = vsub.f32 1.5, %v808
  %v810 = vmul.f32 %v805, %v809
  %vm811 = vweird.f32 %v783
  %vm812 = vweird.f32 %v805
  %vm813 = vmor %vm811, %vm812
  %v814 = vsel %vm813, %v805, %v810
  %v815 = vrsqrt.pop %v784
  %v816 = vmul.f32 %v815, %v784
  %v817 = vmul.f32 %v816, %v815
  %v818 = vmul.f32 0.5, %v817
  %v819 = vsub.f32 1.5, %v818
  %v820 = vmul.f32 %v815, %v819
  %vm821 = vweird.f32 %v784
  %vm822 = vweird.f32 %v815
  %vm823 = vmor %vm821, %vm822
  %v824 = vsel %vm823, %v815, %v820
  %v825 = vmul.f32 %v757, %v794
  %v826 = vmul.f32 %v758, %v804
  %v827 = vmul.f32 %v759, %v814
  %v828 = vmul.f32 %v760, %v824
  %v830 = vperm.slane %v739, 0
  %v832 = vmul.f32 %v825, %v830
  %v833 = vmul.f32 %v826, %v830
  %v834 = vmul.f32 %v827, %v830
  %v835 = vmul.f32 %v828, %v830
  %v837 = vperm.slane %v740, 0
  %v839 = vadd.f32 %v832, %v837
  %v840 = vadd.f32 %v833, %v837
  %v841 = vadd.f32 %v834, %v837
  %v842 = vadd.f32 %v835, %v837
  %v843 = vpack.c.bf16 %v840, %v839
  %v844 = vpack.c.bf16 %v842, %v841
  %v845 = vld [vmem:[%s11] sm:$0xf]
  %v846 = vld [vmem:[%s11 + $0x4] sm:$0xf]
  %v847 = vld [vmem:[%s11 + $0x8] sm:$0xf]
  %v848 = vld [vmem:[%s11 + $0xc] sm:$0xf]
  %v849 = vld [vmem:[%s12] sm:$0x1]
  %v851 = vperm.slane %v849, 0
  %v857 = vunpack.c.l.b16 %v845
  %v858 = vunpack.c.l.b16 %v846
  %v859 = vunpack.c.l.b16 %v847
  %v860 = vunpack.c.l.b16 %v848
  %v861 = vpack.c.b16 %v858, %v857
  %v862 = vpack.c.b16 %v860, %v859
  %v866 = vsel %vm95, %v843, 0
  %v869 = vsel %vm95, %v844, 0
  %871 = vmatpush.bf16.msra.mxu0 0
  %872 = vmatpush.bf16.msra.mxu0 0
  %873 = vmatpush.bf16.msra.mxu0 0
  %874 = vmatpush.bf16.msra.mxu0 0
  %875 = vmatpush.bf16.msra.mxu0 0
  %876 = vmatpush.bf16.msra.mxu0 0
  %877 = vmatpush.bf16.msra.mxu0 %v862
  %878 = vmatpush.bf16.msra.mxu0 %v861
  %879 = vmatmul.bf16.gmra.mxu0 %v866
  %v880 = vpop.f32.mrf.mxu0
  %v881 = vadd.f32 %v851, %v880
  %v882 = vpop.f32.mrf.mxu0
  %v883 = vadd.f32 %v851, %v882
  %884 = vmatmul.bf16.gmra.mxu0 %v869
  %v885 = vpop.f32.mrf.mxu0
  %v886 = vadd.f32 %v851, %v885
  %v887 = vpop.f32.mrf.mxu0
  %v888 = vadd.f32 %v851, %v887
  %889 = vdwg.mxu0
  %v890 = vmul.f32 %v881, 0.5
  %v891 = vmul.f32 %v883, 0.5
  %v892 = vmul.f32 %v886, 0.5
  %v893 = vmul.f32 %v888, 0.5
  %v894 = vmul.f32 %v881, 0.044715
  %v895 = vmul.f32 %v883, 0.044715
  %v896 = vmul.f32 %v886, 0.044715
  %v897 = vmul.f32 %v888, 0.044715
  %v898 = vmul.f32 %v894, %v881
  %v899 = vmul.f32 %v895, %v883
  %v900 = vmul.f32 %v896, %v886
  %v901 = vmul.f32 %v897, %v888
  %v902 = vmul.f32 %v898, %v881
  %v903 = vmul.f32 %v899, %v883
  %v904 = vmul.f32 %v900, %v886
  %v905 = vmul.f32 %v901, %v888
  %v906 = vadd.f32 %v881, %v902
  %v907 = vadd.f32 %v883, %v903
  %v908 = vadd.f32 %v886, %v904
  %v909 = vadd.f32 %v888, %v905
  %v910 = vmul.f32 %v906, 0.7978846
  %v911 = vmul.f32 %v907, 0.7978846
  %v912 = vmul.f32 %v908, 0.7978846
  %v913 = vmul.f32 %v909, 0.7978846
  %v914 = vtanh.pop %v910
  %v915 = vtanh.pop %v911
  %v916 = vtanh.pop %v912
  %v917 = vtanh.pop %v913
  %v918 = vadd.f32 %v914, 1.0
  %v919 = vadd.f32 %v915, 1.0
  %v920 = vadd.f32 %v916, 1.0
  %v921 = vadd.f32 %v917, 1.0
  %v922 = vmul.f32 %v890, %v918
  %v923 = vmul.f32 %v891, %v919
  %v924 = vmul.f32 %v892, %v920
  %v925 = vmul.f32 %v893, %v921
  %v926 = vpack.c.bf16 %v923, %v922
  %v927 = vpack.c.bf16 %v925, %v924
  %v928 = vld [vmem:[%s13] sm:$0xf]
  %v929 = vld [vmem:[%s13 + $0x4] sm:$0xf]
  %v930 = vld [vmem:[%s13 + $0x8] sm:$0xf]
  %v931 = vld [vmem:[%s13 + $0xc] sm:$0xf]
  %v932 = vld [vmem:[%s13 + $0x10] sm:$0xf]
  %v933 = vld [vmem:[%s13 + $0x14] sm:$0xf]
  %v934 = vld [vmem:[%s13 + $0x18] sm:$0xf]
  %v935 = vld [vmem:[%s13 + $0x1c] sm:$0xf]
  %v936 = vld [vmem:[%s13 + $0x20] sm:$0xf]
  %v937 = vld [vmem:[%s13 + $0x24] sm:$0xf]
  %v938 = vld [vmem:[%s13 + $0x28] sm:$0xf]
  %v939 = vld [vmem:[%s13 + $0x2c] sm:$0xf]
  %v940 = vld [vmem:[%s13 + $0x30] sm:$0xf]
  %v941 = vld [vmem:[%s13 + $0x34] sm:$0xf]
  %v942 = vld [vmem:[%s13 + $0x38] sm:$0xf]
  %v943 = vld [vmem:[%s13 + $0x3c] sm:$0xf]
  %v944 = vld [vmem:[%s14] sm:$0x1]
  %v946 = vperm.slane %v944, 0
  %v964 = vunpack.c.l.b16 %v928
  %v965 = vunpack.c.l.b16 %v929
  %v966 = vunpack.c.l.b16 %v930
  %v967 = vunpack.c.l.b16 %v931
  %v968 = vunpack.c.l.b16 %v932
  %v969 = vunpack.c.l.b16 %v933
  %v970 = vunpack.c.l.b16 %v934
  %v971 = vunpack.c.l.b16 %v935
  %v972 = vunpack.c.l.b16 %v936
  %v973 = vunpack.c.l.b16 %v937
  %v974 = vunpack.c.l.b16 %v938
  %v975 = vunpack.c.l.b16 %v939
  %v976 = vunpack.c.l.b16 %v940
  %v977 = vunpack.c.l.b16 %v941
  %v978 = vunpack.c.l.b16 %v942
  %v979 = vunpack.c.l.b16 %v943
  %v980 = vpack.c.b16 %v965, %v964
  %v981 = vpack.c.b16 %v967, %v966
  %v982 = vpack.c.b16 %v969, %v968
  %v983 = vpack.c.b16 %v971, %v970
  %v984 = vpack.c.b16 %v973, %v972
  %v985 = vpack.c.b16 %v975, %v974
  %v986 = vpack.c.b16 %v977, %v976
  %v987 = vpack.c.b16 %v979, %v978
  %996 = vmatpush.bf16.msra.mxu0 %v987
  %997 = vmatpush.bf16.msra.mxu0 %v986
  %998 = vmatpush.bf16.msra.mxu0 %v985
  %999 = vmatpush.bf16.msra.mxu0 %v984
  %1000 = vmatpush.bf16.msra.mxu0 %v983
  %1001 = vmatpush.bf16.msra.mxu0 %v982
  %1002 = vmatpush.bf16.msra.mxu0 %v981
  %1003 = vmatpush.bf16.msra.mxu0 %v980
  %1004 = vmatmul.bf16.gmra.mxu0 %v926
  %v1005 = vpop.f32.mrf.mxu0
  %v1006 = vadd.f32 %v946, %v1005
  %v1007 = vpop.f32.mrf.mxu0
  %v1008 = vadd.f32 %v946, %v1007
  %1009 = vmatmul.bf16.gmra.mxu0 %v927
  %v1010 = vpop.f32.mrf.mxu0
  %v1011 = vadd.f32 %v946, %v1010
  %v1012 = vpop.f32.mrf.mxu0
  %v1013 = vadd.f32 %v946, %v1012
  %1014 = vdwg.mxu0
  %v1015 = vadd.f32 %v1006, %v839
  %v1016 = vadd.f32 %v1008, %v840
  %v1017 = vadd.f32 %v1011, %v841
  %v1018 = vadd.f32 %v1013, %v842
  %v1019 = vld [vmem:[%s15] sm:$0x1]
  %v1020 = vld [vmem:[%s16] sm:$0x1]
  %v1021 = vsel %vm95, %v1015, 0.0
  %1022 = vadd.xlane.f32.xlu0 %v1021
  %v1023 = vpop.xlane.xlu0 %1022
  %v1024 = vsel %vm95, %v1016, 0.0
  %1025 = vadd.xlane.f32.xlu0 %v1024
  %v1026 = vpop.xlane.xlu0 %1025
  %v1027 = vsel %vm95, %v1017, 0.0
  %1028 = vadd.xlane.f32.xlu0 %v1027
  %v1029 = vpop.xlane.xlu0 %1028
  %v1030 = vsel %vm95, %v1018, 0.0
  %1031 = vadd.xlane.f32.xlu0 %v1030
  %v1032 = vpop.xlane.xlu0 %1031
  %v1033 = vmul.f32 %v1023, 0.03125
  %v1034 = vmul.f32 %v1026, 0.03125
  %v1035 = vmul.f32 %v1029, 0.03125
  %v1036 = vmul.f32 %v1032, 0.03125
  %v1037 = vsub.f32 %v1015, %v1033
  %v1038 = vsub.f32 %v1016, %v1034
  %v1039 = vsub.f32 %v1017, %v1035
  %v1040 = vsub.f32 %v1018, %v1036
  %v1041 = vmul.f32 %v1037, %v1037
  %v1042 = vmul.f32 %v1038, %v1038
  %v1043 = vmul.f32 %v1039, %v1039
  %v1044 = vmul.f32 %v1040, %v1040
  %v1045 = vsel %vm95, %v1041, 0.0
  %1046 = vadd.xlane.f32.xlu0 %v1045
  %v1047 = vpop.xlane.xlu0 %1046
  %v1048 = vsel %vm95, %v1042, 0.0
  %1049 = vadd.xlane.f32.xlu0 %v1048
  %v1050 = vpop.xlane.xlu0 %1049
  %v1051 = vsel %vm95, %v1043, 0.0
  %1052 = vadd.xlane.f32.xlu0 %v1051
  %v1053 = vpop.xlane.xlu0 %1052
  %v1054 = vsel %vm95, %v1044, 0.0
  %1055 = vadd.xlane.f32.xlu0 %v1054
  %v1056 = vpop.xlane.xlu0 %1055
  %v1057 = vmul.f32 %v1047, 0.03125
  %v1058 = vmul.f32 %v1050, 0.03125
  %v1059 = vmul.f32 %v1053, 0.03125
  %v1060 = vmul.f32 %v1056, 0.03125
  %v1061 = vadd.f32 %v1057, 1e-12
  %v1062 = vadd.f32 %v1058, 1e-12
  %v1063 = vadd.f32 %v1059, 1e-12
  %v1064 = vadd.f32 %v1060, 1e-12
  %v1065 = vrsqrt.pop %v1061
  %v1066 = vmul.f32 %v1065, %v1061
  %v1067 = vmul.f32 %v1066, %v1065
  %v1068 = vmul.f32 0.5, %v1067
  %v1069 = vsub.f32 1.5, %v1068
  %v1070 = vmul.f32 %v1065, %v1069
  %vm1071 = vweird.f32 %v1061
  %vm1072 = vweird.f32 %v1065
  %vm1073 = vmor %vm1071, %vm1072
  %v1074 = vsel %vm1073, %v1065, %v1070
  %v1075 = vrsqrt.pop %v1062
  %v1076 = vmul.f32 %v1075, %v1062
  %v1077 = vmul.f32 %v1076, %v1075
  %v1078 = vmul.f32 0.5, %v1077
  %v1079 = vsub.f32 1.5, %v1078
  %v1080 = vmul.f32 %v1075, %v1079
  %vm1081 = vweird.f32 %v1062
  %vm1082 = vweird.f32 %v1075
  %vm1083 = vmor %vm1081, %vm1082
  %v1084 = vsel %vm1083, %v1075, %v1080
  %v1085 = vrsqrt.pop %v1063
  %v1086 = vmul.f32 %v1085, %v1063
  %v1087 = vmul.f32 %v1086, %v1085
  %v1088 = vmul.f32 0.5, %v1087
  %v1089 = vsub.f32 1.5, %v1088
  %v1090 = vmul.f32 %v1085, %v1089
  %vm1091 = vweird.f32 %v1063
  %vm1092 = vweird.f32 %v1085
  %vm1093 = vmor %vm1091, %vm1092
  %v1094 = vsel %vm1093, %v1085, %v1090
  %v1095 = vrsqrt.pop %v1064
  %v1096 = vmul.f32 %v1095, %v1064
  %v1097 = vmul.f32 %v1096, %v1095
  %v1098 = vmul.f32 0.5, %v1097
  %v1099 = vsub.f32 1.5, %v1098
  %v1100 = vmul.f32 %v1095, %v1099
  %vm1101 = vweird.f32 %v1064
  %vm1102 = vweird.f32 %v1095
  %vm1103 = vmor %vm1101, %vm1102
  %v1104 = vsel %vm1103, %v1095, %v1100
  %v1105 = vmul.f32 %v1037, %v1074
  %v1106 = vmul.f32 %v1038, %v1084
  %v1107 = vmul.f32 %v1039, %v1094
  %v1108 = vmul.f32 %v1040, %v1104
  %v1110 = vperm.slane %v1019, 0
  %v1112 = vmul.f32 %v1105, %v1110
  %v1113 = vmul.f32 %v1106, %v1110
  %v1114 = vmul.f32 %v1107, %v1110
  %v1115 = vmul.f32 %v1108, %v1110
  %v1117 = vperm.slane %v1020, 0
  %v1119 = vadd.f32 %v1112, %v1117
  %v1120 = vadd.f32 %v1113, %v1117
  %v1121 = vadd.f32 %v1114, %v1117
  %v1122 = vadd.f32 %v1115, %v1117
  %v1123 = vpack.c.bf16 %v1120, %v1119
  %v1124 = vpack.c.bf16 %v1122, %v1121
  %s1125 = scalar_lea.vmem %s5, 16
  %v1126 = vld [vmem:[%s1125] sm:$0xf]
  %v1127 = vld [vmem:[%s1125 + $0x4] sm:$0xf]
  %v1128 = vld [vmem:[%s1125 + $0x8] sm:$0xf]
  %v1129 = vld [vmem:[%s1125 + $0xc] sm:$0xf]
  %s1130 = scalar_lea.vmem %s6, 1
  %v1131 = vld [vmem:[%s1130] sm:$0x1]
  %v1133 = vperm.slane %v1131, 0
  %v1139 = vunpack.c.l.b16 %v1126
  %v1140 = vunpack.c.l.b16 %v1127
  %v1141 = vunpack.c.l.b16 %v1128
  %v1142 = vunpack.c.l.b16 %v1129
  %v1143 = vpack.c.b16 %v1140, %v1139
  %v1144 = vpack.c.b16 %v1142, %v1141
  %v1148 = vsel %vm95, %v1123, 0
  %v1151 = vsel %vm95, %v1124, 0
  %1153 = vmatpush.bf16.msra.mxu0 0
  %1154 = vmatpush.bf16.msra.mxu0 0
  %1155 = vmatpush.bf16.msra.mxu0 0
  %1156 = vmatpush.bf16.msra.mxu0 0
  %1157 = vmatpush.bf16.msra.mxu0 0
  %1158 = vmatpush.bf16.msra.mxu0 0
  %1159 = vmatpush.bf16.msra.mxu0 %v1144
  %1160 = vmatpush.bf16.msra.mxu0 %v1143
  %1161 = vmatmul.bf16.gmra.mxu0 %v1148
  %v1162 = vpop.f32.mrf.mxu0
  %v1163 = vadd.f32 %v1133, %v1162
  %v1164 = vpop.f32.mrf.mxu0
  %v1165 = vadd.f32 %v1133, %v1164
  %1166 = vmatmul.bf16.gmra.mxu0 %v1151
  %v1167 = vpop.f32.mrf.mxu0
  %v1168 = vadd.f32 %v1133, %v1167
  %v1169 = vpop.f32.mrf.mxu0
  %v1170 = vadd.f32 %v1133, %v1169
  %1171 = vdwg.mxu0
  %v1172 = vpack.c.bf16 %v1163, %v1163
  %v1173 = vpack.c.bf16 %v1165, %v1165
  %v1174 = vpack.c.bf16 %v1168, %v1168
  %v1175 = vpack.c.bf16 %v1170, %v1170
  %v1178 = vunpack.c.l.b16 %v1172
  %v1179 = vunpack.c.l.b16 %v1173
  %v1180 = vpack.c.b16 %v1179, %v1178
  %1181 = vrot.lane.b32.xlu0 %v1180, 96
  %v1182 = vpop.permute.xlu0 %1181
  %v1184 = vsel %vm256, %v1180, 0
  %v1187 = vsel %vm256, %v1182, 0
  %1189 = vmatpush.bf16.xpose.msra.mxu0 0
  %1190 = vmatpush.bf16.xpose.msra.mxu0 0
  %1191 = vmatpush.bf16.xpose.msra.mxu0 0
  %1192 = vmatpush.bf16.xpose.msra.mxu0 0
  %1193 = vmatpush.bf16.xpose.msra.mxu0 0
  %1194 = vmatpush.bf16.xpose.msra.mxu0 0
  %1195 = vmatpush.bf16.xpose.msra.mxu0 0
  %1196 = vmatpush.bf16.xpose.msra.mxu0 %v1187
  %1197 = vmatmul.bf16.gmra.mxu0 %v1184
  %v1198 = vpop.f32.mrf.mxu0
  %v1199 = vadd.f32 0.0, %v1198
  %v1200 = vpop.f32.mrf.mxu0
  %v1201 = vadd.f32 0.0, %v1200
  %1202 = vdwg.mxu0
  %v1205 = vunpack.c.l.b16 %v1174
  %v1206 = vunpack.c.l.b16 %v1175
  %v1207 = vpack.c.b16 %v1206, %v1205
  %1208 = vrot.lane.b32.xlu0 %v1207, 96
  %v1209 = vpop.permute.xlu0 %1208
  %v1211 = vsel %vm256, %v1207, 0
  %v1214 = vsel %vm256, %v1209, 0
  %1216 = vmatpush.bf16.xpose.msra.mxu0 0
  %1217 = vmatpush.bf16.xpose.msra.mxu0 0
  %1218 = vmatpush.bf16.xpose.msra.mxu0 0
  %1219 = vmatpush.bf16.xpose.msra.mxu0 0
  %1220 = vmatpush.bf16.xpose.msra.mxu0 0
  %1221 = vmatpush.bf16.xpose.msra.mxu0 0
  %1222 = vmatpush.bf16.xpose.msra.mxu0 0
  %1223 = vmatpush.bf16.xpose.msra.mxu0 %v1214
  %1224 = vmatmul.bf16.gmra.mxu0 %v1211
  %v1225 = vpop.f32.mrf.mxu0
  %v1226 = vadd.f32 0.0, %v1225
  %v1227 = vpop.f32.mrf.mxu0
  %v1228 = vadd.f32 0.0, %v1227
  %1229 = vdwg.mxu0
  %v1230 = vmul.f32 %v1199, 0.25
  %v1231 = vmul.f32 %v1201, 0.25
  %v1232 = vmul.f32 %v1226, 0.25
  %v1233 = vmul.f32 %v1228, 0.25
  %v1234 = vadd.f32 %v1230, %v87
  %v1235 = vadd.f32 %v1231, %v87
  %v1236 = vadd.f32 %v1232, %v88
  %v1237 = vadd.f32 %v1233, %v88
  %v1238 = vsel %vm256, %v1234, -inf
  %1239 = vmax.xlane.f32.xlu0 %v1238
  %v1240 = vpop.xlane.xlu0 %1239
  %v1241 = vsel %vm256, %v1235, -inf
  %1242 = vmax.xlane.f32.xlu0 %v1241
  %v1243 = vpop.xlane.xlu0 %1242
  %v1244 = vsel %vm256, %v1236, -inf
  %1245 = vmax.xlane.f32.xlu0 %v1244
  %v1246 = vpop.xlane.xlu0 %1245
  %v1247 = vsel %vm256, %v1237, -inf
  %1248 = vmax.xlane.f32.xlu0 %v1247
  %v1249 = vpop.xlane.xlu0 %1248
  %v1250 = vsub.f32 %v1234, %v1240
  %v1251 = vsub.f32 %v1235, %v1243
  %v1252 = vsub.f32 %v1236, %v1246
  %v1253 = vsub.f32 %v1237, %v1249
  %v1254 = vmul.f32 %v1250, 1.442695
  %v1255 = vpow.pop %v1254
  %v1256 = vmul.f32 %v1251, 1.442695
  %v1257 = vpow.pop %v1256
  %v1258 = vmul.f32 %v1252, 1.442695
  %v1259 = vpow.pop %v1258
  %v1260 = vmul.f32 %v1253, 1.442695
  %v1261 = vpow.pop %v1260
  %v1262 = vsel %vm256, %v1255, 0.0
  %1263 = vadd.xlane.f32.xlu0 %v1262
  %v1264 = vpop.xlane.xlu0 %1263
  %v1265 = vsel %vm256, %v1257, 0.0
  %1266 = vadd.xlane.f32.xlu0 %v1265
  %v1267 = vpop.xlane.xlu0 %1266
  %v1268 = vsel %vm256, %v1259, 0.0
  %1269 = vadd.xlane.f32.xlu0 %v1268
  %v1270 = vpop.xlane.xlu0 %1269
  %v1271 = vsel %vm256, %v1261, 0.0
  %1272 = vadd.xlane.f32.xlu0 %v1271
  %v1273 = vpop.xlane.xlu0 %1272
  %v1274 = vrcp.pop %v1264
  %v1275 = vmul.f32 %v1264, %v1274
  %v1276 = vsub.f32 1.0, %v1275
  %v1277 = vmul.f32 %v1274, %v1276
  %v1278 = vadd.f32 %v1274, %v1277
  %vm1279 = vweird.f32 %v1264
  %vm1280 = vweird.f32 %v1274
  %vm1281 = vmor %vm1279, %vm1280
  %v1282 = vsel %vm1281, %v1274, %v1278
  %v1283 = vand.u32 2147483647, %v1264
  %vm1284 = vcmp.eq.f32.partialorder %v1283, 8.507059e+37
  %v1285 = vand.u32 %v1264, 2147483648
  %v1286 = vor.u32 1.1754944e-38, %v1285
  %v1287 = vsel %vm1284, %v1286, %v1282
  %v1288 = vmul.f32 %v1255, %v1287
  %v1289 = vrcp.pop %v1267
  %v1290 = vmul.f32 %v1267, %v1289
  %v1291 = vsub.f32 1.0, %v1290
  %v1292 = vmul.f32 %v1289, %v1291
  %v1293 = vadd.f32 %v1289, %v1292
  %vm1294 = vweird.f32 %v1267
  %vm1295 = vweird.f32 %v1289
  %vm1296 = vmor %vm1294, %vm1295
  %v1297 = vsel %vm1296, %v1289, %v1293
  %v1298 = vand.u32 2147483647, %v1267
  %vm1299 = vcmp.eq.f32.partialorder %v1298, 8.507059e+37
  %v1300 = vand.u32 %v1267, 2147483648
  %v1301 = vor.u32 1.1754944e-38, %v1300
  %v1302 = vsel %vm1299, %v1301, %v1297
  %v1303 = vmul.f32 %v1257, %v1302
  %v1304 = vrcp.pop %v1270
  %v1305 = vmul.f32 %v1270, %v1304
  %v1306 = vsub.f32 1.0, %v1305
  %v1307 = vmul.f32 %v1304, %v1306
  %v1308 = vadd.f32 %v1304, %v1307
  %vm1309 = vweird.f32 %v1270
  %vm1310 = vweird.f32 %v1304
  %vm1311 = vmor %vm1309, %vm1310
  %v1312 = vsel %vm1311, %v1304, %v1308
  %v1313 = vand.u32 2147483647, %v1270
  %vm1314 = vcmp.eq.f32.partialorder %v1313, 8.507059e+37
  %v1315 = vand.u32 %v1270, 2147483648
  %v1316 = vor.u32 1.1754944e-38, %v1315
  %v1317 = vsel %vm1314, %v1316, %v1312
  %v1318 = vmul.f32 %v1259, %v1317
  %v1319 = vrcp.pop %v1273
  %v1320 = vmul.f32 %v1273, %v1319
  %v1321 = vsub.f32 1.0, %v1320
  %v1322 = vmul.f32 %v1319, %v1321
  %v1323 = vadd.f32 %v1319, %v1322
  %vm1324 = vweird.f32 %v1273
  %vm1325 = vweird.f32 %v1319
  %vm1326 = vmor %vm1324, %vm1325
  %v1327 = vsel %vm1326, %v1319, %v1323
  %v1328 = vand.u32 2147483647, %v1273
  %vm1329 = vcmp.eq.f32.partialorder %v1328, 8.507059e+37
  %v1330 = vand.u32 %v1273, 2147483648
  %v1331 = vor.u32 1.1754944e-38, %v1330
  %v1332 = vsel %vm1329, %v1331, %v1327
  %v1333 = vmul.f32 %v1261, %v1332
  %v1334 = vpack.c.bf16 %v1288, %v1288
  %v1335 = vpack.c.bf16 %v1303, %v1303
  %v1336 = vpack.c.bf16 %v1318, %v1318
  %v1337 = vpack.c.bf16 %v1333, %v1333
  %v1340 = vunpack.c.l.b16 %v1334
  %v1341 = vunpack.c.l.b16 %v1335
  %v1342 = vpack.c.b16 %v1341, %v1340
  %1343 = vrot.lane.b32.xlu0 %v1180, 64
  %v1344 = vpop.permute.xlu0 %1343
  %v1347 = vsel %vm256, %v1342, 0
  %1349 = vmatpush.bf16.msra.mxu0 0
  %1350 = vmatpush.bf16.msra.mxu0 0
  %1351 = vmatpush.bf16.msra.mxu0 0
  %1352 = vmatpush.bf16.msra.mxu0 0
  %1353 = vmatpush.bf16.msra.mxu0 0
  %1354 = vmatpush.bf16.msra.mxu0 0
  %1355 = vmatpush.bf16.msra.mxu0 0
  %1356 = vmatpush.bf16.msra.mxu0 %v1344
  %1357 = vmatmul.bf16.gmra.mxu0 %v1347
  %v1358 = vpop.f32.mrf.mxu0
  %v1359 = vadd.f32 0.0, %v1358
  %v1360 = vpop.f32.mrf.mxu0
  %v1361 = vadd.f32 0.0, %v1360
  %1362 = vdwg.mxu0
  %v1365 = vunpack.c.l.b16 %v1336
  %v1366 = vunpack.c.l.b16 %v1337
  %v1367 = vpack.c.b16 %v1366, %v1365
  %1368 = vrot.lane.b32.xlu0 %v1207, 64
  %v1369 = vpop.permute.xlu0 %1368
  %v1372 = vsel %vm256, %v1367, 0
  %1374 = vmatpush.bf16.msra.mxu0 0
  %1375 = vmatpush.bf16.msra.mxu0 0
  %1376 = vmatpush.bf16.msra.mxu0 0
  %1377 = vmatpush.bf16.msra.mxu0 0
  %1378 = vmatpush.bf16.msra.mxu0 0
  %1379 = vmatpush.bf16.msra.mxu0 0
  %1380 = vmatpush.bf16.msra.mxu0 0
  %1381 = vmatpush.bf16.msra.mxu0 %v1369
  %1382 = vmatmul.bf16.gmra.mxu0 %v1372
  %v1383 = vpop.f32.mrf.mxu0
  %v1384 = vadd.f32 0.0, %v1383
  %v1385 = vpop.f32.mrf.mxu0
  %v1386 = vadd.f32 0.0, %v1385
  %1387 = vdwg.mxu0
  %1388 = vrot.lane.b32.xlu0 %v1180, 112
  %v1389 = vpop.permute.xlu0 %1388
  %1390 = vrot.lane.b32.xlu0 %v1180, 80
  %v1391 = vpop.permute.xlu0 %1390
  %v1393 = vsel %vm256, %v1389, 0
  %v1396 = vsel %vm256, %v1391, 0
  %1398 = vmatpush.bf16.xpose.msra.mxu0 0
  %1399 = vmatpush.bf16.xpose.msra.mxu0 0
  %1400 = vmatpush.bf16.xpose.msra.mxu0 0
  %1401 = vmatpush.bf16.xpose.msra.mxu0 0
  %1402 = vmatpush.bf16.xpose.msra.mxu0 0
  %1403 = vmatpush.bf16.xpose.msra.mxu0 0
  %1404 = vmatpush.bf16.xpose.msra.mxu0 0
  %1405 = vmatpush.bf16.xpose.msra.mxu0 %v1396
  %1406 = vmatmul.bf16.gmra.mxu0 %v1393
  %v1407 = vpop.f32.mrf.mxu0
  %v1408 = vadd.f32 0.0, %v1407
  %v1409 = vpop.f32.mrf.mxu0
  %v1410 = vadd.f32 0.0, %v1409
  %1411 = vdwg.mxu0
  %1412 = vrot.lane.b32.xlu0 %v1207, 112
  %v1413 = vpop.permute.xlu0 %1412
  %1414 = vrot.lane.b32.xlu0 %v1207, 80
  %v1415 = vpop.permute.xlu0 %1414
  %v1417 = vsel %vm256, %v1413, 0
  %v1420 = vsel %vm256, %v1415, 0
  %1422 = vmatpush.bf16.xpose.msra.mxu0 0
  %1423 = vmatpush.bf16.xpose.msra.mxu0 0
  %1424 = vmatpush.bf16.xpose.msra.mxu0 0
  %1425 = vmatpush.bf16.xpose.msra.mxu0 0
  %1426 = vmatpush.bf16.xpose.msra.mxu0 0
  %1427 = vmatpush.bf16.xpose.msra.mxu0 0
  %1428 = vmatpush.bf16.xpose.msra.mxu0 0
  %1429 = vmatpush.bf16.xpose.msra.mxu0 %v1420
  %1430 = vmatmul.bf16.gmra.mxu0 %v1417
  %v1431 = vpop.f32.mrf.mxu0
  %v1432 = vadd.f32 0.0, %v1431
  %v1433 = vpop.f32.mrf.mxu0
  %v1434 = vadd.f32 0.0, %v1433
  %1435 = vdwg.mxu0
  %v1436 = vmul.f32 %v1408, 0.25
  %v1437 = vmul.f32 %v1410, 0.25
  %v1438 = vmul.f32 %v1432, 0.25
  %v1439 = vmul.f32 %v1434, 0.25
  %v1440 = vadd.f32 %v1436, %v87
  %v1441 = vadd.f32 %v1437, %v87
  %v1442 = vadd.f32 %v1438, %v88
  %v1443 = vadd.f32 %v1439, %v88
  %v1444 = vsel %vm256, %v1440, -inf
  %1445 = vmax.xlane.f32.xlu0 %v1444
  %v1446 = vpop.xlane.xlu0 %1445
  %v1447 = vsel %vm256, %v1441, -inf
  %1448 = vmax.xlane.f32.xlu0 %v1447
  %v1449 = vpop.xlane.xlu0 %1448
  %v1450 = vsel %vm256, %v1442, -inf
  %1451 = vmax.xlane.f32.xlu0 %v1450
  %v1452 = vpop.xlane.xlu0 %1451
  %v1453 = vsel %vm256, %v1443, -inf
  %1454 = vmax.xlane.f32.xlu0 %v1453
  %v1455 = vpop.xlane.xlu0 %1454
  %v1456 = vsub.f32 %v1440, %v1446
  %v1457 = vsub.f32 %v1441, %v1449
  %v1458 = vsub.f32 %v1442, %v1452
  %v1459 = vsub.f32 %v1443, %v1455
  %v1460 = vmul.f32 %v1456, 1.442695
  %v1461 = vpow.pop %v1460
  %v1462 = vmul.f32 %v1457, 1.442695
  %v1463 = vpow.pop %v1462
  %v1464 = vmul.f32 %v1458, 1.442695
  %v1465 = vpow.pop %v1464
  %v1466 = vmul.f32 %v1459, 1.442695
  %v1467 = vpow.pop %v1466
  %v1468 = vsel %vm256, %v1461, 0.0
  %1469 = vadd.xlane.f32.xlu0 %v1468
  %v1470 = vpop.xlane.xlu0 %1469
  %v1471 = vsel %vm256, %v1463, 0.0
  %1472 = vadd.xlane.f32.xlu0 %v1471
  %v1473 = vpop.xlane.xlu0 %1472
  %v1474 = vsel %vm256, %v1465, 0.0
  %1475 = vadd.xlane.f32.xlu0 %v1474
  %v1476 = vpop.xlane.xlu0 %1475
  %v1477 = vsel %vm256, %v1467, 0.0
  %1478 = vadd.xlane.f32.xlu0 %v1477
  %v1479 = vpop.xlane.xlu0 %1478
  %v1480 = vrcp.pop %v1470
  %v1481 = vmul.f32 %v1470, %v1480
  %v1482 = vsub.f32 1.0, %v1481
  %v1483 = vmul.f32 %v1480, %v1482
  %v1484 = vadd.f32 %v1480, %v1483
  %vm1485 = vweird.f32 %v1470
  %vm1486 = vweird.f32 %v1480
  %vm1487 = vmor %vm1485, %vm1486
  %v1488 = vsel %vm1487, %v1480, %v1484
  %v1489 = vand.u32 2147483647, %v1470
  %vm1490 = vcmp.eq.f32.partialorder %v1489, 8.507059e+37
  %v1491 = vand.u32 %v1470, 2147483648
  %v1492 = vor.u32 1.1754944e-38, %v1491
  %v1493 = vsel %vm1490, %v1492, %v1488
  %v1494 = vmul.f32 %v1461, %v1493
  %v1495 = vrcp.pop %v1473
  %v1496 = vmul.f32 %v1473, %v1495
  %v1497 = vsub.f32 1.0, %v1496
  %v1498 = vmul.f32 %v1495, %v1497
  %v1499 = vadd.f32 %v1495, %v1498
  %vm1500 = vweird.f32 %v1473
  %vm1501 = vweird.f32 %v1495
  %vm1502 = vmor %vm1500, %vm1501
  %v1503 = vsel %vm1502, %v1495, %v1499
  %v1504 = vand.u32 2147483647, %v1473
  %vm1505 = vcmp.eq.f32.partialorder %v1504, 8.507059e+37
  %v1506 = vand.u32 %v1473, 2147483648
  %v1507 = vor.u32 1.1754944e-38, %v1506
  %v1508 = vsel %vm1505, %v1507, %v1503
  %v1509 = vmul.f32 %v1463, %v1508
  %v1510 = vrcp.pop %v1476
  %v1511 = vmul.f32 %v1476, %v1510
  %v1512 = vsub.f32 1.0, %v1511
  %v1513 = vmul.f32 %v1510, %v1512
  %v1514 = vadd.f32 %v1510, %v1513
  %vm1515 = vweird.f32 %v1476
  %vm1516 = vweird.f32 %v1510
  %vm1517 = vmor %vm1515, %vm1516
  %v1518 = vsel %vm1517, %v1510, %v1514
  %v1519 = vand.u32 2147483647, %v1476
  %vm1520 = vcmp.eq.f32.partialorder %v1519, 8.507059e+37
  %v1521 = vand.u32 %v1476, 2147483648
  %v1522 = vor.u32 1.1754944e-38, %v1521
  %v1523 = vsel %vm1520, %v1522, %v1518
  %v1524 = vmul.f32 %v1465, %v1523
  %v1525 = vrcp.pop %v1479
  %v1526 = vmul.f32 %v1479, %v1525
  %v1527 = vsub.f32 1.0, %v1526
  %v1528 = vmul.f32 %v1525, %v1527
  %v1529 = vadd.f32 %v1525, %v1528
  %vm1530 = vweird.f32 %v1479
  %vm1531 = vweird.f32 %v1525
  %vm1532 = vmor %vm1530, %vm1531
  %v1533 = vsel %vm1532, %v1525, %v1529
  %v1534 = vand.u32 2147483647, %v1479
  %vm1535 = vcmp.eq.f32.partialorder %v1534, 8.507059e+37
  %v1536 = vand.u32 %v1479, 2147483648
  %v1537 = vor.u32 1.1754944e-38, %v1536
  %v1538 = vsel %vm1535, %v1537, %v1533
  %v1539 = vmul.f32 %v1467, %v1538
  %v1540 = vpack.c.bf16 %v1494, %v1494
  %v1541 = vpack.c.bf16 %v1509, %v1509
  %v1542 = vpack.c.bf16 %v1524, %v1524
  %v1543 = vpack.c.bf16 %v1539, %v1539
  %v1546 = vunpack.c.l.b16 %v1540
  %v1547 = vunpack.c.l.b16 %v1541
  %v1548 = vpack.c.b16 %v1547, %v1546
  %1549 = vrot.lane.b32.xlu0 %v1180, 48
  %v1550 = vpop.permute.xlu0 %1549
  %v1553 = vsel %vm256, %v1548, 0
  %1555 = vmatpush.bf16.msra.mxu0 0
  %1556 = vmatpush.bf16.msra.mxu0 0
  %1557 = vmatpush.bf16.msra.mxu0 0
  %1558 = vmatpush.bf16.msra.mxu0 0
  %1559 = vmatpush.bf16.msra.mxu0 0
  %1560 = vmatpush.bf16.msra.mxu0 0
  %1561 = vmatpush.bf16.msra.mxu0 0
  %1562 = vmatpush.bf16.msra.mxu0 %v1550
  %1563 = vmatmul.bf16.gmra.mxu0 %v1553
  %v1564 = vpop.f32.mrf.mxu0
  %v1565 = vadd.f32 0.0, %v1564
  %v1566 = vpop.f32.mrf.mxu0
  %v1567 = vadd.f32 0.0, %v1566
  %1568 = vdwg.mxu0
  %v1571 = vunpack.c.l.b16 %v1542
  %v1572 = vunpack.c.l.b16 %v1543
  %v1573 = vpack.c.b16 %v1572, %v1571
  %1574 = vrot.lane.b32.xlu0 %v1207, 48
  %v1575 = vpop.permute.xlu0 %1574
  %v1578 = vsel %vm256, %v1573, 0
  %1580 = vmatpush.bf16.msra.mxu0 0
  %1581 = vmatpush.bf16.msra.mxu0 0
  %1582 = vmatpush.bf16.msra.mxu0 0
  %1583 = vmatpush.bf16.msra.mxu0 0
  %1584 = vmatpush.bf16.msra.mxu0 0
  %1585 = vmatpush.bf16.msra.mxu0 0
  %1586 = vmatpush.bf16.msra.mxu0 0
  %1587 = vmatpush.bf16.msra.mxu0 %v1575
  %1588 = vmatmul.bf16.gmra.mxu0 %v1578
  %v1589 = vpop.f32.mrf.mxu0
  %v1590 = vadd.f32 0.0, %v1589
  %v1591 = vpop.f32.mrf.mxu0
  %v1592 = vadd.f32 0.0, %v1591
  %1593 = vdwg.mxu0
  %1598 = vrot.lane.b32.xlu0 %v1565, 16
  %v1599 = vpop.permute.xlu0 %1598
  %1600 = vrot.lane.b32.xlu0 %v1567, 16
  %v1601 = vpop.permute.xlu0 %1600
  %1602 = vrot.lane.b32.xlu0 %v1590, 16
  %v1603 = vpop.permute.xlu0 %1602
  %1604 = vrot.lane.b32.xlu0 %v1592, 16
  %v1605 = vpop.permute.xlu0 %1604
  %v1610 = vsel %vm256, %v1359, %v1599
  %v1611 = vsel %vm256, %v1361, %v1601
  %v1612 = vsel %vm256, %v1384, %v1603
  %v1613 = vsel %vm256, %v1386, %v1605
  %v1614 = vpack.c.bf16 %v1611, %v1610
  %v1615 = vpack.c.bf16 %v1613, %v1612
  %s1616 = scalar_lea.vmem %s7, 16
  %v1617 = vld [vmem:[%s1616] sm:$0xf]
  %v1618 = vld [vmem:[%s1616 + $0x4] sm:$0xf]
  %v1619 = vld [vmem:[%s1616 + $0x8] sm:$0xf]
  %v1620 = vld [vmem:[%s1616 + $0xc] sm:$0xf]
  %s1621 = scalar_lea.vmem %s8, 1
  %v1622 = vld [vmem:[%s1621] sm:$0x1]
  %v1624 = vperm.slane %v1622, 0
  %v1630 = vunpack.c.l.b16 %v1617
  %v1631 = vunpack.c.l.b16 %v1618
  %v1632 = vunpack.c.l.b16 %v1619
  %v1633 = vunpack.c.l.b16 %v1620
  %v1634 = vpack.c.b16 %v1631, %v1630
  %v1635 = vpack.c.b16 %v1633, %v1632
  %v1639 = vsel %vm95, %v1614, 0
  %v1642 = vsel %vm95, %v1615, 0
  %1644 = vmatpush.bf16.msra.mxu0 0
  %1645 = vmatpush.bf16.msra.mxu0 0
  %1646 = vmatpush.bf16.msra.mxu0 0
  %1647 = vmatpush.bf16.msra.mxu0 0
  %1648 = vmatpush.bf16.msra.mxu0 0
  %1649 = vmatpush.bf16.msra.mxu0 0
  %1650 = vmatpush.bf16.msra.mxu0 %v1635
  %1651 = vmatpush.bf16.msra.mxu0 %v1634
  %1652 = vmatmul.bf16.gmra.mxu0 %v1639
  %v1653 = vpop.f32.mrf.mxu0
  %v1654 = vadd.f32 %v1624, %v1653
  %v1655 = vpop.f32.mrf.mxu0
  %v1656 = vadd.f32 %v1624, %v1655
  %1657 = vmatmul.bf16.gmra.mxu0 %v1642
  %v1658 = vpop.f32.mrf.mxu0
  %v1659 = vadd.f32 %v1624, %v1658
  %v1660 = vpop.f32.mrf.mxu0
  %v1661 = vadd.f32 %v1624, %v1660
  %1662 = vdwg.mxu0
  %v1663 = vadd.f32 %v1654, %v1119
  %v1664 = vadd.f32 %v1656, %v1120
  %v1665 = vadd.f32 %v1659, %v1121
  %v1666 = vadd.f32 %v1661, %v1122
  %s1667 = scalar_lea.vmem %s9, 1
  %v1668 = vld [vmem:[%s1667] sm:$0x1]
  %s1669 = scalar_lea.vmem %s10, 1
  %v1670 = vld [vmem:[%s1669] sm:$0x1]
  %v1671 = vsel %vm95, %v1663, 0.0
  %1672 = vadd.xlane.f32.xlu0 %v1671
  %v1673 = vpop.xlane.xlu0 %1672
  %v1674 = vsel %vm95, %v1664, 0.0
  %1675 = vadd.xlane.f32.xlu0 %v1674
  %v1676 = vpop.xlane.xlu0 %1675
  %v1677 = vsel %vm95, %v1665, 0.0
  %1678 = vadd.xlane.f32.xlu0 %v1677
  %v1679 = vpop.xlane.xlu0 %1678
  %v1680 = vsel %vm95, %v1666, 0.0
  %1681 = vadd.xlane.f32.xlu0 %v1680
  %v1682 = vpop.xlane.xlu0 %1681
  %v1683 = vmul.f32 %v1673, 0.03125
  %v1684 = vmul.f32 %v1676, 0.03125
  %v1685 = vmul.f32 %v1679, 0.03125
  %v1686 = vmul.f32 %v1682, 0.03125
  %v1687 = vsub.f32 %v1663, %v1683
  %v1688 = vsub.f32 %v1664, %v1684
  %v1689 = vsub.f32 %v1665, %v1685
  %v1690 = vsub.f32 %v1666, %v1686
  %v1691 = vmul.f32 %v1687, %v1687
  %v1692 = vmul.f32 %v1688, %v1688
  %v1693 = vmul.f32 %v1689, %v1689
  %v1694 = vmul.f32 %v1690, %v1690
  %v1695 = vsel %vm95, %v1691, 0.0
  %1696 = vadd.xlane.f32.xlu0 %v1695
  %v1697 = vpop.xlane.xlu0 %1696
  %v1698 = vsel %vm95, %v1692, 0.0
  %1699 = vadd.xlane.f32.xlu0 %v1698
  %v1700 = vpop.xlane.xlu0 %1699
  %v1701 = vsel %vm95, %v1693, 0.0
  %1702 = vadd.xlane.f32.xlu0 %v1701
  %v1703 = vpop.xlane.xlu0 %1702
  %v1704 = vsel %vm95, %v1694, 0.0
  %1705 = vadd.xlane.f32.xlu0 %v1704
  %v1706 = vpop.xlane.xlu0 %1705
  %v1707 = vmul.f32 %v1697, 0.03125
  %v1708 = vmul.f32 %v1700, 0.03125
  %v1709 = vmul.f32 %v1703, 0.03125
  %v1710 = vmul.f32 %v1706, 0.03125
  %v1711 = vadd.f32 %v1707, 1e-12
  %v1712 = vadd.f32 %v1708, 1e-12
  %v1713 = vadd.f32 %v1709, 1e-12
  %v1714 = vadd.f32 %v1710, 1e-12
  %v1715 = vrsqrt.pop %v1711
  %v1716 = vmul.f32 %v1715, %v1711
  %v1717 = vmul.f32 %v1716, %v1715
  %v1718 = vmul.f32 0.5, %v1717
  %v1719 = vsub.f32 1.5, %v1718
  %v1720 = vmul.f32 %v1715, %v1719
  %vm1721 = vweird.f32 %v1711
  %vm1722 = vweird.f32 %v1715
  %vm1723 = vmor %vm1721, %vm1722
  %v1724 = vsel %vm1723, %v1715, %v1720
  %v1725 = vrsqrt.pop %v1712
  %v1726 = vmul.f32 %v1725, %v1712
  %v1727 = vmul.f32 %v1726, %v1725
  %v1728 = vmul.f32 0.5, %v1727
  %v1729 = vsub.f32 1.5, %v1728
  %v1730 = vmul.f32 %v1725, %v1729
  %vm1731 = vweird.f32 %v1712
  %vm1732 = vweird.f32 %v1725
  %vm1733 = vmor %vm1731, %vm1732
  %v1734 = vsel %vm1733, %v1725, %v1730
  %v1735 = vrsqrt.pop %v1713
  %v1736 = vmul.f32 %v1735, %v1713
  %v1737 = vmul.f32 %v1736, %v1735
  %v1738 = vmul.f32 0.5, %v1737
  %v1739 = vsub.f32 1.5, %v1738
  %v1740 = vmul.f32 %v1735, %v1739
  %vm1741 = vweird.f32 %v1713
  %vm1742 = vweird.f32 %v1735
  %vm1743 = vmor %vm1741, %vm1742
  %v1744 = vsel %vm1743, %v1735, %v1740
  %v1745 = vrsqrt.pop %v1714
  %v1746 = vmul.f32 %v1745, %v1714
  %v1747 = vmul.f32 %v1746, %v1745
  %v1748 = vmul.f32 0.5, %v1747
  %v1749 = vsub.f32 1.5, %v1748
  %v1750 = vmul.f32 %v1745, %v1749
  %vm1751 = vweird.f32 %v1714
  %vm1752 = vweird.f32 %v1745
  %vm1753 = vmor %vm1751, %vm1752
  %v1754 = vsel %vm1753, %v1745, %v1750
  %v1755 = vmul.f32 %v1687, %v1724
  %v1756 = vmul.f32 %v1688, %v1734
  %v1757 = vmul.f32 %v1689, %v1744
  %v1758 = vmul.f32 %v1690, %v1754
  %v1760 = vperm.slane %v1668, 0
  %v1762 = vmul.f32 %v1755, %v1760
  %v1763 = vmul.f32 %v1756, %v1760
  %v1764 = vmul.f32 %v1757, %v1760
  %v1765 = vmul.f32 %v1758, %v1760
  %v1767 = vperm.slane %v1670, 0
  %v1769 = vadd.f32 %v1762, %v1767
  %v1770 = vadd.f32 %v1763, %v1767
  %v1771 = vadd.f32 %v1764, %v1767
  %v1772 = vadd.f32 %v1765, %v1767
  %v1773 = vpack.c.bf16 %v1770, %v1769
  %v1774 = vpack.c.bf16 %v1772, %v1771
  %s1775 = scalar_lea.vmem %s11, 16
  %v1776 = vld [vmem:[%s1775] sm:$0xf]
  %v1777 = vld [vmem:[%s1775 + $0x4] sm:$0xf]
  %v1778 = vld [vmem:[%s1775 + $0x8] sm:$0xf]
  %v1779 = vld [vmem:[%s1775 + $0xc] sm:$0xf]
  %s1780 = scalar_lea.vmem %s12, 1
  %v1781 = vld [vmem:[%s1780] sm:$0x1]
  %v1783 = vperm.slane %v1781, 0
  %v1789 = vunpack.c.l.b16 %v1776
  %v1790 = vunpack.c.l.b16 %v1777
  %v1791 = vunpack.c.l.b16 %v1778
  %v1792 = vunpack.c.l.b16 %v1779
  %v1793 = vpack.c.b16 %v1790, %v1789
  %v1794 = vpack.c.b16 %v1792, %v1791
  %v1798 = vsel %vm95, %v1773, 0
  %v1801 = vsel %vm95, %v1774, 0
  %1803 = vmatpush.bf16.msra.mxu0 0
  %1804 = vmatpush.bf16.msra.mxu0 0
  %1805 = vmatpush.bf16.msra.mxu0 0
  %1806 = vmatpush.bf16.msra.mxu0 0
  %1807 = vmatpush.bf16.msra.mxu0 0
  %1808 = vmatpush.bf16.msra.mxu0 0
  %1809 = vmatpush.bf16.msra.mxu0 %v1794
  %1810 = vmatpush.bf16.msra.mxu0 %v1793
  %1811 = vmatmul.bf16.gmra.mxu0 %v1798
  %v1812 = vpop.f32.mrf.mxu0
  %v1813 = vadd.f32 %v1783, %v1812
  %v1814 = vpop.f32.mrf.mxu0
  %v1815 = vadd.f32 %v1783, %v1814
  %1816 = vmatmul.bf16.gmra.mxu0 %v1801
  %v1817 = vpop.f32.mrf.mxu0
  %v1818 = vadd.f32 %v1783, %v1817
  %v1819 = vpop.f32.mrf.mxu0
  %v1820 = vadd.f32 %v1783, %v1819
  %1821 = vdwg.mxu0
  %v1822 = vmul.f32 %v1813, 0.5
  %v1823 = vmul.f32 %v1815, 0.5
  %v1824 = vmul.f32 %v1818, 0.5
  %v1825 = vmul.f32 %v1820, 0.5
  %v1826 = vmul.f32 %v1813, 0.044715
  %v1827 = vmul.f32 %v1815, 0.044715
  %v1828 = vmul.f32 %v1818, 0.044715
  %v1829 = vmul.f32 %v1820, 0.044715
  %v1830 = vmul.f32 %v1826, %v1813
  %v1831 = vmul.f32 %v1827, %v1815
  %v1832 = vmul.f32 %v1828, %v1818
  %v1833 = vmul.f32 %v1829, %v1820
  %v1834 = vmul.f32 %v1830, %v1813
  %v1835 = vmul.f32 %v1831, %v1815
  %v1836 = vmul.f32 %v1832, %v1818
  %v1837 = vmul.f32 %v1833, %v1820
  %v1838 = vadd.f32 %v1813, %v1834
  %v1839 = vadd.f32 %v1815, %v1835
  %v1840 = vadd.f32 %v1818, %v1836
  %v1841 = vadd.f32 %v1820, %v1837
  %v1842 = vmul.f32 %v1838, 0.7978846
  %v1843 = vmul.f32 %v1839, 0.7978846
  %v1844 = vmul.f32 %v1840, 0.7978846
  %v1845 = vmul.f32 %v1841, 0.7978846
  %v1846 = vtanh.pop %v1842
  %v1847 = vtanh.pop %v1843
  %v1848 = vtanh.pop %v1844
  %v1849 = vtanh.pop %v1845
  %v1850 = vadd.f32 %v1846, 1.0
  %v1851 = vadd.f32 %v1847, 1.0
  %v1852 = vadd.f32 %v1848, 1.0
  %v1853 = vadd.f32 %v1849, 1.0
  %v1854 = vmul.f32 %v1822, %v1850
  %v1855 = vmul.f32 %v1823, %v1851
  %v1856 = vmul.f32 %v1824, %v1852
  %v1857 = vmul.f32 %v1825, %v1853
  %v1858 = vpack.c.bf16 %v1855, %v1854
  %v1859 = vpack.c.bf16 %v1857, %v1856
  %s1860 = scalar_lea.vmem %s13, 64
  %v1861 = vld [vmem:[%s1860] sm:$0xf]
  %v1862 = vld [vmem:[%s1860 + $0x4] sm:$0xf]
  %v1863 = vld [vmem:[%s1860 + $0x8] sm:$0xf]
  %v1864 = vld [vmem:[%s1860 + $0xc] sm:$0xf]
  %v1865 = vld [vmem:[%s1860 + $0x10] sm:$0xf]
  %v1866 = vld [vmem:[%s1860 + $0x14] sm:$0xf]
  %v1867 = vld [vmem:[%s1860 + $0x18] sm:$0xf]
  %v1868 = vld [vmem:[%s1860 + $0x1c] sm:$0xf]
  %v1869 = vld [vmem:[%s1860 + $0x20] sm:$0xf]
  %v1870 = vld [vmem:[%s1860 + $0x24] sm:$0xf]
  %v1871 = vld [vmem:[%s1860 + $0x28] sm:$0xf]
  %v1872 = vld [vmem:[%s1860 + $0x2c] sm:$0xf]
  %v1873 = vld [vmem:[%s1860 + $0x30] sm:$0xf]
  %v1874 = vld [vmem:[%s1860 + $0x34] sm:$0xf]
  %v1875 = vld [vmem:[%s1860 + $0x38] sm:$0xf]
  %v1876 = vld [vmem:[%s1860 + $0x3c] sm:$0xf]
  %s1877 = scalar_lea.vmem %s14, 1
  %v1878 = vld [vmem:[%s1877] sm:$0x1]
  %v1880 = vperm.slane %v1878, 0
  %v1898 = vunpack.c.l.b16 %v1861
  %v1899 = vunpack.c.l.b16 %v1862
  %v1900 = vunpack.c.l.b16 %v1863
  %v1901 = vunpack.c.l.b16 %v1864
  %v1902 = vunpack.c.l.b16 %v1865
  %v1903 = vunpack.c.l.b16 %v1866
  %v1904 = vunpack.c.l.b16 %v1867
  %v1905 = vunpack.c.l.b16 %v1868
  %v1906 = vunpack.c.l.b16 %v1869
  %v1907 = vunpack.c.l.b16 %v1870
  %v1908 = vunpack.c.l.b16 %v1871
  %v1909 = vunpack.c.l.b16 %v1872
  %v1910 = vunpack.c.l.b16 %v1873
  %v1911 = vunpack.c.l.b16 %v1874
  %v1912 = vunpack.c.l.b16 %v1875
  %v1913 = vunpack.c.l.b16 %v1876
  %v1914 = vpack.c.b16 %v1899, %v1898
  %v1915 = vpack.c.b16 %v1901, %v1900
  %v1916 = vpack.c.b16 %v1903, %v1902
  %v1917 = vpack.c.b16 %v1905, %v1904
  %v1918 = vpack.c.b16 %v1907, %v1906
  %v1919 = vpack.c.b16 %v1909, %v1908
  %v1920 = vpack.c.b16 %v1911, %v1910
  %v1921 = vpack.c.b16 %v1913, %v1912
  %1930 = vmatpush.bf16.msra.mxu0 %v1921
  %1931 = vmatpush.bf16.msra.mxu0 %v1920
  %1932 = vmatpush.bf16.msra.mxu0 %v1919
  %1933 = vmatpush.bf16.msra.mxu0 %v1918
  %1934 = vmatpush.bf16.msra.mxu0 %v1917
  %1935 = vmatpush.bf16.msra.mxu0 %v1916
  %1936 = vmatpush.bf16.msra.mxu0 %v1915
  %1937 = vmatpush.bf16.msra.mxu0 %v1914
  %1938 = vmatmul.bf16.gmra.mxu0 %v1858
  %v1939 = vpop.f32.mrf.mxu0
  %v1940 = vadd.f32 %v1880, %v1939
  %v1941 = vpop.f32.mrf.mxu0
  %v1942 = vadd.f32 %v1880, %v1941
  %1943 = vmatmul.bf16.gmra.mxu0 %v1859
  %v1944 = vpop.f32.mrf.mxu0
  %v1945 = vadd.f32 %v1880, %v1944
  %v1946 = vpop.f32.mrf.mxu0
  %v1947 = vadd.f32 %v1880, %v1946
  %1948 = vdwg.mxu0
  %v1949 = vadd.f32 %v1940, %v1769
  %v1950 = vadd.f32 %v1942, %v1770
  %v1951 = vadd.f32 %v1945, %v1771
  %v1952 = vadd.f32 %v1947, %v1772
  %s1953 = scalar_lea.vmem %s15, 1
  %v1954 = vld [vmem:[%s1953] sm:$0x1]
  %s1955 = scalar_lea.vmem %s16, 1
  %v1956 = vld [vmem:[%s1955] sm:$0x1]
  %v1957 = vsel %vm95, %v1949, 0.0
  %1958 = vadd.xlane.f32.xlu0 %v1957
  %v1959 = vpop.xlane.xlu0 %1958
  %v1960 = vsel %vm95, %v1950, 0.0
  %1961 = vadd.xlane.f32.xlu0 %v1960
  %v1962 = vpop.xlane.xlu0 %1961
  %v1963 = vsel %vm95, %v1951, 0.0
  %1964 = vadd.xlane.f32.xlu0 %v1963
  %v1965 = vpop.xlane.xlu0 %1964
  %v1966 = vsel %vm95, %v1952, 0.0
  %1967 = vadd.xlane.f32.xlu0 %v1966
  %v1968 = vpop.xlane.xlu0 %1967
  %v1969 = vmul.f32 %v1959, 0.03125
  %v1970 = vmul.f32 %v1962, 0.03125
  %v1971 = vmul.f32 %v1965, 0.03125
  %v1972 = vmul.f32 %v1968, 0.03125
  %v1973 = vsub.f32 %v1949, %v1969
  %v1974 = vsub.f32 %v1950, %v1970
  %v1975 = vsub.f32 %v1951, %v1971
  %v1976 = vsub.f32 %v1952, %v1972
  %v1977 = vmul.f32 %v1973, %v1973
  %v1978 = vmul.f32 %v1974, %v1974
  %v1979 = vmul.f32 %v1975, %v1975
  %v1980 = vmul.f32 %v1976, %v1976
  %v1981 = vsel %vm95, %v1977, 0.0
  %1982 = vadd.xlane.f32.xlu0 %v1981
  %v1983 = vpop.xlane.xlu0 %1982
  %v1984 = vsel %vm95, %v1978, 0.0
  %1985 = vadd.xlane.f32.xlu0 %v1984
  %v1986 = vpop.xlane.xlu0 %1985
  %v1987 = vsel %vm95, %v1979, 0.0
  %1988 = vadd.xlane.f32.xlu0 %v1987
  %v1989 = vpop.xlane.xlu0 %1988
  %v1990 = vsel %vm95, %v1980, 0.0
  %1991 = vadd.xlane.f32.xlu0 %v1990
  %v1992 = vpop.xlane.xlu0 %1991
  %v1993 = vmul.f32 %v1983, 0.03125
  %v1994 = vmul.f32 %v1986, 0.03125
  %v1995 = vmul.f32 %v1989, 0.03125
  %v1996 = vmul.f32 %v1992, 0.03125
  %v1997 = vadd.f32 %v1993, 1e-12
  %v1998 = vadd.f32 %v1994, 1e-12
  %v1999 = vadd.f32 %v1995, 1e-12
  %v2000 = vadd.f32 %v1996, 1e-12
  %v2001 = vrsqrt.pop %v1997
  %v2002 = vmul.f32 %v2001, %v1997
  %v2003 = vmul.f32 %v2002, %v2001
  %v2004 = vmul.f32 0.5, %v2003
  %v2005 = vsub.f32 1.5, %v2004
  %v2006 = vmul.f32 %v2001, %v2005
  %vm2007 = vweird.f32 %v1997
  %vm2008 = vweird.f32 %v2001
  %vm2009 = vmor %vm2007, %vm2008
  %v2010 = vsel %vm2009, %v2001, %v2006
  %v2011 = vrsqrt.pop %v1998
  %v2012 = vmul.f32 %v2011, %v1998
  %v2013 = vmul.f32 %v2012, %v2011
  %v2014 = vmul.f32 0.5, %v2013
  %v2015 = vsub.f32 1.5, %v2014
  %v2016 = vmul.f32 %v2011, %v2015
  %vm2017 = vweird.f32 %v1998
  %vm2018 = vweird.f32 %v2011
  %vm2019 = vmor %vm2017, %vm2018
  %v2020 = vsel %vm2019, %v2011, %v2016
  %v2021 = vrsqrt.pop %v1999
  %v2022 = vmul.f32 %v2021, %v1999
  %v2023 = vmul.f32 %v2022, %v2021
  %v2024 = vmul.f32 0.5, %v2023
  %v2025 = vsub.f32 1.5, %v2024
  %v2026 = vmul.f32 %v2021, %v2025
  %vm2027 = vweird.f32 %v1999
  %vm2028 = vweird.f32 %v2021
  %vm2029 = vmor %vm2027, %vm2028
  %v2030 = vsel %vm2029, %v2021, %v2026
  %v2031 = vrsqrt.pop %v2000
  %v2032 = vmul.f32 %v2031, %v2000
  %v2033 = vmul.f32 %v2032, %v2031
  %v2034 = vmul.f32 0.5, %v2033
  %v2035 = vsub.f32 1.5, %v2034
  %v2036 = vmul.f32 %v2031, %v2035
  %vm2037 = vweird.f32 %v2000
  %vm2038 = vweird.f32 %v2031
  %vm2039 = vmor %vm2037, %vm2038
  %v2040 = vsel %vm2039, %v2031, %v2036
  %v2041 = vmul.f32 %v1973, %v2010
  %v2042 = vmul.f32 %v1974, %v2020
  %v2043 = vmul.f32 %v1975, %v2030
  %v2044 = vmul.f32 %v1976, %v2040
  %v2046 = vperm.slane %v1954, 0
  %v2048 = vmul.f32 %v2041, %v2046
  %v2049 = vmul.f32 %v2042, %v2046
  %v2050 = vmul.f32 %v2043, %v2046
  %v2051 = vmul.f32 %v2044, %v2046
  %v2053 = vperm.slane %v1956, 0
  %v2055 = vadd.f32 %v2048, %v2053
  %v2056 = vadd.f32 %v2049, %v2053
  %v2057 = vadd.f32 %v2050, %v2053
  %v2058 = vadd.f32 %v2051, %v2053
  %v2059 = vld [vmem:[%s0] sm:$0xff]
  %v2060 = vld [vmem:[%s0 + $0x8] sm:$0xff]
  %v2061 = vld [vmem:[%s0 + $0x10] sm:$0xff]
  %v2062 = vld [vmem:[%s0 + $0x18] sm:$0xff]
  %v2063 = vpack.c.bf16 %v2060, %v2059
  %v2064 = vpack.c.bf16 %v2062, %v2061
  %v2065 = vld [vmem:[%s17] sm:$0xf]
  %v2066 = vld [vmem:[%s17 + $0x4] sm:$0xf]
  %v2067 = vld [vmem:[%s17 + $0x8] sm:$0xf]
  %v2068 = vld [vmem:[%s17 + $0xc] sm:$0xf]
  %v2069 = vpack.c.bf16 %v2056, %v2055
  %v2070 = vpack.c.bf16 %v2058, %v2057
  %v2071 = vld [vmem:[%s17 + $0x10] sm:$0xf]
  %v2072 = vld [vmem:[%s17 + $0x14] sm:$0xf]
  %v2073 = vld [vmem:[%s17 + $0x18] sm:$0xf]
  %v2074 = vld [vmem:[%s17 + $0x1c] sm:$0xf]
  %v2079 = vunpack.c.l.b16 %v2071
  %v2080 = vunpack.c.l.b16 %v2072
  %v2081 = vunpack.c.l.b16 %v2073
  %v2082 = vunpack.c.l.b16 %v2074
  %v2083 = vpack.c.b16 %v2080, %v2079
  %v2084 = vpack.c.b16 %v2082, %v2081
  %v2088 = vsel %vm95, %v2069, 0
  %v2091 = vsel %vm95, %v2070, 0
  %2093 = vmatpush.bf16.msra.mxu0 0
  %2094 = vmatpush.bf16.msra.mxu0 0
  %2095 = vmatpush.bf16.msra.mxu0 0
  %2096 = vmatpush.bf16.msra.mxu0 0
  %2097 = vmatpush.bf16.msra.mxu0 0
  %2098 = vmatpush.bf16.msra.mxu0 0
  %2099 = vmatpush.bf16.msra.mxu0 %v2084
  %2100 = vmatpush.bf16.msra.mxu0 %v2083
  %2101 = vmatmul.bf16.gmra.mxu0 %v2088
  %v2102 = vpop.f32.mrf.mxu0
  %v2103 = vadd.f32 0.0, %v2102
  %v2104 = vpop.f32.mrf.mxu0
  %v2105 = vadd.f32 0.0, %v2104
  %2106 = vmatmul.bf16.gmra.mxu0 %v2091
  %v2107 = vpop.f32.mrf.mxu0
  %v2108 = vadd.f32 0.0, %v2107
  %v2109 = vpop.f32.mrf.mxu0
  %v2110 = vadd.f32 0.0, %v2109
  %2111 = vdwg.mxu0
  %v2116 = vunpack.c.l.b16 %v2065
  %v2117 = vunpack.c.l.b16 %v2066
  %v2118 = vunpack.c.l.b16 %v2067
  %v2119 = vunpack.c.l.b16 %v2068
  %v2120 = vpack.c.b16 %v2117, %v2116
  %v2121 = vpack.c.b16 %v2119, %v2118
  %v2125 = vsel %vm95, %v2063, 0
  %v2128 = vsel %vm95, %v2064, 0
  %2130 = vmatpush.bf16.msra.mxu0 0
  %2131 = vmatpush.bf16.msra.mxu0 0
  %2132 = vmatpush.bf16.msra.mxu0 0
  %2133 = vmatpush.bf16.msra.mxu0 0
  %2134 = vmatpush.bf16.msra.mxu0 0
  %2135 = vmatpush.bf16.msra.mxu0 0
  %2136 = vmatpush.bf16.msra.mxu0 %v2121
  %2137 = vmatpush.bf16.msra.mxu0 %v2120
  %2138 = vmatmul.bf16.gmra.mxu0 %v2125
  %v2139 = vpop.f32.mrf.mxu0
  %v2140 = vadd.f32 %v2103, %v2139
  %v2141 = vpop.f32.mrf.mxu0
  %v2142 = vadd.f32 %v2105, %v2141
  %2143 = vmatmul.bf16.gmra.mxu0 %v2128
  %v2144 = vpop.f32.mrf.mxu0
  %v2145 = vadd.f32 %v2108, %v2144
  %v2146 = vpop.f32.mrf.mxu0
  %v2147 = vadd.f32 %v2110, %v2146
  %2148 = vdwg.mxu0
  %v2149 = vld [vmem:[%s18] sm:$0x1]
  %v2151 = vperm.slane %v2149, 0
  %v2153 = vadd.f32 %v2140, %v2151
  %v2154 = vadd.f32 %v2142, %v2151
  %v2155 = vadd.f32 %v2145, %v2151
  %v2156 = vadd.f32 %v2147, %v2151
  %v2157 = vxor.u32 %v2153, 2147483648
  %v2158 = vxor.u32 %v2154, 2147483648
  %v2159 = vxor.u32 %v2155, 2147483648
  %v2160 = vxor.u32 %v2156, 2147483648
  %v2161 = vmul.f32 %v2157, 1.442695
  %v2162 = vpow.pop %v2161
  %v2163 = vmul.f32 %v2158, 1.442695
  %v2164 = vpow.pop %v2163
  %v2165 = vmul.f32 %v2159, 1.442695
  %v2166 = vpow.pop %v2165
  %v2167 = vmul.f32 %v2160, 1.442695
  %v2168 = vpow.pop %v2167
  %v2169 = vadd.f32 %v2162, 1.0
  %v2170 = vadd.f32 %v2164, 1.0
  %v2171 = vadd.f32 %v2166, 1.0
  %v2172 = vadd.f32 %v2168, 1.0
  %v2173 = vrcp.pop %v2169
  %v2174 = vmul.f32 %v2169, %v2173
  %v2175 = vsub.f32 1.0, %v2174
  %v2176 = vmul.f32 %v2173, %v2175
  %v2177 = vadd.f32 %v2173, %v2176
  %vm2178 = vweird.f32 %v2169
  %vm2179 = vweird.f32 %v2173
  %vm2180 = vmor %vm2178, %vm2179
  %v2181 = vsel %vm2180, %v2173, %v2177
  %v2182 = vand.u32 2147483647, %v2169
  %vm2183 = vcmp.eq.f32.partialorder %v2182, 8.507059e+37
  %v2184 = vand.u32 %v2169, 2147483648
  %v2185 = vor.u32 1.1754944e-38, %v2184
  %v2186 = vsel %vm2183, %v2185, %v2181
  %v2187 = vmul.f32 1.0, %v2186
  %v2188 = vrcp.pop %v2170
  %v2189 = vmul.f32 %v2170, %v2188
  %v2190 = vsub.f32 1.0, %v2189
  %v2191 = vmul.f32 %v2188, %v2190
  %v2192 = vadd.f32 %v2188, %v2191
  %vm2193 = vweird.f32 %v2170
  %vm2194 = vweird.f32 %v2188
  %vm2195 = vmor %vm2193, %vm2194
  %v2196 = vsel %vm2195, %v2188, %v2192
  %v2197 = vand.u32 2147483647, %v2170
  %vm2198 = vcmp.eq.f32.partialorder %v2197, 8.507059e+37
  %v2199 = vand.u32 %v2170, 2147483648
  %v2200 = vor.u32 1.1754944e-38, %v2199
  %v2201 = vsel %vm2198, %v2200, %v2196
  %v2202 = vmul.f32 1.0, %v2201
  %v2203 = vrcp.pop %v2171
  %v2204 = vmul.f32 %v2171, %v2203
  %v2205 = vsub.f32 1.0, %v2204
  %v2206 = vmul.f32 %v2203, %v2205
  %v2207 = vadd.f32 %v2203, %v2206
  %vm2208 = vweird.f32 %v2171
  %vm2209 = vweird.f32 %v2203
  %vm2210 = vmor %vm2208, %vm2209
  %v2211 = vsel %vm2210, %v2203, %v2207
  %v2212 = vand.u32 2147483647, %v2171
  %vm2213 = vcmp.eq.f32.partialorder %v2212, 8.507059e+37
  %v2214 = vand.u32 %v2171, 2147483648
  %v2215 = vor.u32 1.1754944e-38, %v2214
  %v2216 = vsel %vm2213, %v2215, %v2211
  %v2217 = vmul.f32 1.0, %v2216
  %v2218 = vrcp.pop %v2172
  %v2219 = vmul.f32 %v2172, %v2218
  %v2220 = vsub.f32 1.0, %v2219
  %v2221 = vmul.f32 %v2218, %v2220
  %v2222 = vadd.f32 %v2218, %v2221
  %vm2223 = vweird.f32 %v2172
  %vm2224 = vweird.f32 %v2218
  %vm2225 = vmor %vm2223, %vm2224
  %v2226 = vsel %vm2225, %v2218, %v2222
  %v2227 = vand.u32 2147483647, %v2172
  %vm2228 = vcmp.eq.f32.partialorder %v2227, 8.507059e+37
  %v2229 = vand.u32 %v2172, 2147483648
  %v2230 = vor.u32 1.1754944e-38, %v2229
  %v2231 = vsel %vm2228, %v2230, %v2226
  %v2232 = vmul.f32 1.0, %v2231
  %v2233 = vmul.f32 %v2187, %v2059
  %v2234 = vmul.f32 %v2202, %v2060
  %v2235 = vmul.f32 %v2217, %v2061
  %v2236 = vmul.f32 %v2232, %v2062
  %v2237 = vsub.f32 1.0, %v2187
  %v2238 = vsub.f32 1.0, %v2202
  %v2239 = vsub.f32 1.0, %v2217
  %v2240 = vsub.f32 1.0, %v2232
  %v2241 = vmul.f32 %v2237, %v2055
  %v2242 = vmul.f32 %v2238, %v2056
  %v2243 = vmul.f32 %v2239, %v2057
  %v2244 = vmul.f32 %v2240, %v2058
  %v2245 = vadd.f32 %v2233, %v2241
  %v2246 = vadd.f32 %v2234, %v2242
  %v2247 = vadd.f32 %v2235, %v2243
  %v2248 = vadd.f32 %v2236, %v2244
  %2249 = vst.msk [vmem:[%s21] sm:$0xff] %vm95, %v2245
  %2250 = vst.msk [vmem:[%s21 + $0x8] sm:$0xff] %vm95, %v2246
  %2251 = vst.msk [vmem:[%s21 + $0x10] sm:$0xff] %vm95, %v2247
  %2252 = vst.msk [vmem:[%s21 + $0x18] sm:$0xff] %vm95, %v2248
  %v2253 = vld [vmem:[%s19] sm:$0x1]
  %v2254 = vld [vmem:[%s19 + $0x1] sm:$0x1]
  %v2255 = vperm.slane %v2254, 0
  %v2256 = vmul.f32 %v2245, %v2255
  %v2257 = vmul.f32 %v2246, %v2255
  %v2258 = vmul.f32 %v2247, %v2255
  %v2259 = vmul.f32 %v2248, %v2255
  %v2260 = vsel %vm95, %v2256, 0.0
  %2261 = vadd.xlane.f32.xlu0 %v2260
  %v2262 = vpop.xlane.xlu0 %2261
  %v2263 = vsel %vm95, %v2257, 0.0
  %2264 = vadd.xlane.f32.xlu0 %v2263
  %v2265 = vpop.xlane.xlu0 %2264
  %v2266 = vsel %vm95, %v2258, 0.0
  %2267 = vadd.xlane.f32.xlu0 %v2266
  %v2268 = vpop.xlane.xlu0 %2267
  %v2269 = vsel %vm95, %v2259, 0.0
  %2270 = vadd.xlane.f32.xlu0 %v2269
  %v2271 = vpop.xlane.xlu0 %2270
  %v2272 = vmul.f32 %v2245, %v2253
  %v2273 = vmul.f32 %v2247, %v2253
  %vm2274 = vcmask 253952
  %v2275 = vsel %vm2274, %v2272, 0.0
  %2276 = vadd.xlane.f32.xlu0 %v2275
  %v2277 = vpop.xlane.xlu0 %2276
  %v2278 = vsel %vm2274, %v2273, 0.0
  %2279 = vadd.xlane.f32.xlu0 %v2278
  %v2280 = vpop.xlane.xlu0 %2279
  %v2281 = vperm.slane %v2277, 0
  %v2282 = vperm.slane %v2280, 0
  %v2283 = vadd.f32 %v2262, %v2281
  %v2284 = vadd.f32 %v2265, %v2281
  %v2285 = vadd.f32 %v2268, %v2282
  %v2286 = vadd.f32 %v2271, %v2282
  %v2287 = vld [vmem:[#allocation2] sm:$0x1]
  %v2289 = vperm.slane %v2287, 0
  %v2291 = vadd.f32 %v2283, %v2289
  %v2292 = vadd.f32 %v2284, %v2289
  %v2293 = vadd.f32 %v2285, %v2289
  %v2294 = vadd.f32 %v2286, %v2289
  %vm2295 = vcmask 7168
  %2296 = vst.msk [vmem:[%s22] sm:$0xff] %vm2295, %v2291
  %2297 = vst.msk [vmem:[%s22 + $0x8] sm:$0xff] %vm2295, %v2292
  %2298 = vst.msk [vmem:[%s22 + $0x10] sm:$0xff] %vm2295, %v2293
  %2299 = vst.msk [vmem:[%s22 + $0x18] sm:$0xff] %vm2295, %v2294
  // Predicated region
  $region86: #{miasrec_forward.1} parent=0 // pred_check
    _
  $region87: #{miasrec_forward.1} parent=0 // pred_check_branch
    %2301 = sbr.rel (0) target = $region89
  $region88: #{miasrec_forward.1} parent=0 // pred_region
    _
  $region89: #{miasrec_forward.1} parent=0 // pred_fallthru
    _
  // Predicated region
  $region90: #{miasrec_forward.1} parent=0 // pred_check
    _
  $region91: #{miasrec_forward.1} parent=0 // pred_check_branch
    %2303 = sbr.rel (0) target = $region93
  $region92: #{miasrec_forward.1} parent=0 // pred_region
    _
  $region93: #{miasrec_forward.1} parent=0 // pred_fallthru
    _
  // Predicated region
  $region94: #{miasrec_forward.1} parent=0 // pred_check
    _
  $region95: #{miasrec_forward.1} parent=0 // pred_check_branch
    %2305 = sbr.rel (0) target = $region97
  $region96: #{miasrec_forward.1} parent=0 // pred_region
    _
  $region97: #{miasrec_forward.1} parent=0 // pred_fallthru
    _
  // Predicated region
  $region98: #{miasrec_forward.1} parent=0 // pred_check
    _
  $region99: #{miasrec_forward.1} parent=0 // pred_check_branch
    %2307 = sbr.rel (0) target = $region101
  $region100: #{miasrec_forward.1} parent=0 // pred_region
    _
  $region101: #{miasrec_forward.1} parent=0 // pred_fallthru
    _

</llo_original>
